<compile_context>
chip_gen: v7x
topology: tpu7x:2x2x1
jax: 0.10.0
libtpu: 0.0.40
codegen_flags: <defaults>
</compile_context>

<pallas_src>
import functools

import jax
import jax.numpy as jnp
from jax.experimental import pallas as pl
from jax.experimental.pallas import tpu as pltpu


# ------------------------------- helpers -----------------------------------


def _ceil_to(x, m):
    return ((x + m - 1) // m) * m


def _pad_to(a, shape):
    pads = tuple((0, t - s) for s, t in zip(a.shape, shape))
    if all(p == (0, 0) for p in pads):
        return a
    return jnp.pad(a, pads)


@functools.lru_cache(maxsize=1)
def _vmem_capacity():
    """Physical VMEM bytes of the local TPU (64 MiB v7x, 128 MiB v5e/v6e)."""
    try:
        cap = int(pltpu.get_tpu_info().vmem_capacity_bytes)
        if cap > 0:
            return cap
    except Exception:
        pass
    return 64 * 1024 * 1024  # conservative (v7x-sized) fallback


def _compiler_params(dimension_semantics):
    return pltpu.CompilerParams(
        dimension_semantics=dimension_semantics,
        vmem_limit_bytes=int(_vmem_capacity() * 3 // 4),
    )


def _pick_tiles(m, kdim, n, *, out_itemsize, extra_mn_inputs=0):
    """Pick (padded_M, TM, TK, TN) for an (M,K)@(K,N) kernel.

    Largest tiles whose double-buffered working set fits ~50% of physical
    VMEM; then, if the (i, j) grid would be a single block, split one parallel
    axis so both v7x TensorCores get work.
    """
    budget = _vmem_capacity() // 2
    mp8 = _ceil_to(m, 8)
    tm_cands = [t for t in (1024, 512, 256, 128) if t <= mp8] or [mp8]
    tn_cands = [t for t in (512, 256, 128) if n % t == 0]
    tk_cands = [t for t in (512, 256, 128) if kdim % t == 0]

    def fits(tm, tk, tn):
        wset = (2 * tm * tk * 2            # x tiles (bf16, double-buffered)
                + 2 * tk * tn * 2          # w tiles
                + tm * tn * 4              # f32 accumulator scratch
                + 2 * tm * tn * out_itemsize
                + 2 * tn * 4               # bias
                + extra_mn_inputs * 2 * tm * tn * 2)
        return wset <= budget

    tm, tk, tn = tm_cands[-1], tk_cands[-1], tn_cands[-1]
    done = False
    for tm_c in tm_cands:
        for tn_c in tn_cands:
            for tk_c in tk_cands:
                if fits(tm_c, tk_c, tn_c):
                    tm, tk, tn = tm_c, tk_c, tn_c
                    done = True
                    break
            if done:
                break
        if done:
            break
    mp = _ceil_to(m, tm)
    # Megacore: guarantee >= 2 blocks on at least one "parallel" grid axis.
    if mp // tm == 1 and n // tn == 1:
        if tm % 16 == 0:
            tm //= 2
        elif tn % 256 == 0:
            tn //= 2
    return mp, tm, tk, tn


# ----------------------------- Pallas kernels -------------------------------


def _mm_bias_kernel(x_ref, w_ref, b_ref, o_ref, acc_ref, *, relu):
    """out[i,j] = act( sum_k x[i,k] @ w[k,j] + b[j] ), f32 accumulation."""
    k = pl.program_id(2)

    @pl.when(k == 0)
    def _():
        # Seed the accumulator with the (broadcast) bias -> no epilogue add.
        acc_ref[...] = jnp.broadcast_to(
            b_ref[...].astype(jnp.float32), acc_ref.shape)

    acc_ref[...] += jnp.dot(x_ref[...], w_ref[...],
                            preferred_element_type=jnp.float32)

    @pl.when(k == pl.num_programs(2) - 1)
    def _():
        out = acc_ref[...]
        if relu:
            out = jnp.maximum(out, 0.0)
        o_ref[...] = out.astype(o_ref.dtype)


def _mm_res_relu_kernel(x_ref, w_ref, b_ref, r_ref, o_ref, acc_ref):
    """out = relu(x @ w + b + residual)  (identity shortcut path)."""
    k = pl.program_id(2)

    @pl.when(k == 0)
    def _():
        acc_ref[...] = jnp.broadcast_to(
            b_ref[...].astype(jnp.float32), acc_ref.shape)

    acc_ref[...] += jnp.dot(x_ref[...], w_ref[...],
                            preferred_element_type=jnp.float32)

    @pl.when(k == pl.num_programs(2) - 1)
    def _():
        out = acc_ref[...] + r_ref[...].astype(jnp.float32)
        o_ref[...] = jnp.maximum(out, 0.0).astype(o_ref.dtype)


def _conv3x3_kernel(x_ref, w_ref, b_ref, o_ref, acc_ref, *,
                    ho, wo, wo8, cin, stride):
    """Direct 3x3 conv (pad=1) for one image / one output-channel tile.

    The padded activation (stride phases folded into a size-`stride` row-phase
    dim and into the channel dim) stays resident in VMEM; the 9 taps are 9
    accumulating MXU matmuls over statically shifted windows -- no im2col.
    """
    acc_ref[...] = jnp.broadcast_to(
        b_ref[...].astype(jnp.float32), acc_ref.shape)
    for t in range(9):
        ky, kx = t // 3, t % 3
        r0 = ky // stride
        c0 = kx // stride
        ch0 = (kx % stride) * cin
        xt = x_ref[0, r0:r0 + ho, ky % stride, c0:c0 + wo8, ch0:ch0 + cin]
        acc_ref[...] += jnp.dot(xt.reshape(ho * wo8, cin), w_ref[t],
                                preferred_element_type=jnp.float32)
    out = jnp.maximum(acc_ref[...], 0.0).astype(o_ref.dtype)
    o_ref[0] = out.reshape(ho, wo8, -1)[:, :wo, :]


# ----------------------------- Pallas wrappers ------------------------------


def matmul_bias(x, w, bias2d, *, relu, out_dtype=jnp.bfloat16):
    m, kdim = x.shape
    kw, n = w.shape
    assert kdim == kw and kdim % 128 == 0 and n % 128 == 0
    mp, tm, tk, tn = _pick_tiles(m, kdim, n,
                                 out_itemsize=jnp.dtype(out_dtype).itemsize)
    xp = _pad_to(x.astype(jnp.bfloat16), (mp, kdim))
    out = pl.pallas_call(
        functools.partial(_mm_bias_kernel, relu=relu),
        out_shape=jax.ShapeDtypeStruct((mp, n), out_dtype),
        grid=(mp // tm, n // tn, kdim // tk),
        in_specs=[
            pl.BlockSpec((tm, tk), lambda i, j, k: (i, k)),
            pl.BlockSpec((tk, tn), lambda i, j, k: (k, j)),
            pl.BlockSpec((1, tn), lambda i, j, k: (0, j)),
        ],
        out_specs=pl.BlockSpec((tm, tn), lambda i, j, k: (i, j)),
        scratch_shapes=[pltpu.VMEM((tm, tn), jnp.float32)],
        compiler_params=_compiler_params(("parallel", "parallel", "arbitrary")),
    )(xp, w, bias2d)
    return out[:m] if mp != m else out


def matmul_res_relu(x, w, bias2d, res, out_dtype=jnp.bfloat16):
    m, kdim = x.shape
    kw, n = w.shape
    assert kdim == kw and res.shape == (m, n)
    assert kdim % 128 == 0 and n % 128 == 0
    mp, tm, tk, tn = _pick_tiles(m, kdim, n,
                                 out_itemsize=jnp.dtype(out_dtype).itemsize,
                                 extra_mn_inputs=1)
    xp = _pad_to(x.astype(jnp.bfloat16), (mp, kdim))
    rp = _pad_to(res.astype(jnp.bfloat16), (mp, n))
    out = pl.pallas_call(
        _mm_res_relu_kernel,
        out_shape=jax.ShapeDtypeStruct((mp, n), out_dtype),
        grid=(mp // tm, n // tn, kdim // tk),
        in_specs=[
            pl.BlockSpec((tm, tk), lambda i, j, k: (i, k)),
            pl.BlockSpec((tk, tn), lambda i, j, k: (k, j)),
            pl.BlockSpec((1, tn), lambda i, j, k: (0, j)),
            pl.BlockSpec((tm, tn), lambda i, j, k: (i, j)),
        ],
        out_specs=pl.BlockSpec((tm, tn), lambda i, j, k: (i, j)),
        scratch_shapes=[pltpu.VMEM((tm, tn), jnp.float32)],
        compiler_params=_compiler_params(("parallel", "parallel", "arbitrary")),
    )(xp, w, bias2d, rp)
    return out[:m] if mp != m else out


def conv3x3_bn_relu(x_nhwc, w_taps, bias2d, stride):
    """3x3 conv, padding=1, given stride; BN folded into w_taps/bias; ReLU."""
    assert stride in (1, 2)
    N, H, W, C = x_nhwc.shape
    n_taps, cw, Cout = w_taps.shape
    assert n_taps == 9 and cw == C and C % 128 == 0 and Cout % 128 == 0
    s = stride
    Ho = (H - 1) // s + 1
    Wo = (W - 1) // s + 1
    Wo8 = _ceil_to(Wo, 8)
    HH = Ho + 2 // s          # decomposed row extent (tap offsets 0..2//s)
    WW = Wo8 + 2 // s
    Hpad, Wpad = HH * s, WW * s

    # Spatial zero-pad (1 top/left for the conv, plus enough bottom/right for
    # the tap windows), then fold the stride phases into a row-phase dim and
    # the channel dim via *pure* reshapes (no extra data movement):
    #   padded row  r = s*rh + ph, padded col c = s*ch + pw
    #   -> xr[n, rh, ph, ch, pw*C + cc]
    xp = jnp.pad(x_nhwc.astype(jnp.bfloat16),
                 ((0, 0), (1, Hpad - H - 1), (1, Wpad - W - 1), (0, 0)))
    xr = xp.reshape(N, HH, s, WW, s * C)

    budget = _vmem_capacity() // 2
    tn = 128
    for cand in (512, 256, 128):
        if Cout % cand:
            continue
        wset = (2 * HH * s * WW * s * C * 2     # padded image (double-buffered)
                + 2 * 9 * C * cand * 2          # 9 weight taps
                + Ho * Wo8 * cand * 4           # f32 accumulator
                + 2 * Ho * Wo * cand * 2        # output tile
                + 2 * cand * 4)                 # bias
        if wset <= budget:
            tn = cand
            break
    if N == 1 and Cout // tn == 1 and tn % 256 == 0:
        tn //= 2  # keep >= 2 blocks on a parallel axis (v7x megacore)

    kernel = functools.partial(_conv3x3_kernel, ho=Ho, wo=Wo, wo8=Wo8,
                               cin=C, stride=s)
    return pl.pallas_call(
        kernel,
        out_shape=jax.ShapeDtypeStruct((N, Ho, Wo, Cout), jnp.bfloat16),
        grid=(N, Cout // tn),
        in_specs=[
            pl.BlockSpec((1, HH, s, WW, s * C), lambda n, j: (n, 0, 0, 0, 0)),
            pl.BlockSpec((9, C, tn), lambda n, j: (0, 0, j)),
            pl.BlockSpec((1, tn), lambda n, j: (0, j)),
        ],
        out_specs=pl.BlockSpec((1, Ho, Wo, tn), lambda n, j: (n, 0, 0, j)),
        scratch_shapes=[pltpu.VMEM((Ho * Wo8, tn), jnp.float32)],
        compiler_params=_compiler_params(("parallel", "parallel")),
    )(xr, w_taps, bias2d)


# ------------------------ one-time weight preparation ------------------------


def fold_bn(gamma, beta, mean, var, eps=1e-5):
    scale = gamma / jnp.sqrt(var + eps)
    bias = beta - mean * scale
    return scale, bias


def prepare_bottleneck(params):
    """Fold BN, transpose/pad/cast weights once (hoisted out of the forward)."""
    stride = int(params["stride"])
    planes, cin = params["conv1"].shape[0], params["conv1"].shape[1]
    cexp = params["conv3"].shape[0]
    has_proj = "conv_sc" in params
    Cin_p = _ceil_to(cin, 128)
    Cp = _ceil_to(planes, 128)
    Cexp_p = _ceil_to(cexp, 128)

    s1, b1 = fold_bn(**params["bn1"])
    s2, b2 = fold_bn(**params["bn2"])
    s3, b3 = fold_bn(**params["bn3"])

    w1 = params["conv1"].reshape(planes, cin).T * s1[None, :]        # (cin, planes)
    w2 = jnp.transpose(params["conv2"], (2, 3, 1, 0)) * s2[None, None, None, :]
    w2 = _pad_to(w2, (3, 3, Cp, Cp)).reshape(9, Cp, Cp)              # (9, Cp, Cp)
    w3 = params["conv3"].reshape(cexp, planes).T * s3[None, :]       # (planes, cexp)
    w3p = _pad_to(w3, (Cp, Cexp_p))

    prep = {
        "w1": _pad_to(w1, (Cin_p, Cp)).astype(jnp.bfloat16),
        "b1": _pad_to(b1.reshape(1, planes), (1, Cp)).astype(jnp.float32),
        "w2": w2.astype(jnp.bfloat16),
        "b2": _pad_to(b2.reshape(1, planes), (1, Cp)).astype(jnp.float32),
    }
    if has_proj:
        ss, bs = fold_bn(**params["bn_sc"])
        wsc = params["conv_sc"].reshape(cexp, cin).T * ss[None, :]   # (cin, cexp)
        wscp = _pad_to(wsc, (Cin_p, Cexp_p))
        # Shortcut folded into the conv3 K reduction: [out2 | xs] @ [w3 ; wsc].
        prep["w3"] = jnp.concatenate([w3p, wscp], axis=0).astype(jnp.bfloat16)
        prep["b3"] = _pad_to((b3 + bs).reshape(1, cexp),
                             (1, Cexp_p)).astype(jnp.float32)
    else:
        prep["w3"] = w3p.astype(jnp.bfloat16)
        prep["b3"] = _pad_to(b3.reshape(1, cexp), (1, Cexp_p)).astype(jnp.float32)

    meta = (stride, cin, planes, cexp, has_proj)
    return prep, meta


# --------------------------------- forward ----------------------------------


def bottleneck_forward_nhwc(x, prep, meta):
    """NHWC bf16 in -> NHWC bf16 out (use this when stacking blocks)."""
    stride, cin, planes, cexp, has_proj = meta
    N, H, W, Cin = x.shape
    assert Cin == cin
    Cin_p = _ceil_to(cin, 128)
    Cp = _ceil_to(planes, 128)
    Cexp_p = _ceil_to(cexp, 128)
    M = N * H * W

    # conv1 (1x1) + bn1 + relu
    x2d = _pad_to(x.reshape(M, Cin), (M, Cin_p))
    out1 = matmul_bias(x2d, prep["w1"], prep["b1"], relu=True)        # (M, Cp)

    # conv2 (3x3, stride, pad=1) + bn2 + relu -- direct, no im2col
    out2 = conv3x3_bn_relu(out1.reshape(N, H, W, Cp),
                           prep["w2"], prep["b2"], stride)            # (N,Ho,Wo,Cp)
    Ho, Wo = out2.shape[1], out2.shape[2]
    M2 = N * Ho * Wo
    out2_2d = out2.reshape(M2, Cp)

    # conv3 (1x1) + bn3 + shortcut + relu
    if has_proj:
        xs = _pad_to(x[:, ::stride, ::stride, :].reshape(M2, Cin), (M2, Cin_p))
        xcat = jnp.concatenate([out2_2d, xs], axis=1)                 # (M2, Cp+Cin_p)
        out = matmul_bias(xcat, prep["w3"], prep["b3"], relu=True)
    else:
        res = _pad_to(x.reshape(M, Cin), (M, Cexp_p))
        out = matmul_res_relu(out2_2d, prep["w3"], prep["b3"], res)

    return out[:, :cexp].reshape(N, Ho, Wo, cexp)


def bottleneck_forward(x_nchw, prep, meta):
    """NCHW f32 in / out, matching the PyTorch module interface."""
    # TODO(synk): when stacking blocks, stay NHWC/bf16 between blocks and only
    # transpose/cast at network entry/exit.
    x = jnp.transpose(x_nchw, (0, 2, 3, 1)).astype(jnp.bfloat16)
    out = bottleneck_forward_nhwc(x, prep, meta)
    return jnp.transpose(out, (0, 3, 1, 2)).astype(jnp.float32)


# ---------------------------- pure-JAX reference ----------------------------


def _conv_nhwc(x, w_oihw, stride):
    w = jnp.transpose(w_oihw, (2, 3, 1, 0))  # HWIO
    kh = w_oihw.shape[2]
    pad = [(kh // 2, kh // 2), (kh // 2, kh // 2)]
    return jax.lax.conv_general_dilated(
        x, w, (stride, stride), pad, dimension_numbers=("NHWC", "HWIO", "NHWC"))


def bottleneck_reference(x_nchw, params):
    stride = params["stride"]
    x = jnp.transpose(x_nchw, (0, 2, 3, 1))
    s1, b1 = fold_bn(**params["bn1"])
    s2, b2 = fold_bn(**params["bn2"])
    s3, b3 = fold_bn(**params["bn3"])
    out = jnp.maximum(_conv_nhwc(x, params["conv1"], 1) * s1 + b1, 0.0)
    out = jnp.maximum(_conv_nhwc(out, params["conv2"], stride) * s2 + b2, 0.0)
    out = _conv_nhwc(out, params["conv3"], 1) * s3 + b3
    if "conv_sc" in params:
        ss, bs = fold_bn(**params["bn_sc"])
        sc = _conv_nhwc(x, params["conv_sc"], stride) * ss + bs
    else:
        sc = x
    out = jnp.maximum(out + sc, 0.0)
    return jnp.transpose(out, (0, 3, 1, 2))


# ------------------------------- param init ---------------------------------


def init_bottleneck_params(key, in_planes, planes, stride):
    expansion = 4
    ks = list(jax.random.split(key, 8))

    def conv_w(k, cout, cin, kh, kw):
        return 0.1 * jax.random.normal(k, (cout, cin, kh, kw), jnp.float32)

    def bn(k, c):
        k1, k2, k3, k4 = jax.random.split(k, 4)
        return dict(
            gamma=jax.random.uniform(k1, (c,), jnp.float32, 0.5, 1.5),
            beta=0.1 * jax.random.normal(k2, (c,), jnp.float32),
            mean=0.1 * jax.random.normal(k3, (c,), jnp.float32),
            var=jax.random.uniform(k4, (c,), jnp.float32, 0.5, 1.5),
        )

    p = {
        "conv1": conv_w(ks[0], planes, in_planes, 1, 1),
        "bn1": bn(ks[1], planes),
        "conv2": conv_w(ks[2], planes, planes, 3, 3),
        "bn2": bn(ks[3], planes),
        "conv3": conv_w(ks[4], expansion * planes, planes, 1, 1),
        "bn3": bn(ks[5], expansion * planes),
        "stride": stride,
    }
    if stride != 1 or in_planes != expansion * planes:
        p["conv_sc"] = conv_w(ks[6], expansion * planes, in_planes, 1, 1)
        p["bn_sc"] = bn(ks[7], expansion * planes)
    return p


# ----------------------------------- main -----------------------------------


if __name__ == "__main__":
    key = jax.random.PRNGKey(0)
    fwd = jax.jit(bottleneck_forward, static_argnums=(2,))

    configs = [
        # (N, in_planes, planes, H, W, stride)
        (2, 16, 8, 8, 8, 1),   # projection shortcut (in_planes != 4*planes)
        (2, 32, 8, 8, 8, 1),   # identity shortcut   (in_planes == 4*planes)
        (2, 16, 8, 8, 8, 2),   # projection shortcut with stride 2
    ]
    for idx, (N, cin, planes, H, W, stride) in enumerate(configs):
        kx, kp, key = jax.random.split(key, 3)
        x = jax.random.normal(kx, (N, cin, H, W), jnp.float32)  # NCHW like PyTorch
        params = init_bottleneck_params(kp, cin, planes, stride)
        prep, meta = prepare_bottleneck(params)

        out = jax.block_until_ready(fwd(x, prep, meta))
        ref = jax.block_until_ready(bottleneck_reference(x, params))

        Ho = (H + 2 - 3) // stride + 1
        assert out.shape == (N, 4 * planes, Ho, Ho), (idx, out.shape)
        max_err = float(jnp.max(jnp.abs(out - ref)))
        # bf16 activations / f32 accumulation -> looser tolerance than pure f32.
        assert jnp.allclose(out, ref, rtol=3e-2, atol=3e-2), (idx, max_err)

    print("KERNEL_OK")
</pallas_src>

<mosaic_0001>
module attributes {stable_mosaic.version = 11 : i64} {
  func.func @_mm_bias_kernel(%arg0: i32, %arg1: i32, %arg2: i32, %arg3: memref<64x128xbf16, #tpu.memory_space<vmem>>, %arg4: memref<128x128xbf16, #tpu.memory_space<vmem>>, %arg5: memref<1x128xf32, #tpu.memory_space<vmem>>, %arg6: memref<64x128xbf16, #tpu.memory_space<vmem>>, %arg7: memref<64x128xf32, #tpu.memory_space<vmem>>) attributes {dimension_semantics = [#tpu.dimension_semantics<parallel>, #tpu.dimension_semantics<parallel>, #tpu.dimension_semantics<arbitrary>], iteration_bounds = array<i64: 2, 1, 1>, scalar_prefetch = 0 : i64, scratch_operands = 1 : i64, tpu.core_type = #tpu.core_type<tc>, window_params = [{transform_indices = @transform_0, window_bounds = array<i64: 64, 128>}, {transform_indices = @transform_1, window_bounds = array<i64: 128, 128>}, {transform_indices = @transform_2, window_bounds = array<i64: 1, 128>}, {transform_indices = @transform_3, window_bounds = array<i64: 64, 128>}]} {
    %c0_i32 = arith.constant 0 : i32
    %0 = arith.cmpi eq, %arg2, %c0_i32 : i32
    %1 = arith.extui %0 : i1 to i32
    %c0_i32_0 = arith.constant 0 : i32
    %2 = arith.cmpi ne, %1, %c0_i32_0 : i32
    scf.if %2 {
      %c0_10 = arith.constant 0 : index
      %c0_11 = arith.constant 0 : index
      %12 = vector.load %arg5[%c0_10, %c0_11] : memref<1x128xf32, #tpu.memory_space<vmem>>, vector<1x128xf32>
      %13 = vector.shape_cast %12 : vector<1x128xf32> to vector<1x128xf32>
      %14 = vector.broadcast %13 : vector<1x128xf32> to vector<64x128xf32>
      %c0_12 = arith.constant 0 : index
      %c0_13 = arith.constant 0 : index
      %15 = vector.load %arg7[%c0_12, %c0_13] : memref<64x128xf32, #tpu.memory_space<vmem>>, vector<64x128xf32>
      tpu.vector_store %arg7[%c0_12, %c0_13], %14 {strides = array<i32>} : memref<64x128xf32, #tpu.memory_space<vmem>>, vector<64x128xf32>,
    } else {
    }
    %c0 = arith.constant 0 : index
    %c0_1 = arith.constant 0 : index
    %3 = vector.load %arg7[%c0, %c0_1] : memref<64x128xf32, #tpu.memory_space<vmem>>, vector<64x128xf32>
    %c0_2 = arith.constant 0 : index
    %c0_3 = arith.constant 0 : index
    %4 = vector.load %arg3[%c0_2, %c0_3] : memref<64x128xbf16, #tpu.memory_space<vmem>>, vector<64x128xbf16>
    %c0_4 = arith.constant 0 : index
    %c0_5 = arith.constant 0 : index
    %5 = vector.load %arg4[%c0_4, %c0_5] : memref<128x128xbf16, #tpu.memory_space<vmem>>, vector<128x128xbf16>
    %cst = arith.constant dense<0.000000e+00> : vector<64x128xf32>
    %6 = tpu.matmul %4, %5, %cst {dimension_numbers = #tpu.dot_dimension_numbers<[1], [0], [0], [1], [0, 0, 1, 1], [], []>} : vector<64x128xbf16>, vector<128x128xbf16>, vector<64x128xf32> -> vector<64x128xf32>
    %7 = arith.addf %3, %6 : vector<64x128xf32>
    %c0_6 = arith.constant 0 : index
    %c0_7 = arith.constant 0 : index
    %8 = vector.load %arg7[%c0_6, %c0_7] : memref<64x128xf32, #tpu.memory_space<vmem>>, vector<64x128xf32>
    tpu.vector_store %arg7[%c0_6, %c0_7], %7 {strides = array<i32>} : memref<64x128xf32, #tpu.memory_space<vmem>>, vector<64x128xf32>,
    %c0_i32_8 = arith.constant 0 : i32
    %9 = arith.cmpi eq, %arg2, %c0_i32_8 : i32
    %10 = arith.extui %9 : i1 to i32
    %c0_i32_9 = arith.constant 0 : i32
    %11 = arith.cmpi ne, %10, %c0_i32_9 : i32
    scf.if %11 {
      %c0_10 = arith.constant 0 : index
      %c0_11 = arith.constant 0 : index
      %12 = vector.load %arg7[%c0_10, %c0_11] : memref<64x128xf32, #tpu.memory_space<vmem>>, vector<64x128xf32>
      %cst_12 = arith.constant 0.000000e+00 : f32
      %13 = vector.broadcast %cst_12 : f32 to vector<64x128xf32>
      %14 = arith.maximumf %12, %13 : vector<64x128xf32>
      %15 = arith.truncf %14 : vector<64x128xf32> to vector<64x128xbf16>
      %c0_13 = arith.constant 0 : index
      %c0_14 = arith.constant 0 : index
      %16 = vector.load %arg6[%c0_13, %c0_14] : memref<64x128xbf16, #tpu.memory_space<vmem>>, vector<64x128xbf16>
      tpu.vector_store %arg6[%c0_13, %c0_14], %15 {strides = array<i32>} : memref<64x128xbf16, #tpu.memory_space<vmem>>, vector<64x128xbf16>,
    } else {
    }
    return
  }
  func.func @transform_0(%arg0: i32, %arg1: i32, %arg2: i32) -> (i32, i32) {
    %c0_i32 = arith.constant 0 : i32
    return %arg0, %arg2 : i32, i32
  }
  func.func @transform_1(%arg0: i32, %arg1: i32, %arg2: i32) -> (i32, i32) {
    %c0_i32 = arith.constant 0 : i32
    return %arg2, %arg1 : i32, i32
  }
  func.func @transform_2(%arg0: i32, %arg1: i32, %arg2: i32) -> (i32, i32) {
    %c0_i32 = arith.constant 0 : i32
    %c0_i32_0 = arith.constant 0 : i32
    return %c0_i32, %arg1 : i32, i32
  }
  func.func @transform_3(%arg0: i32, %arg1: i32, %arg2: i32) -> (i32, i32) {
    %c0_i32 = arith.constant 0 : i32
    return %arg0, %arg1 : i32, i32
  }
}

module attributes {stable_mosaic.version = 11 : i64} {
  func.func @_conv3x3_kernel(%arg0: i32, %arg1: i32, %arg2: memref<1x10x1x10x128xbf16, #tpu.memory_space<vmem>>, %arg3: memref<9x128x128xbf16, #tpu.memory_space<vmem>>, %arg4: memref<1x128xf32, #tpu.memory_space<vmem>>, %arg5: memref<1x8x8x128xbf16, #tpu.memory_space<vmem>>, %arg6: memref<64x128xf32, #tpu.memory_space<vmem>>) attributes {dimension_semantics = [#tpu.dimension_semantics<parallel>, #tpu.dimension_semantics<parallel>], iteration_bounds = array<i64: 2, 1>, scalar_prefetch = 0 : i64, scratch_operands = 1 : i64, tpu.core_type = #tpu.core_type<tc>, window_params = [{transform_indices = @transform_0, window_bounds = array<i64: 1, 10, 1, 10, 128>}, {transform_indices = @transform_1, window_bounds = array<i64: 9, 128, 128>}, {transform_indices = @transform_2, window_bounds = array<i64: 1, 128>}, {transform_indices = @transform_3, window_bounds = array<i64: 1, 8, 8, 128>}]} {
    %c0 = arith.constant 0 : index
    %c0_0 = arith.constant 0 : index
    %0 = vector.load %arg4[%c0, %c0_0] : memref<1x128xf32, #tpu.memory_space<vmem>>, vector<1x128xf32>
    %1 = vector.shape_cast %0 : vector<1x128xf32> to vector<1x128xf32>
    %2 = vector.broadcast %1 : vector<1x128xf32> to vector<64x128xf32>
    %c0_1 = arith.constant 0 : index
    %c0_2 = arith.constant 0 : index
    %3 = vector.load %arg6[%c0_1, %c0_2] : memref<64x128xf32, #tpu.memory_space<vmem>>, vector<64x128xf32>
    tpu.vector_store %arg6[%c0_1, %c0_2], %2 {strides = array<i32>} : memref<64x128xf32, #tpu.memory_space<vmem>>, vector<64x128xf32>,
    %c0_3 = arith.constant 0 : index
    %c0_4 = arith.constant 0 : index
    %c0_5 = arith.constant 0 : index
    %c0_6 = arith.constant 0 : index
    %c0_7 = arith.constant 0 : index
    %4 = vector.load %arg2[%c0_3, %c0_4, %c0_5, %c0_6, %c0_7] : memref<1x10x1x10x128xbf16, #tpu.memory_space<vmem>>, vector<1x8x1x8x128xbf16>
    %5 = vector.shape_cast %4 : vector<1x8x1x8x128xbf16> to vector<8x8x128xbf16>
    %c0_8 = arith.constant 0 : index
    %c0_9 = arith.constant 0 : index
    %6 = vector.load %arg6[%c0_8, %c0_9] : memref<64x128xf32, #tpu.memory_space<vmem>>, vector<64x128xf32>
    %7 = vector.shape_cast %5 : vector<8x8x128xbf16> to vector<64x128xbf16>
    %c0_10 = arith.constant 0 : index
    %c0_11 = arith.constant 0 : index
    %c0_12 = arith.constant 0 : index
    %8 = vector.load %arg3[%c0_10, %c0_11, %c0_12] : memref<9x128x128xbf16, #tpu.memory_space<vmem>>, vector<1x128x128xbf16>
    %9 = vector.shape_cast %8 : vector<1x128x128xbf16> to vector<128x128xbf16>
    %cst = arith.constant dense<0.000000e+00> : vector<64x128xf32>
    %10 = tpu.matmul %7, %9, %cst {dimension_numbers = #tpu.dot_dimension_numbers<[1], [0], [0], [1], [0, 0, 1, 1], [], []>} : vector<64x128xbf16>, vector<128x128xbf16>, vector<64x128xf32> -> vector<64x128xf32>
    %11 = arith.addf %6, %10 : vector<64x128xf32>
    %c0_13 = arith.constant 0 : index
    %c0_14 = arith.constant 0 : index
    %12 = vector.load %arg6[%c0_13, %c0_14] : memref<64x128xf32, #tpu.memory_space<vmem>>, vector<64x128xf32>
    tpu.vector_store %arg6[%c0_13, %c0_14], %11 {strides = array<i32>} : memref<64x128xf32, #tpu.memory_space<vmem>>, vector<64x128xf32>,
    %c0_15 = arith.constant 0 : index
    %c0_16 = arith.constant 0 : index
    %c0_17 = arith.constant 0 : index
    %c1 = arith.constant 1 : index
    %c0_18 = arith.constant 0 : index
    %13 = vector.load %arg2[%c0_15, %c0_16, %c0_17, %c1, %c0_18] : memref<1x10x1x10x128xbf16, #tpu.memory_space<vmem>>, vector<1x8x1x8x128xbf16>
    %14 = vector.shape_cast %13 : vector<1x8x1x8x128xbf16> to vector<8x8x128xbf16>
    %c0_19 = arith.constant 0 : index
    %c0_20 = arith.constant 0 : index
    %15 = vector.load %arg6[%c0_19, %c0_20] : memref<64x128xf32, #tpu.memory_space<vmem>>, vector<64x128xf32>
    %16 = vector.shape_cast %14 : vector<8x8x128xbf16> to vector<64x128xbf16>
    %c1_21 = arith.constant 1 : index
    %c0_22 = arith.constant 0 : index
    %c0_23 = arith.constant 0 : index
    %17 = vector.load %arg3[%c1_21, %c0_22, %c0_23] : memref<9x128x128xbf16, #tpu.memory_space<vmem>>, vector<1x128x128xbf16>
    %18 = vector.shape_cast %17 : vector<1x128x128xbf16> to vector<128x128xbf16>
    %cst_24 = arith.constant dense<0.000000e+00> : vector<64x128xf32>
    %19 = tpu.matmul %16, %18, %cst_24 {dimension_numbers = #tpu.dot_dimension_numbers<[1], [0], [0], [1], [0, 0, 1, 1], [], []>} : vector<64x128xbf16>, vector<128x128xbf16>, vector<64x128xf32> -> vector<64x128xf32>
    %20 = arith.addf %15, %19 : vector<64x128xf32>
    %c0_25 = arith.constant 0 : index
    %c0_26 = arith.constant 0 : index
    %21 = vector.load %arg6[%c0_25, %c0_26] : memref<64x128xf32, #tpu.memory_space<vmem>>, vector<64x128xf32>
    tpu.vector_store %arg6[%c0_25, %c0_26], %20 {strides = array<i32>} : memref<64x128xf32, #tpu.memory_space<vmem>>, vector<64x128xf32>,
    %c0_27 = arith.constant 0 : index
    %c0_28 = arith.constant 0 : index
    %c0_29 = arith.constant 0 : index
    %c2 = arith.constant 2 : index
    %c0_30 = arith.constant 0 : index
    %22 = vector.load %arg2[%c0_27, %c0_28, %c0_29, %c2, %c0_30] : memref<1x10x1x10x128xbf16, #tpu.memory_space<vmem>>, vector<1x8x1x8x128xbf16>
    %23 = vector.shape_cast %22 : vector<1x8x1x8x128xbf16> to vector<8x8x128xbf16>
    %c0_31 = arith.constant 0 : index
    %c0_32 = arith.constant 0 : index
    %24 = vector.load %arg6[%c0_31, %c0_32] : memref<64x128xf32, #tpu.memory_space<vmem>>, vector<64x128xf32>
    %25 = vector.shape_cast %23 : vector<8x8x128xbf16> to vector<64x128xbf16>
    %c2_33 = arith.constant 2 : index
    %c0_34 = arith.constant 0 : index
    %c0_35 = arith.constant 0 : index
    %26 = vector.load %arg3[%c2_33, %c0_34, %c0_35] : memref<9x128x128xbf16, #tpu.memory_space<vmem>>, vector<1x128x128xbf16>
    %27 = vector.shape_cast %26 : vector<1x128x128xbf16> to vector<128x128xbf16>
    %cst_36 = arith.constant dense<0.000000e+00> : vector<64x128xf32>
    %28 = tpu.matmul %25, %27, %cst_36 {dimension_numbers = #tpu.dot_dimension_numbers<[1], [0], [0], [1], [0, 0, 1, 1], [], []>} : vector<64x128xbf16>, vector<128x128xbf16>, vector<64x128xf32> -> vector<64x128xf32>
    %29 = arith.addf %24, %28 : vector<64x128xf32>
    %c0_37 = arith.constant 0 : index
    %c0_38 = arith.constant 0 : index
    %30 = vector.load %arg6[%c0_37, %c0_38] : memref<64x128xf32, #tpu.memory_space<vmem>>, vector<64x128xf32>
    tpu.vector_store %arg6[%c0_37, %c0_38], %29 {strides = array<i32>} : memref<64x128xf32, #tpu.memory_space<vmem>>, vector<64x128xf32>,
    %c0_39 = arith.constant 0 : index
    %c1_40 = arith.constant 1 : index
    %c0_41 = arith.constant 0 : index
    %c0_42 = arith.constant 0 : index
    %c0_43 = arith.constant 0 : index
    %31 = vector.load %arg2[%c0_39, %c1_40, %c0_41, %c0_42, %c0_43] : memref<1x10x1x10x128xbf16, #tpu.memory_space<vmem>>, vector<1x8x1x8x128xbf16>
    %32 = vector.shape_cast %31 : vector<1x8x1x8x128xbf16> to vector<8x8x128xbf16>
    %c0_44 = arith.constant 0 : index
    %c0_45 = arith.constant 0 : index
    %33 = vector.load %arg6[%c0_44, %c0_45] : memref<64x128xf32, #tpu.memory_space<vmem>>, vector<64x128xf32>
    %34 = vector.shape_cast %32 : vector<8x8x128xbf16> to vector<64x128xbf16>
    %c3 = arith.constant 3 : index
    %c0_46 = arith.constant 0 : index
    %c0_47 = arith.constant 0 : index
    %35 = vector.load %arg3[%c3, %c0_46, %c0_47] : memref<9x128x128xbf16, #tpu.memory_space<vmem>>, vector<1x128x128xbf16>
    %36 = vector.shape_cast %35 : vector<1x128x128xbf16> to vector<128x128xbf16>
    %cst_48 = arith.constant dense<0.000000e+00> : vector<64x128xf32>
    %37 = tpu.matmul %34, %36, %cst_48 {dimension_numbers = #tpu.dot_dimension_numbers<[1], [0], [0], [1], [0, 0, 1, 1], [], []>} : vector<64x128xbf16>, vector<128x128xbf16>, vector<64x128xf32> -> vector<64x128xf32>
    %38 = arith.addf %33, %37 : vector<64x128xf32>
    %c0_49 = arith.constant 0 : index
    %c0_50 = arith.constant 0 : index
    %39 = vector.load %arg6[%c0_49, %c0_50] : memref<64x128xf32, #tpu.memory_space<vmem>>, vector<64x128xf32>
    tpu.vector_store %arg6[%c0_49, %c0_50], %38 {strides = array<i32>} : memref<64x128xf32, #tpu.memory_space<vmem>>, vector<64x128xf32>,
    %c0_51 = arith.constant 0 : index
    %c1_52 = arith.constant 1 : index
    %c0_53 = arith.constant 0 : index
    %c1_54 = arith.constant 1 : index
    %c0_55 = arith.constant 0 : index
    %40 = vector.load %arg2[%c0_51, %c1_52, %c0_53, %c1_54, %c0_55] : memref<1x10x1x10x128xbf16, #tpu.memory_space<vmem>>, vector<1x8x1x8x128xbf16>
    %41 = vector.shape_cast %40 : vector<1x8x1x8x128xbf16> to vector<8x8x128xbf16>
    %c0_56 = arith.constant 0 : index
    %c0_57 = arith.constant 0 : index
    %42 = vector.load %arg6[%c0_56, %c0_57] : memref<64x128xf32, #tpu.memory_space<vmem>>, vector<64x128xf32>
    %43 = vector.shape_cast %41 : vector<8x8x128xbf16> to vector<64x128xbf16>
    %c4 = arith.constant 4 : index
    %c0_58 = arith.constant 0 : index
    %c0_59 = arith.constant 0 : index
    %44 = vector.load %arg3[%c4, %c0_58, %c0_59] : memref<9x128x128xbf16, #tpu.memory_space<vmem>>, vector<1x128x128xbf16>
    %45 = vector.shape_cast %44 : vector<1x128x128xbf16> to vector<128x128xbf16>
    %cst_60 = arith.constant dense<0.000000e+00> : vector<64x128xf32>
    %46 = tpu.matmul %43, %45, %cst_60 {dimension_numbers = #tpu.dot_dimension_numbers<[1], [0], [0], [1], [0, 0, 1, 1], [], []>} : vector<64x128xbf16>, vector<128x128xbf16>, vector<64x128xf32> -> vector<64x128xf32>
    %47 = arith.addf %42, %46 : vector<64x128xf32>
    %c0_61 = arith.constant 0 : index
    %c0_62 = arith.constant 0 : index
    %48 = vector.load %arg6[%c0_61, %c0_62] : memref<64x128xf32, #tpu.memory_space<vmem>>, vector<64x128xf32>
    tpu.vector_store %arg6[%c0_61, %c0_62], %47 {strides = array<i32>} : memref<64x128xf32, #tpu.memory_space<vmem>>, vector<64x128xf32>,
    %c0_63 = arith.constant 0 : index
    %c1_64 = arith.constant 1 : index
    %c0_65 = arith.constant 0 : index
    %c2_66 = arith.constant 2 : index
    %c0_67 = arith.constant 0 : index
    %49 = vector.load %arg2[%c0_63, %c1_64, %c0_65, %c2_66, %c0_67] : memref<1x10x1x10x128xbf16, #tpu.memory_space<vmem>>, vector<1x8x1x8x128xbf16>
    %50 = vector.shape_cast %49 : vector<1x8x1x8x128xbf16> to vector<8x8x128xbf16>
    %c0_68 = arith.constant 0 : index
    %c0_69 = arith.constant 0 : index
    %51 = vector.load %arg6[%c0_68, %c0_69] : memref<64x128xf32, #tpu.memory_space<vmem>>, vector<64x128xf32>
    %52 = vector.shape_cast %50 : vector<8x8x128xbf16> to vector<64x128xbf16>
    %c5 = arith.constant 5 : index
    %c0_70 = arith.constant 0 : index
    %c0_71 = arith.constant 0 : index
    %53 = vector.load %arg3[%c5, %c0_70, %c0_71] : memref<9x128x128xbf16, #tpu.memory_space<vmem>>, vector<1x128x128xbf16>
    %54 = vector.shape_cast %53 : vector<1x128x128xbf16> to vector<128x128xbf16>
    %cst_72 = arith.constant dense<0.000000e+00> : vector<64x128xf32>
    %55 = tpu.matmul %52, %54, %cst_72 {dimension_numbers = #tpu.dot_dimension_numbers<[1], [0], [0], [1], [0, 0, 1, 1], [], []>} : vector<64x128xbf16>, vector<128x128xbf16>, vector<64x128xf32> -> vector<64x128xf32>
    %56 = arith.addf %51, %55 : vector<64x128xf32>
    %c0_73 = arith.constant 0 : index
    %c0_74 = arith.constant 0 : index
    %57 = vector.load %arg6[%c0_73, %c0_74] : memref<64x128xf32, #tpu.memory_space<vmem>>, vector<64x128xf32>
    tpu.vector_store %arg6[%c0_73, %c0_74], %56 {strides = array<i32>} : memref<64x128xf32, #tpu.memory_space<vmem>>, vector<64x128xf32>,
    %c0_75 = arith.constant 0 : index
    %c2_76 = arith.constant 2 : index
    %c0_77 = arith.constant 0 : index
    %c0_78 = arith.constant 0 : index
    %c0_79 = arith.constant 0 : index
    %58 = vector.load %arg2[%c0_75, %c2_76, %c0_77, %c0_78, %c0_79] : memref<1x10x1x10x128xbf16, #tpu.memory_space<vmem>>, vector<1x8x1x8x128xbf16>
    %59 = vector.shape_cast %58 : vector<1x8x1x8x128xbf16> to vector<8x8x128xbf16>
    %c0_80 = arith.constant 0 : index
    %c0_81 = arith.constant 0 : index
    %60 = vector.load %arg6[%c0_80, %c0_81] : memref<64x128xf32, #tpu.memory_space<vmem>>, vector<64x128xf32>
    %61 = vector.shape_cast %59 : vector<8x8x128xbf16> to vector<64x128xbf16>
    %c6 = arith.constant 6 : index
    %c0_82 = arith.constant 0 : index
    %c0_83 = arith.constant 0 : index
    %62 = vector.load %arg3[%c6, %c0_82, %c0_83] : memref<9x128x128xbf16, #tpu.memory_space<vmem>>, vector<1x128x128xbf16>
    %63 = vector.shape_cast %62 : vector<1x128x128xbf16> to vector<128x128xbf16>
    %cst_84 = arith.constant dense<0.000000e+00> : vector<64x128xf32>
    %64 = tpu.matmul %61, %63, %cst_84 {dimension_numbers = #tpu.dot_dimension_numbers<[1], [0], [0], [1], [0, 0, 1, 1], [], []>} : vector<64x128xbf16>, vector<128x128xbf16>, vector<64x128xf32> -> vector<64x128xf32>
    %65 = arith.addf %60, %64 : vector<64x128xf32>
    %c0_85 = arith.constant 0 : index
    %c0_86 = arith.constant 0 : index
    %66 = vector.load %arg6[%c0_85, %c0_86] : memref<64x128xf32, #tpu.memory_space<vmem>>, vector<64x128xf32>
    tpu.vector_store %arg6[%c0_85, %c0_86], %65 {strides = array<i32>} : memref<64x128xf32, #tpu.memory_space<vmem>>, vector<64x128xf32>,
    %c0_87 = arith.constant 0 : index
    %c2_88 = arith.constant 2 : index
    %c0_89 = arith.constant 0 : index
    %c1_90 = arith.constant 1 : index
    %c0_91 = arith.constant 0 : index
    %67 = vector.load %arg2[%c0_87, %c2_88, %c0_89, %c1_90, %c0_91] : memref<1x10x1x10x128xbf16, #tpu.memory_space<vmem>>, vector<1x8x1x8x128xbf16>
    %68 = vector.shape_cast %67 : vector<1x8x1x8x128xbf16> to vector<8x8x128xbf16>
    %c0_92 = arith.constant 0 : index
    %c0_93 = arith.constant 0 : index
    %69 = vector.load %arg6[%c0_92, %c0_93] : memref<64x128xf32, #tpu.memory_space<vmem>>, vector<64x128xf32>
    %70 = vector.shape_cast %68 : vector<8x8x128xbf16> to vector<64x128xbf16>
    %c7 = arith.constant 7 : index
    %c0_94 = arith.constant 0 : index
    %c0_95 = arith.constant 0 : index
    %71 = vector.load %arg3[%c7, %c0_94, %c0_95] : memref<9x128x128xbf16, #tpu.memory_space<vmem>>, vector<1x128x128xbf16>
    %72 = vector.shape_cast %71 : vector<1x128x128xbf16> to vector<128x128xbf16>
    %cst_96 = arith.constant dense<0.000000e+00> : vector<64x128xf32>
    %73 = tpu.matmul %70, %72, %cst_96 {dimension_numbers = #tpu.dot_dimension_numbers<[1], [0], [0], [1], [0, 0, 1, 1], [], []>} : vector<64x128xbf16>, vector<128x128xbf16>, vector<64x128xf32> -> vector<64x128xf32>
    %74 = arith.addf %69, %73 : vector<64x128xf32>
    %c0_97 = arith.constant 0 : index
    %c0_98 = arith.constant 0 : index
    %75 = vector.load %arg6[%c0_97, %c0_98] : memref<64x128xf32, #tpu.memory_space<vmem>>, vector<64x128xf32>
    tpu.vector_store %arg6[%c0_97, %c0_98], %74 {strides = array<i32>} : memref<64x128xf32, #tpu.memory_space<vmem>>, vector<64x128xf32>,
    %c0_99 = arith.constant 0 : index
    %c2_100 = arith.constant 2 : index
    %c0_101 = arith.constant 0 : index
    %c2_102 = arith.constant 2 : index
    %c0_103 = arith.constant 0 : index
    %76 = vector.load %arg2[%c0_99, %c2_100, %c0_101, %c2_102, %c0_103] : memref<1x10x1x10x128xbf16, #tpu.memory_space<vmem>>, vector<1x8x1x8x128xbf16>
    %77 = vector.shape_cast %76 : vector<1x8x1x8x128xbf16> to vector<8x8x128xbf16>
    %c0_104 = arith.constant 0 : index
    %c0_105 = arith.constant 0 : index
    %78 = vector.load %arg6[%c0_104, %c0_105] : memref<64x128xf32, #tpu.memory_space<vmem>>, vector<64x128xf32>
    %79 = vector.shape_cast %77 : vector<8x8x128xbf16> to vector<64x128xbf16>
    %c8 = arith.constant 8 : index
    %c0_106 = arith.constant 0 : index
    %c0_107 = arith.constant 0 : index
    %80 = vector.load %arg3[%c8, %c0_106, %c0_107] : memref<9x128x128xbf16, #tpu.memory_space<vmem>>, vector<1x128x128xbf16>
    %81 = vector.shape_cast %80 : vector<1x128x128xbf16> to vector<128x128xbf16>
    %cst_108 = arith.constant dense<0.000000e+00> : vector<64x128xf32>
    %82 = tpu.matmul %79, %81, %cst_108 {dimension_numbers = #tpu.dot_dimension_numbers<[1], [0], [0], [1], [0, 0, 1, 1], [], []>} : vector<64x128xbf16>, vector<128x128xbf16>, vector<64x128xf32> -> vector<64x128xf32>
    %83 = arith.addf %78, %82 : vector<64x128xf32>
    %c0_109 = arith.constant 0 : index
    %c0_110 = arith.constant 0 : index
    %84 = vector.load %arg6[%c0_109, %c0_110] : memref<64x128xf32, #tpu.memory_space<vmem>>, vector<64x128xf32>
    tpu.vector_store %arg6[%c0_109, %c0_110], %83 {strides = array<i32>} : memref<64x128xf32, #tpu.memory_space<vmem>>, vector<64x128xf32>,
    %c0_111 = arith.constant 0 : index
    %c0_112 = arith.constant 0 : index
    %85 = vector.load %arg6[%c0_111, %c0_112] : memref<64x128xf32, #tpu.memory_space<vmem>>, vector<64x128xf32>
    %cst_113 = arith.constant 0.000000e+00 : f32
    %86 = vector.broadcast %cst_113 : f32 to vector<64x128xf32>
    %87 = arith.maximumf %85, %86 : vector<64x128xf32>
    %88 = arith.truncf %87 : vector<64x128xf32> to vector<64x128xbf16>
    %89 = vector.shape_cast %88 : vector<64x128xbf16> to vector<8x8x128xbf16>
    %c0_114 = arith.constant 0 : index
    %c0_115 = arith.constant 0 : index
    %c0_116 = arith.constant 0 : index
    %c0_117 = arith.constant 0 : index
    %90 = vector.load %arg5[%c0_114, %c0_115, %c0_116, %c0_117] : memref<1x8x8x128xbf16, #tpu.memory_space<vmem>>, vector<1x8x8x128xbf16>
    %91 = vector.shape_cast %90 : vector<1x8x8x128xbf16> to vector<8x8x128xbf16>
    %92 = vector.shape_cast %89 : vector<8x8x128xbf16> to vector<1x8x8x128xbf16>
    tpu.vector_store %arg5[%c0_114, %c0_115, %c0_116, %c0_117], %92 {strides = array<i32>} : memref<1x8x8x128xbf16, #tpu.memory_space<vmem>>, vector<1x8x8x128xbf16>,
    return
  }
  func.func @transform_0(%arg0: i32, %arg1: i32) -> (i32, i32, i32, i32, i32) {
    %c0_i32 = arith.constant 0 : i32
    %c0_i32_0 = arith.constant 0 : i32
    %c0_i32_1 = arith.constant 0 : i32
    %c0_i32_2 = arith.constant 0 : i32
    %c0_i32_3 = arith.constant 0 : i32
    return %arg0, %c0_i32, %c0_i32_0, %c0_i32_1, %c0_i32_2 : i32, i32, i32, i32, i32
  }
  func.func @transform_1(%arg0: i32, %arg1: i32) -> (i32, i32, i32) {
    %c0_i32 = arith.constant 0 : i32
    %c0_i32_0 = arith.constant 0 : i32
    %c0_i32_1 = arith.constant 0 : i32
    return %c0_i32, %c0_i32_0, %arg1 : i32, i32, i32
  }
  func.func @transform_2(%arg0: i32, %arg1: i32) -> (i32, i32) {
    %c0_i32 = arith.constant 0 : i32
    %c0_i32_0 = arith.constant 0 : i32
    return %c0_i32, %arg1 : i32, i32
  }
  func.func @transform_3(%arg0: i32, %arg1: i32) -> (i32, i32, i32, i32) {
    %c0_i32 = arith.constant 0 : i32
    %c0_i32_0 = arith.constant 0 : i32
    %c0_i32_1 = arith.constant 0 : i32
    return %arg0, %c0_i32, %c0_i32_0, %arg1 : i32, i32, i32, i32
  }
}

module attributes {stable_mosaic.version = 11 : i64} {
  func.func @_mm_bias_kernel(%arg0: i32, %arg1: i32, %arg2: i32, %arg3: memref<64x256xbf16, #tpu.memory_space<vmem>>, %arg4: memref<256x128xbf16, #tpu.memory_space<vmem>>, %arg5: memref<1x128xf32, #tpu.memory_space<vmem>>, %arg6: memref<64x128xbf16, #tpu.memory_space<vmem>>, %arg7: memref<64x128xf32, #tpu.memory_space<vmem>>) attributes {dimension_semantics = [#tpu.dimension_semantics<parallel>, #tpu.dimension_semantics<parallel>, #tpu.dimension_semantics<arbitrary>], iteration_bounds = array<i64: 2, 1, 1>, scalar_prefetch = 0 : i64, scratch_operands = 1 : i64, tpu.core_type = #tpu.core_type<tc>, window_params = [{transform_indices = @transform_0, window_bounds = array<i64: 64, 256>}, {transform_indices = @transform_1, window_bounds = array<i64: 256, 128>}, {transform_indices = @transform_2, window_bounds = array<i64: 1, 128>}, {transform_indices = @transform_3, window_bounds = array<i64: 64, 128>}]} {
    %c0_i32 = arith.constant 0 : i32
    %0 = arith.cmpi eq, %arg2, %c0_i32 : i32
    %1 = arith.extui %0 : i1 to i32
    %c0_i32_0 = arith.constant 0 : i32
    %2 = arith.cmpi ne, %1, %c0_i32_0 : i32
    scf.if %2 {
      %c0_10 = arith.constant 0 : index
      %c0_11 = arith.constant 0 : index
      %12 = vector.load %arg5[%c0_10, %c0_11] : memref<1x128xf32, #tpu.memory_space<vmem>>, vector<1x128xf32>
      %13 = vector.shape_cast %12 : vector<1x128xf32> to vector<1x128xf32>
      %14 = vector.broadcast %13 : vector<1x128xf32> to vector<64x128xf32>
      %c0_12 = arith.constant 0 : index
      %c0_13 = arith.constant 0 : index
      %15 = vector.load %arg7[%c0_12, %c0_13] : memref<64x128xf32, #tpu.memory_space<vmem>>, vector<64x128xf32>
      tpu.vector_store %arg7[%c0_12, %c0_13], %14 {strides = array<i32>} : memref<64x128xf32, #tpu.memory_space<vmem>>, vector<64x128xf32>,
    } else {
    }
    %c0 = arith.constant 0 : index
    %c0_1 = arith.constant 0 : index
    %3 = vector.load %arg7[%c0, %c0_1] : memref<64x128xf32, #tpu.memory_space<vmem>>, vector<64x128xf32>
    %c0_2 = arith.constant 0 : index
    %c0_3 = arith.constant 0 : index
    %4 = vector.load %arg3[%c0_2, %c0_3] : memref<64x256xbf16, #tpu.memory_space<vmem>>, vector<64x256xbf16>
    %c0_4 = arith.constant 0 : index
    %c0_5 = arith.constant 0 : index
    %5 = vector.load %arg4[%c0_4, %c0_5] : memref<256x128xbf16, #tpu.memory_space<vmem>>, vector<256x128xbf16>
    %cst = arith.constant dense<0.000000e+00> : vector<64x128xf32>
    %6 = tpu.matmul %4, %5, %cst {dimension_numbers = #tpu.dot_dimension_numbers<[1], [0], [0], [1], [0, 0, 1, 1], [], []>} : vector<64x256xbf16>, vector<256x128xbf16>, vector<64x128xf32> -> vector<64x128xf32>
    %7 = arith.addf %3, %6 : vector<64x128xf32>
    %c0_6 = arith.constant 0 : index
    %c0_7 = arith.constant 0 : index
    %8 = vector.load %arg7[%c0_6, %c0_7] : memref<64x128xf32, #tpu.memory_space<vmem>>, vector<64x128xf32>
    tpu.vector_store %arg7[%c0_6, %c0_7], %7 {strides = array<i32>} : memref<64x128xf32, #tpu.memory_space<vmem>>, vector<64x128xf32>,
    %c0_i32_8 = arith.constant 0 : i32
    %9 = arith.cmpi eq, %arg2, %c0_i32_8 : i32
    %10 = arith.extui %9 : i1 to i32
    %c0_i32_9 = arith.constant 0 : i32
    %11 = arith.cmpi ne, %10, %c0_i32_9 : i32
    scf.if %11 {
      %c0_10 = arith.constant 0 : index
      %c0_11 = arith.constant 0 : index
      %12 = vector.load %arg7[%c0_10, %c0_11] : memref<64x128xf32, #tpu.memory_space<vmem>>, vector<64x128xf32>
      %cst_12 = arith.constant 0.000000e+00 : f32
      %13 = vector.broadcast %cst_12 : f32 to vector<64x128xf32>
      %14 = arith.maximumf %12, %13 : vector<64x128xf32>
      %15 = arith.truncf %14 : vector<64x128xf32> to vector<64x128xbf16>
      %c0_13 = arith.constant 0 : index
      %c0_14 = arith.constant 0 : index
      %16 = vector.load %arg6[%c0_13, %c0_14] : memref<64x128xbf16, #tpu.memory_space<vmem>>, vector<64x128xbf16>
      tpu.vector_store %arg6[%c0_13, %c0_14], %15 {strides = array<i32>} : memref<64x128xbf16, #tpu.memory_space<vmem>>, vector<64x128xbf16>,
    } else {
    }
    return
  }
  func.func @transform_0(%arg0: i32, %arg1: i32, %arg2: i32) -> (i32, i32) {
    %c0_i32 = arith.constant 0 : i32
    return %arg0, %arg2 : i32, i32
  }
  func.func @transform_1(%arg0: i32, %arg1: i32, %arg2: i32) -> (i32, i32) {
    %c0_i32 = arith.constant 0 : i32
    return %arg2, %arg1 : i32, i32
  }
  func.func @transform_2(%arg0: i32, %arg1: i32, %arg2: i32) -> (i32, i32) {
    %c0_i32 = arith.constant 0 : i32
    %c0_i32_0 = arith.constant 0 : i32
    return %c0_i32, %arg1 : i32, i32
  }
  func.func @transform_3(%arg0: i32, %arg1: i32, %arg2: i32) -> (i32, i32) {
    %c0_i32 = arith.constant 0 : i32
    return %arg0, %arg1 : i32, i32
  }
}

</mosaic_0001>

<llo_original>
// kernel: bottleneck_forward.3
$region0: #{bottleneck_forward.3}
  #allocation0 [shape = 'u32[]', space=smem, size = 0x4, offset = 0x4, fixed_abs, tag = 'smem constant byte address 0x4 - core index']
  #allocation1 [shape = 'u32[144,128]{1,0:T(1,128)}', space=vmem, size = 0x12000, scoped, tag = 'internal scratch']
  #allocation2 [shape = 'f32[64,128]{1,0:T(8,128)}', space=vmem, size = 0x8000, scoped, tag = 'scratch operand']
  %s0 = inlined_call_operand.vmem [shape: bf16[128,128], index: 0, kind: input, shape index: {}]
  %s1 = inlined_call_operand.hbm [shape: bf16[128,128], index: 1, kind: input, shape index: {}]
  %s2 = inlined_call_operand.hbm [shape: f32[1,128], index: 2, kind: input, shape index: {}]
  %s3 = inlined_call_operand.vmem [shape: bf16[128,128], index: 3, kind: output, shape index: {}]
  %s4 = sld [smem:[#allocation0]]
  $region61: #{bottleneck_forward.3} parent=0
    _
  %s6 = ssub.s32 1, %s4
  %s7 = scalar_select 0, %s6, %s4
  $region1: #{bottleneck_forward.3} parent=0
    #allocation3 [shape = 'u8[32768]{0}', space=vmem, size = 0x8000, scoped, tag = 'input window, operand 1, single buffered']
    #allocation4 [shape = 's32[2]{0}', space=sflag, size = 0x8, scoped, tag = 'scoped memory for bottleneck_forward.3']
    #allocation5 [shape = 'u8[512]{0}', space=vmem, size = 0x400, scoped, tag = 'input window, operand 2, single buffered']
    #allocation6 [shape = 's32[1]{0}', space=sflag, size = 0x4, scoped, tag = 'scoped memory for bottleneck_forward.3']
    %8 = vsyncpa [#allocation4], 0
    %9 = vsyncpa [#allocation6], 0
    loop: start=0, step=1, limit=4
    $region2: #{bottleneck_forward.3} parent=1 // loop_pre_header
      _
    $region3: #{bottleneck_forward.3} parent=1 // loop_header
      %s11 = sphi 0, %s15
      %p12 = scmp.ge.s32.totalorder %s11, 4
      %s18 = sphi 0, %s37
      %s19 = sphi 0, %s33
      %s20 = sphi 0, %s29
      %s21 = sphi 0, %s18
      %s22 = sphi 0, %s19
      %s23 = sphi 0, %s20
      %s24 = sphi 0, %s21
      %s25 = sphi 0, %s22
      %s26 = sphi 0, %s23
      %s42 = sphi 0, %s44
      %s45 = sphi 0, %s42
      %s46 = sphi 0, %s45
      %s62 = sphi 0, %s46
      %s70 = sphi 0, %s72
      %s73 = sphi 0, %s70
      %s74 = sphi 0, %s73
      %s90 = sphi 0, %s74
      %s96 = sphi 0, %s98
      %s99 = sphi 0, %s96
      %s100 = sphi 0, %s99
      %s116 = sphi 0, %s100
      %s124 = sphi 0, %s126
      %s127 = sphi 0, %s124
      %s128 = sphi 0, %s127
      %s144 = sphi 0, %s128
    $region4: #{bottleneck_forward.3} parent=1 // loop_header_branch
      %14 = sbr.rel (%p12) target = $region8
    $region5: #{bottleneck_forward.3} parent=1 // loop_body
      %s16 = ssub.s32 %s11, 1
      %s17 = ssub.s32 %s11, 2
      %s27 = sadd.s32 1, %s20
      %p28 = scmp.ge.s32.totalorder %s27, 1
      %s29 = scalar_select %p28, 0, %s27
      %s30 = sadd.s32 1, %s19
      %s31 = scalar_select %p28, %s30, %s19
      %p32 = scmp.ge.s32.totalorder %s31, 1
      %s33 = scalar_select %p32, 0, %s31
      %s34 = sadd.s32 1, %s18
      %s35 = scalar_select %p32, %s34, %s18
      %p36 = scmp.ge.s32.totalorder %s35, 2
      %s37 = scalar_select %p36, 0, %s35
      %s38 = ssub.s32 %s18, %s37
      %s39 = ssub.s32 %s20, %s29
      %s40 = sor.u32 %s38, %s39
      %p41 = scmp.eq.s32.totalorder %s40, 0
      %s43 = sadd.s32 %s42, 1
      %s44 = scalar_select %p41, %s42, %s43
      %p47 = pneg %p41
      %p48 = scmp.eq.s32.totalorder %s11, 1
      %p49 = por %p47, %p48
      %p50 = scmp.ne.s32.totalorder %s42, %s45
      %p51 = scmp.eq.s32.totalorder %s11, 0
      %p52 = por %p50, %p51
      %p53 = scmp.ne.s32.totalorder %s42, %s45
      %p54 = scmp.eq.s32.totalorder %s16, 1
      %p55 = por %p53, %p54
      %p56 = scmp.ne.s32.totalorder %s45, %s46
      %p57 = scmp.eq.s32.totalorder %s16, 0
      %p58 = por %p56, %p57
      %p59 = scmp.ne.s32.totalorder %s45, %s46
      %p60 = scmp.eq.s32.totalorder %s17, 1
      %p61 = por %p59, %p60
      %p63 = scmp.ne.s32.totalorder %s46, %s62
      %p64 = scmp.eq.s32.totalorder %s17, 0
      %p65 = por %p63, %p64
      %s66 = ssub.s32 %s20, %s29
      %s67 = ssub.s32 %s19, %s33
      %s68 = sor.u32 %s66, %s67
      %p69 = scmp.eq.s32.totalorder %s68, 0
      %s71 = sadd.s32 %s70, 1
      %s72 = scalar_select %p69, %s70, %s71
      %p75 = pneg %p69
      %p76 = scmp.eq.s32.totalorder %s11, 1
      %p77 = por %p75, %p76
      %p78 = scmp.ne.s32.totalorder %s70, %s73
      %p79 = scmp.eq.s32.totalorder %s11, 0
      %p80 = por %p78, %p79
      %p81 = scmp.ne.s32.totalorder %s70, %s73
      %p82 = scmp.eq.s32.totalorder %s16, 1
      %p83 = por %p81, %p82
      %p84 = scmp.ne.s32.totalorder %s73, %s74
      %p85 = scmp.eq.s32.totalorder %s16, 0
      %p86 = por %p84, %p85
      %p87 = scmp.ne.s32.totalorder %s73, %s74
      %p88 = scmp.eq.s32.totalorder %s17, 1
      %p89 = por %p87, %p88
      %p91 = scmp.ne.s32.totalorder %s74, %s90
      %p92 = scmp.eq.s32.totalorder %s17, 0
      %p93 = por %p91, %p92
      %s94 = ssub.s32 %s19, %s33
      %p95 = scmp.eq.s32.totalorder %s94, 0
      %s97 = sadd.s32 %s96, 1
      %s98 = scalar_select %p95, %s96, %s97
      %p101 = pneg %p95
      %p102 = scmp.eq.s32.totalorder %s11, 1
      %p103 = por %p101, %p102
      %p104 = scmp.ne.s32.totalorder %s96, %s99
      %p105 = scmp.eq.s32.totalorder %s11, 0
      %p106 = por %p104, %p105
      %p107 = scmp.ne.s32.totalorder %s96, %s99
      %p108 = scmp.eq.s32.totalorder %s16, 1
      %p109 = por %p107, %p108
      %p110 = scmp.ne.s32.totalorder %s99, %s100
      %p111 = scmp.eq.s32.totalorder %s16, 0
      %p112 = por %p110, %p111
      %p113 = scmp.ne.s32.totalorder %s99, %s100
      %p114 = scmp.eq.s32.totalorder %s17, 1
      %p115 = por %p113, %p114
      %p117 = scmp.ne.s32.totalorder %s100, %s116
      %p118 = scmp.eq.s32.totalorder %s17, 0
      %p119 = por %p117, %p118
      %s120 = ssub.s32 %s18, %s37
      %s121 = ssub.s32 %s19, %s33
      %s122 = sor.u32 %s120, %s121
      %p123 = scmp.eq.s32.totalorder %s122, 0
      %s125 = sadd.s32 %s124, 1
      %s126 = scalar_select %p123, %s124, %s125
      %p129 = pneg %p123
      %p130 = scmp.eq.s32.totalorder %s11, 1
      %p131 = por %p129, %p130
      %p132 = scmp.ne.s32.totalorder %s124, %s127
      %p133 = scmp.eq.s32.totalorder %s11, 0
      %p134 = por %p132, %p133
      %p135 = scmp.ne.s32.totalorder %s124, %s127
      %p136 = scmp.eq.s32.totalorder %s16, 1
      %p137 = por %p135, %p136
      %p138 = scmp.ne.s32.totalorder %s127, %s128
      %p139 = scmp.eq.s32.totalorder %s16, 0
      %p140 = por %p138, %p139
      %p141 = scmp.ne.s32.totalorder %s127, %s128
      %p142 = scmp.eq.s32.totalorder %s17, 1
      %p143 = por %p141, %p142
      %p145 = scmp.ne.s32.totalorder %s128, %s144
      %p146 = scmp.eq.s32.totalorder %s17, 0
      %p147 = por %p145, %p146
      %p148 = scmp.le.s32.totalorder 1, %s11
      %p149 = scmp.lt.s32.totalorder %s11, 3
      %p150 = pnand %p148, %p149
      %p151 = pneg %p150
      // Predicated region
      $region9: #{bottleneck_forward.3} parent=5 // pred_check
        _
      $region10: #{bottleneck_forward.3} parent=5 // pred_check_branch
        %153 = sbr.rel (%p150) target = $region12
      $region11: #{bottleneck_forward.3} parent=5 // pred_region
        %s154 = ssub.s32 %s11, 1
        // Predicated region
        $region13: #{bottleneck_forward.3} parent=11 // pred_check
          %p155 = pneg %p86
        $region14: #{bottleneck_forward.3} parent=11 // pred_check_branch
          %157 = sbr.rel (%p155) target = $region16
        $region15: #{bottleneck_forward.3} parent=11 // pred_region
          %s158 = smul.u32 16, %s23
          %s160 = ssub.s32 1024, 1024
          %161 = vsyncadd [#allocation4], %s160
          %s162 = sadd.s32 %s22, %s158
          %s163 = smul.addr %s162, 64
          %s164 = scalar_lea.hbm %s1, %s163
          %s165 = sshll.u32 [#allocation3], 4
          %s166 = int_to_ptr.vmem [resolvable:$true] %s165
          %171 = dma.hbm_to_vmem [thread:$0]  %s164, 1024, %s166, [#allocation4], 64, 64, 4
        $region16: #{bottleneck_forward.3} parent=11 // pred_fallthru
          _
        // Predicated region
        $region17: #{bottleneck_forward.3} parent=11 // pred_check
          %p172 = pneg %p112
        $region18: #{bottleneck_forward.3} parent=11 // pred_check_branch
          %174 = sbr.rel (%p172) target = $region20
        $region19: #{bottleneck_forward.3} parent=11 // pred_region
          %s176 = ssub.s32 16, 16
          %177 = vsyncadd [#allocation6], %s176
          %s178 = smul.addr %s22, 16
          %s179 = scalar_lea.hbm %s2, %s178
          %s181 = sshll.u32 [#allocation5], 4
          %s182 = int_to_ptr.vmem [resolvable:$true] %s181
          %184 = dma.hbm_to_vmem [thread:$0]  %s179, 16, %s182, [#allocation6]
        $region20: #{bottleneck_forward.3} parent=11 // pred_fallthru
          _
      $region12: #{bottleneck_forward.3} parent=5 // pred_fallthru
        _
      %p185 = scmp.lt.s32.totalorder %s11, 2
      // Predicated region
      $region21: #{bottleneck_forward.3} parent=5 // pred_check
        %p186 = pneg %p185
      $region22: #{bottleneck_forward.3} parent=5 // pred_check_branch
        %188 = sbr.rel (%p186) target = $region24
      $region23: #{bottleneck_forward.3} parent=5 // pred_region
        // Predicated region
        $region25: #{bottleneck_forward.3} parent=23 // pred_check
          %p189 = pneg %p52
        $region26: #{bottleneck_forward.3} parent=23 // pred_check_branch
          %191 = sbr.rel (%p189) target = $region28
        $region27: #{bottleneck_forward.3} parent=23 // pred_region
          %s192 = smul.u32 8, %s18
          %p193 = scmp.lt.s32.totalorder %s192, 15
          %s194 = scalar_select %p193, %s192, 15
          %p195 = scmp.lt.s32.totalorder %s20, 0
          %s196 = scalar_select %p195, %s20, 0
          %s197 = sadd.s32 %s196, %s194
          %s198 = smul.addr %s197, 4
          %s199 = scalar_lea.vmem %s0, %s198
          %s200 = smul.u32 8, %s18
        $region28: #{bottleneck_forward.3} parent=23 // pred_fallthru
          _
      $region24: #{bottleneck_forward.3} parent=5 // pred_fallthru
        _
      %p201 = scmp.le.s32.totalorder 1, %s11
      %p202 = scmp.lt.s32.totalorder %s11, 3
      %p203 = pnand %p201, %p202
      %p204 = pneg %p203
      // Predicated region
      $region29: #{bottleneck_forward.3} parent=5 // pred_check
        _
      $region30: #{bottleneck_forward.3} parent=5 // pred_check_branch
        %206 = sbr.rel (%p203) target = $region32
      $region31: #{bottleneck_forward.3} parent=5 // pred_region
        %s207 = ssub.s32 %s11, 1
        // Predicated region
        $region33: #{bottleneck_forward.3} parent=31 // pred_check
          %p208 = pneg %p86
        $region34: #{bottleneck_forward.3} parent=31 // pred_check_branch
          %210 = sbr.rel (%p208) target = $region36
        $region35: #{bottleneck_forward.3} parent=31 // pred_region
          %211 = dma.done [#allocation4], 1024
        $region36: #{bottleneck_forward.3} parent=31 // pred_fallthru
          _
        // Predicated region
        $region37: #{bottleneck_forward.3} parent=31 // pred_check
          %p212 = pneg %p112
        $region38: #{bottleneck_forward.3} parent=31 // pred_check_branch
          %214 = sbr.rel (%p212) target = $region40
        $region39: #{bottleneck_forward.3} parent=31 // pred_region
          %215 = dma.done [#allocation6], 16
        $region40: #{bottleneck_forward.3} parent=31 // pred_fallthru
          _
        %s216 = smul.u32 8, %s21
        %p217 = scmp.lt.s32.totalorder %s216, 15
        %s218 = scalar_select %p217, %s216, 15
        %p219 = scmp.lt.s32.totalorder %s23, 0
        %s220 = scalar_select %p219, %s23, 0
        %s221 = sadd.s32 %s220, %s218
        %s222 = smul.addr %s221, 4
        %s223 = scalar_lea.vmem %s0, %s222
        %p224 = pneg %p58
        %p225 = pneg %p55
        %p226 = pneg %p86
        %p227 = pneg %p83
        %p228 = pneg %p112
        %p229 = pneg %p109
        %p230 = pneg %p140
        %p231 = pneg %p137
        %s232 = smul.u32 8, %s21
        %p233 = scmp.lt.s32.totalorder %s232, 15
        %s234 = scalar_select %p233, %s232, 15
        %p235 = scmp.lt.s32.totalorder %s22, 0
        %s236 = scalar_select %p235, %s22, 0
        %s237 = sadd.s32 %s236, %s234
        %s238 = smul.addr %s237, 4
        %s239 = scalar_lea.vmem %s3, %s238
        %s240 = smul.u32 8, %s21
        %p241 = scmp.lt.s32.totalorder %s240, 15
        %s242 = scalar_select %p241, %s240, 15
        %p243 = scmp.lt.s32.totalorder %s23, 0
        %s244 = scalar_select %p243, %s23, 0
        %s245 = sadd.s32 %s244, %s242
        %s246 = smul.addr %s245, 4
        %s247 = scalar_lea.vmem %s0, %s246
        %s248 = smul.u32 8, %s21
        %s249 = smul.u32 16, %s23
        %s250 = smul.u32 8, %s21
        %p251 = scmp.lt.s32.totalorder %s250, 15
        %s252 = scalar_select %p251, %s250, 15
        %p253 = scmp.lt.s32.totalorder %s22, 0
        %s254 = scalar_select %p253, %s22, 0
        %s255 = sadd.s32 %s254, %s252
        %s256 = smul.addr %s255, 4
        %s257 = scalar_lea.vmem %s3, %s256
        %s258 = smul.u32 8, %s21
        %p260 = scmp.eq.s32.totalorder %s23, 0
        // Predicated region
        $region41: #{bottleneck_forward.3} parent=31 // pred_check
          %p261 = pneg %p260
        $region42: #{bottleneck_forward.3} parent=31 // pred_check_branch
          %263 = sbr.rel (%p261) target = $region44
        $region43: #{bottleneck_forward.3} parent=31 // pred_region
          %v264 = vld [vmem:[#allocation5] sm:$0x1]
          %v266 = vlaneseq
          %v267 = vshrl.u32 %v266, 7
          %v268 = vsub.s32 0, %v267
          %v269 = vrot.slane %v264, %v268
          %271 = vst [vmem:[#allocation2] sm:$0xff] %v269
          %272 = vst [vmem:[#allocation2 + $0x8] sm:$0xff] %v269
          %273 = vst [vmem:[#allocation2 + $0x10] sm:$0xff] %v269
          %274 = vst [vmem:[#allocation2 + $0x18] sm:$0xff] %v269
          %275 = vst [vmem:[#allocation2 + $0x20] sm:$0xff] %v269
          %276 = vst [vmem:[#allocation2 + $0x28] sm:$0xff] %v269
          %277 = vst [vmem:[#allocation2 + $0x30] sm:$0xff] %v269
          %278 = vst [vmem:[#allocation2 + $0x38] sm:$0xff] %v269
        $region44: #{bottleneck_forward.3} parent=31 // pred_fallthru
          _
        %v279 = vld [vmem:[#allocation2] sm:$0xff]
        %v280 = vld [vmem:[#allocation2 + $0x8] sm:$0xff]
        %v281 = vld [vmem:[#allocation2 + $0x10] sm:$0xff]
        %v282 = vld [vmem:[#allocation2 + $0x18] sm:$0xff]
        %v283 = vld [vmem:[#allocation2 + $0x20] sm:$0xff]
        %v284 = vld [vmem:[#allocation2 + $0x28] sm:$0xff]
        %v285 = vld [vmem:[#allocation2 + $0x30] sm:$0xff]
        %v286 = vld [vmem:[#allocation2 + $0x38] sm:$0xff]
        %v287 = vld [vmem:[%s247] sm:$0xf]
        %v288 = vld [vmem:[%s247 + $0x4] sm:$0xf]
        %v289 = vld [vmem:[%s247 + $0x8] sm:$0xf]
        %v290 = vld [vmem:[%s247 + $0xc] sm:$0xf]
        %v291 = vld [vmem:[%s247 + $0x10] sm:$0xf]
        %v292 = vld [vmem:[%s247 + $0x14] sm:$0xf]
        %v293 = vld [vmem:[%s247 + $0x18] sm:$0xf]
        %v294 = vld [vmem:[%s247 + $0x1c] sm:$0xf]
        %v295 = vld [vmem:[#allocation3] sm:$0xf]
        %v296 = vld [vmem:[#allocation3 + $0x4] sm:$0xf]
        %v297 = vld [vmem:[#allocation3 + $0x8] sm:$0xf]
        %v298 = vld [vmem:[#allocation3 + $0xc] sm:$0xf]
        %v299 = vld [vmem:[#allocation3 + $0x10] sm:$0xf]
        %v300 = vld [vmem:[#allocation3 + $0x14] sm:$0xf]
        %v301 = vld [vmem:[#allocation3 + $0x18] sm:$0xf]
        %v302 = vld [vmem:[#allocation3 + $0x1c] sm:$0xf]
        %v303 = vld [vmem:[#allocation3 + $0x20] sm:$0xf]
        %v304 = vld [vmem:[#allocation3 + $0x24] sm:$0xf]
        %v305 = vld [vmem:[#allocation3 + $0x28] sm:$0xf]
        %v306 = vld [vmem:[#allocation3 + $0x2c] sm:$0xf]
        %v307 = vld [vmem:[#allocation3 + $0x30] sm:$0xf]
        %v308 = vld [vmem:[#allocation3 + $0x34] sm:$0xf]
        %v309 = vld [vmem:[#allocation3 + $0x38] sm:$0xf]
        %v310 = vld [vmem:[#allocation3 + $0x3c] sm:$0xf]
        %v319 = vunpack.c.l.b16 %v287
        %v320 = vunpack.c.l.b16 %v288
        %v321 = vunpack.c.l.b16 %v289
        %v322 = vunpack.c.l.b16 %v290
        %v323 = vunpack.c.l.b16 %v291
        %v324 = vunpack.c.l.b16 %v292
        %v325 = vunpack.c.l.b16 %v293
        %v326 = vunpack.c.l.b16 %v294
        %v327 = vpack.c.b16 %v320, %v319
        %v328 = vpack.c.b16 %v322, %v321
        %v329 = vpack.c.b16 %v324, %v323
        %v330 = vpack.c.b16 %v326, %v325
        %v351 = vunpack.c.l.b16 %v295
        %v352 = vunpack.c.l.b16 %v296
        %v353 = vunpack.c.l.b16 %v297
        %v354 = vunpack.c.l.b16 %v298
        %v355 = vunpack.c.l.b16 %v299
        %v356 = vunpack.c.l.b16 %v300
        %v357 = vunpack.c.l.b16 %v301
        %v358 = vunpack.c.l.b16 %v302
        %v359 = vunpack.c.l.b16 %v303
        %v360 = vunpack.c.l.b16 %v304
        %v361 = vunpack.c.l.b16 %v305
        %v362 = vunpack.c.l.b16 %v306
        %v363 = vunpack.c.l.b16 %v307
        %v364 = vunpack.c.l.b16 %v308
        %v365 = vunpack.c.l.b16 %v309
        %v366 = vunpack.c.l.b16 %v310
        %v367 = vpack.c.b16 %v352, %v351
        %v368 = vpack.c.b16 %v354, %v353
        %v369 = vpack.c.b16 %v356, %v355
        %v370 = vpack.c.b16 %v358, %v357
        %v371 = vpack.c.b16 %v360, %v359
        %v372 = vpack.c.b16 %v362, %v361
        %v373 = vpack.c.b16 %v364, %v363
        %v374 = vpack.c.b16 %v366, %v365
        %383 = vmatprep.subr.bf16.mxu0 0
        %384 = vmatpush1.bf16.msra.mxu0 %v367
        %385 = vmatprep.subr.bf16.mxu0 0
        %386 = vmatpush1.bf16.msra.mxu0 %v368
        %387 = vmatprep.subr.bf16.mxu0 0
        %388 = vmatpush1.bf16.msra.mxu0 %v369
        %389 = vmatprep.subr.bf16.mxu0 0
        %390 = vmatpush1.bf16.msra.mxu0 %v370
        %391 = vmatprep.subr.bf16.mxu0 0
        %392 = vmatpush1.bf16.msra.mxu0 %v371
        %393 = vmatprep.subr.bf16.mxu0 0
        %394 = vmatpush1.bf16.msra.mxu0 %v372
        %395 = vmatprep.subr.bf16.mxu0 0
        %396 = vmatpush1.bf16.msra.mxu0 %v373
        %397 = vmatprep.subr.bf16.mxu0 0
        %398 = vmatpush1.bf16.msra.mxu0 %v374
        %399 = vmatprep.subr.bf16.mxu0 0
        %400 = vmatpush1.bf16.msra.mxu0 0
        %401 = vmatprep.subr.bf16.mxu0 0
        %402 = vmatpush1.bf16.msra.mxu0 0
        %403 = vmatprep.subr.bf16.mxu0 0
        %404 = vmatpush1.bf16.msra.mxu0 0
        %405 = vmatprep.subr.bf16.mxu0 0
        %406 = vmatpush1.bf16.msra.mxu0 0
        %407 = vmatprep.subr.bf16.mxu0 0
        %408 = vmatpush1.bf16.msra.mxu0 0
        %409 = vmatprep.subr.bf16.mxu0 0
        %410 = vmatpush1.bf16.msra.mxu0 0
        %411 = vmatprep.subr.bf16.mxu0 0
        %412 = vmatpush1.bf16.msra.mxu0 0
        %413 = vmatprep.subr.bf16.mxu0 0
        %414 = vmatpush1.bf16.msra.mxu0 0
        %415 = vmatprep.mubr.bf16.mxu0 0
        %416 = vmatmul.mubr.bf16.gmra.mrb[0].mxu0 %v327
        %v417 = vpop.f32.mrb[0].mxu0
        %v418 = vadd.f32 0.0, %v417
        %v419 = vpop.f32.mrb[0].mxu0
        %v420 = vpop.f32.mrb[0].mxu0
        %v421 = vadd.f32 0.0, %v420
        %v422 = vpop.f32.mrb[0].mxu0
        %423 = vmatprep.mubr.bf16.mxu0 0
        %424 = vmatmul.mubr.bf16.gmra.mrb[0].mxu0 %v328
        %v425 = vpop.f32.mrb[0].mxu0
        %v426 = vadd.f32 0.0, %v425
        %v427 = vpop.f32.mrb[0].mxu0
        %v428 = vpop.f32.mrb[0].mxu0
        %v429 = vadd.f32 0.0, %v428
        %v430 = vpop.f32.mrb[0].mxu0
        %431 = vmatprep.mubr.bf16.mxu0 0
        %432 = vmatmul.mubr.bf16.gmra.mrb[0].mxu0 %v329
        %v433 = vpop.f32.mrb[0].mxu0
        %v434 = vadd.f32 0.0, %v433
        %v435 = vpop.f32.mrb[0].mxu0
        %v436 = vpop.f32.mrb[0].mxu0
        %v437 = vadd.f32 0.0, %v436
        %v438 = vpop.f32.mrb[0].mxu0
        %439 = vmatprep.mubr.bf16.mxu0 0
        %440 = vmatmul.mubr.bf16.gmra.mrb[0].mxu0 %v330
        %v441 = vpop.f32.mrb[0].mxu0
        %v442 = vadd.f32 0.0, %v441
        %v443 = vpop.f32.mrb[0].mxu0
        %v444 = vpop.f32.mrb[0].mxu0
        %v445 = vadd.f32 0.0, %v444
        %v446 = vpop.f32.mrb[0].mxu0
        %447 = vdwg.mxu0
        %v448 = vadd.f32 %v279, %v418
        %v449 = vadd.f32 %v280, %v421
        %v450 = vadd.f32 %v281, %v426
        %v451 = vadd.f32 %v282, %v429
        %v452 = vadd.f32 %v283, %v434
        %v453 = vadd.f32 %v284, %v437
        %v454 = vadd.f32 %v285, %v442
        %v455 = vadd.f32 %v286, %v445
        %456 = vst [vmem:[#allocation2] sm:$0xff] %v448
        %457 = vst [vmem:[#allocation2 + $0x8] sm:$0xff] %v449
        %458 = vst [vmem:[#allocation2 + $0x10] sm:$0xff] %v450
        %459 = vst [vmem:[#allocation2 + $0x18] sm:$0xff] %v451
        %460 = vst [vmem:[#allocation2 + $0x20] sm:$0xff] %v452
        %461 = vst [vmem:[#allocation2 + $0x28] sm:$0xff] %v453
        %462 = vst [vmem:[#allocation2 + $0x30] sm:$0xff] %v454
        %463 = vst [vmem:[#allocation2 + $0x38] sm:$0xff] %v455
        // Predicated region
        $region45: #{bottleneck_forward.3} parent=31 // pred_check
          %p464 = pneg %p260
        $region46: #{bottleneck_forward.3} parent=31 // pred_check_branch
          %466 = sbr.rel (%p464) target = $region48
        $region47: #{bottleneck_forward.3} parent=31 // pred_region
          %v467 = vld [vmem:[#allocation2] sm:$0xff]
          %v468 = vld [vmem:[#allocation2 + $0x8] sm:$0xff]
          %v469 = vld [vmem:[#allocation2 + $0x10] sm:$0xff]
          %v470 = vld [vmem:[#allocation2 + $0x18] sm:$0xff]
          %v471 = vld [vmem:[#allocation2 + $0x20] sm:$0xff]
          %v472 = vld [vmem:[#allocation2 + $0x28] sm:$0xff]
          %v473 = vld [vmem:[#allocation2 + $0x30] sm:$0xff]
          %v474 = vld [vmem:[#allocation2 + $0x38] sm:$0xff]
          %v475 = vmax.f32 %v467, 0.0
          %v476 = vmax.f32 %v468, 0.0
          %v477 = vmax.f32 %v469, 0.0
          %v478 = vmax.f32 %v470, 0.0
          %v479 = vmax.f32 %v471, 0.0
          %v480 = vmax.f32 %v472, 0.0
          %v481 = vmax.f32 %v473, 0.0
          %v482 = vmax.f32 %v474, 0.0
          %v483 = vpack.c.bf16 %v476, %v475
          %v484 = vpack.c.bf16 %v478, %v477
          %v485 = vpack.c.bf16 %v480, %v479
          %v486 = vpack.c.bf16 %v482, %v481
          %v491 = vunpack.c.l.b16 %v483
          %v492 = vunpack.c.h.b16 %v483
          %v493 = vunpack.c.l.b16 %v484
          %v494 = vunpack.c.h.b16 %v484
          %v495 = vunpack.c.l.b16 %v485
          %v496 = vunpack.c.h.b16 %v485
          %v497 = vunpack.c.l.b16 %v486
          %v498 = vunpack.c.h.b16 %v486
          %v499 = vpack.c.b16 %v491, %v491
          %v500 = vpack.c.b16 %v492, %v492
          %v501 = vpack.c.b16 %v493, %v493
          %v502 = vpack.c.b16 %v494, %v494
          %v503 = vpack.c.b16 %v495, %v495
          %v504 = vpack.c.b16 %v496, %v496
          %v505 = vpack.c.b16 %v497, %v497
          %v506 = vpack.c.b16 %v498, %v498
          %515 = vst [vmem:[%s257] sm:$0xf] %v499
          %516 = vst [vmem:[%s257 + $0x4] sm:$0xf] %v500
          %517 = vst [vmem:[%s257 + $0x8] sm:$0xf] %v501
          %518 = vst [vmem:[%s257 + $0xc] sm:$0xf] %v502
          %519 = vst [vmem:[%s257 + $0x10] sm:$0xf] %v503
          %520 = vst [vmem:[%s257 + $0x14] sm:$0xf] %v504
          %521 = vst [vmem:[%s257 + $0x18] sm:$0xf] %v505
          %522 = vst [vmem:[%s257 + $0x1c] sm:$0xf] %v506
        $region48: #{bottleneck_forward.3} parent=31 // pred_fallthru
          _
        %s523 = smul.u32 8, %s21
        %p524 = scmp.lt.s32.totalorder %s523, 15
        %s525 = scalar_select %p524, %s523, 15
        %p526 = scmp.lt.s32.totalorder %s22, 0
        %s527 = scalar_select %p526, %s22, 0
        %s528 = sadd.s32 %s527, %s525
        %s529 = smul.addr %s528, 4
        %s530 = scalar_lea.vmem %s3, %s529
        // Predicated region
        $region49: #{bottleneck_forward.3} parent=31 // pred_check
          %p531 = pneg %p137
        $region50: #{bottleneck_forward.3} parent=31 // pred_check_branch
          %533 = sbr.rel (%p531) target = $region52
        $region51: #{bottleneck_forward.3} parent=31 // pred_region
          %s534 = smul.u32 8, %s21
        $region52: #{bottleneck_forward.3} parent=31 // pred_fallthru
          _
      $region32: #{bottleneck_forward.3} parent=5 // pred_fallthru
        _
      %p535 = scmp.le.s32.totalorder 2, %s11
      // Predicated region
      $region53: #{bottleneck_forward.3} parent=5 // pred_check
        %p536 = pneg %p535
      $region54: #{bottleneck_forward.3} parent=5 // pred_check_branch
        %538 = sbr.rel (%p536) target = $region56
      $region55: #{bottleneck_forward.3} parent=5 // pred_region
        %s539 = ssub.s32 %s11, 2
        // Predicated region
        $region57: #{bottleneck_forward.3} parent=55 // pred_check
          %p540 = pneg %p143
        $region58: #{bottleneck_forward.3} parent=55 // pred_check_branch
          %542 = sbr.rel (%p540) target = $region60
        $region59: #{bottleneck_forward.3} parent=55 // pred_region
          %s543 = smul.u32 8, %s24
          %p544 = scmp.lt.s32.totalorder %s543, 15
          %s545 = scalar_select %p544, %s543, 15
          %p546 = scmp.lt.s32.totalorder %s25, 0
          %s547 = scalar_select %p546, %s25, 0
          %s548 = sadd.s32 %s547, %s545
          %s549 = smul.addr %s548, 4
          %s550 = scalar_lea.vmem %s3, %s549
        $region60: #{bottleneck_forward.3} parent=55 // pred_fallthru
          _
      $region56: #{bottleneck_forward.3} parent=5 // pred_fallthru
        _
    $region6: #{bottleneck_forward.3} parent=1 // loop_footer
      %s15 = sadd.s32 1, %s11
    $region7: #{bottleneck_forward.3} parent=1 // loop_footer_branch
      %10 = sbr.rel target = $region3
    $region8: #{bottleneck_forward.3} parent=1 // loop_exit
      _
    %551 = vsyncpa [#allocation4], 1
    %s552 = scalar_lea.sflag [#allocation4], 1
    %553 = vsyncpa %s552, 1
    %554 = vsyncpa [#allocation6], 1

// kernel: bottleneck_forward.5
$region0: #{bottleneck_forward.5}
  #allocation0 [shape = 'u32[]', space=smem, size = 0x4, offset = 0x4, fixed_abs, tag = 'smem constant byte address 0x4 - core index']
  #allocation1 [shape = 'u32[144,128]{1,0:T(1,128)}', space=vmem, size = 0x12000, scoped, tag = 'internal scratch']
  #allocation2 [shape = 'f32[64,128]{1,0:T(8,128)}', space=vmem, size = 0x8000, scoped, tag = 'scratch operand']
  %s0 = inlined_call_operand.vmem [shape: bf16[128,256], index: 0, kind: input, shape index: {}]
  %s1 = inlined_call_operand.vmem [shape: bf16[256,128], index: 1, kind: input, shape index: {}]
  %s2 = inlined_call_operand.vmem [shape: f32[1,128], index: 2, kind: input, shape index: {}]
  %s3 = inlined_call_operand.vmem [shape: bf16[128,128], index: 3, kind: output, shape index: {}]
  %s4 = sld [smem:[#allocation0]]
  $region53: #{bottleneck_forward.5} parent=0
    _
  %s6 = ssub.s32 1, %s4
  %s7 = scalar_select 0, %s6, %s4
  loop: start=0, step=1, limit=4
  $region2: #{bottleneck_forward.5} parent=0 // loop_pre_header
    _
  $region3: #{bottleneck_forward.5} parent=0 // loop_header
    %s9 = sphi 0, %s13
    %p10 = scmp.ge.s32.totalorder %s9, 4
    %s16 = sphi 0, %s35
    %s17 = sphi 0, %s31
    %s18 = sphi 0, %s27
    %s19 = sphi 0, %s16
    %s20 = sphi 0, %s17
    %s21 = sphi 0, %s18
    %s22 = sphi 0, %s19
    %s23 = sphi 0, %s20
    %s24 = sphi 0, %s21
    %s40 = sphi 0, %s42
    %s43 = sphi 0, %s40
    %s44 = sphi 0, %s43
    %s60 = sphi 0, %s44
    %s68 = sphi 0, %s70
    %s71 = sphi 0, %s68
    %s72 = sphi 0, %s71
    %s88 = sphi 0, %s72
    %s94 = sphi 0, %s96
    %s97 = sphi 0, %s94
    %s98 = sphi 0, %s97
    %s114 = sphi 0, %s98
    %s122 = sphi 0, %s124
    %s125 = sphi 0, %s122
    %s126 = sphi 0, %s125
    %s142 = sphi 0, %s126
  $region4: #{bottleneck_forward.5} parent=0 // loop_header_branch
    %12 = sbr.rel (%p10) target = $region8
  $region5: #{bottleneck_forward.5} parent=0 // loop_body
    %s14 = ssub.s32 %s9, 1
    %s15 = ssub.s32 %s9, 2
    %s25 = sadd.s32 1, %s18
    %p26 = scmp.ge.s32.totalorder %s25, 1
    %s27 = scalar_select %p26, 0, %s25
    %s28 = sadd.s32 1, %s17
    %s29 = scalar_select %p26, %s28, %s17
    %p30 = scmp.ge.s32.totalorder %s29, 1
    %s31 = scalar_select %p30, 0, %s29
    %s32 = sadd.s32 1, %s16
    %s33 = scalar_select %p30, %s32, %s16
    %p34 = scmp.ge.s32.totalorder %s33, 2
    %s35 = scalar_select %p34, 0, %s33
    %s36 = ssub.s32 %s16, %s35
    %s37 = ssub.s32 %s18, %s27
    %s38 = sor.u32 %s36, %s37
    %p39 = scmp.eq.s32.totalorder %s38, 0
    %s41 = sadd.s32 %s40, 1
    %s42 = scalar_select %p39, %s40, %s41
    %p45 = pneg %p39
    %p46 = scmp.eq.s32.totalorder %s9, 1
    %p47 = por %p45, %p46
    %p48 = scmp.ne.s32.totalorder %s40, %s43
    %p49 = scmp.eq.s32.totalorder %s9, 0
    %p50 = por %p48, %p49
    %p51 = scmp.ne.s32.totalorder %s40, %s43
    %p52 = scmp.eq.s32.totalorder %s14, 1
    %p53 = por %p51, %p52
    %p54 = scmp.ne.s32.totalorder %s43, %s44
    %p55 = scmp.eq.s32.totalorder %s14, 0
    %p56 = por %p54, %p55
    %p57 = scmp.ne.s32.totalorder %s43, %s44
    %p58 = scmp.eq.s32.totalorder %s15, 1
    %p59 = por %p57, %p58
    %p61 = scmp.ne.s32.totalorder %s44, %s60
    %p62 = scmp.eq.s32.totalorder %s15, 0
    %p63 = por %p61, %p62
    %s64 = ssub.s32 %s18, %s27
    %s65 = ssub.s32 %s17, %s31
    %s66 = sor.u32 %s64, %s65
    %p67 = scmp.eq.s32.totalorder %s66, 0
    %s69 = sadd.s32 %s68, 1
    %s70 = scalar_select %p67, %s68, %s69
    %p73 = pneg %p67
    %p74 = scmp.eq.s32.totalorder %s9, 1
    %p75 = por %p73, %p74
    %p76 = scmp.ne.s32.totalorder %s68, %s71
    %p77 = scmp.eq.s32.totalorder %s9, 0
    %p78 = por %p76, %p77
    %p79 = scmp.ne.s32.totalorder %s68, %s71
    %p80 = scmp.eq.s32.totalorder %s14, 1
    %p81 = por %p79, %p80
    %p82 = scmp.ne.s32.totalorder %s71, %s72
    %p83 = scmp.eq.s32.totalorder %s14, 0
    %p84 = por %p82, %p83
    %p85 = scmp.ne.s32.totalorder %s71, %s72
    %p86 = scmp.eq.s32.totalorder %s15, 1
    %p87 = por %p85, %p86
    %p89 = scmp.ne.s32.totalorder %s72, %s88
    %p90 = scmp.eq.s32.totalorder %s15, 0
    %p91 = por %p89, %p90
    %s92 = ssub.s32 %s17, %s31
    %p93 = scmp.eq.s32.totalorder %s92, 0
    %s95 = sadd.s32 %s94, 1
    %s96 = scalar_select %p93, %s94, %s95
    %p99 = pneg %p93
    %p100 = scmp.eq.s32.totalorder %s9, 1
    %p101 = por %p99, %p100
    %p102 = scmp.ne.s32.totalorder %s94, %s97
    %p103 = scmp.eq.s32.totalorder %s9, 0
    %p104 = por %p102, %p103
    %p105 = scmp.ne.s32.totalorder %s94, %s97
    %p106 = scmp.eq.s32.totalorder %s14, 1
    %p107 = por %p105, %p106
    %p108 = scmp.ne.s32.totalorder %s97, %s98
    %p109 = scmp.eq.s32.totalorder %s14, 0
    %p110 = por %p108, %p109
    %p111 = scmp.ne.s32.totalorder %s97, %s98
    %p112 = scmp.eq.s32.totalorder %s15, 1
    %p113 = por %p111, %p112
    %p115 = scmp.ne.s32.totalorder %s98, %s114
    %p116 = scmp.eq.s32.totalorder %s15, 0
    %p117 = por %p115, %p116
    %s118 = ssub.s32 %s16, %s35
    %s119 = ssub.s32 %s17, %s31
    %s120 = sor.u32 %s118, %s119
    %p121 = scmp.eq.s32.totalorder %s120, 0
    %s123 = sadd.s32 %s122, 1
    %s124 = scalar_select %p121, %s122, %s123
    %p127 = pneg %p121
    %p128 = scmp.eq.s32.totalorder %s9, 1
    %p129 = por %p127, %p128
    %p130 = scmp.ne.s32.totalorder %s122, %s125
    %p131 = scmp.eq.s32.totalorder %s9, 0
    %p132 = por %p130, %p131
    %p133 = scmp.ne.s32.totalorder %s122, %s125
    %p134 = scmp.eq.s32.totalorder %s14, 1
    %p135 = por %p133, %p134
    %p136 = scmp.ne.s32.totalorder %s125, %s126
    %p137 = scmp.eq.s32.totalorder %s14, 0
    %p138 = por %p136, %p137
    %p139 = scmp.ne.s32.totalorder %s125, %s126
    %p140 = scmp.eq.s32.totalorder %s15, 1
    %p141 = por %p139, %p140
    %p143 = scmp.ne.s32.totalorder %s126, %s142
    %p144 = scmp.eq.s32.totalorder %s15, 0
    %p145 = por %p143, %p144
    %p146 = scmp.le.s32.totalorder 1, %s9
    %p147 = scmp.lt.s32.totalorder %s9, 3
    %p148 = pnand %p146, %p147
    %p149 = pneg %p148
    // Predicated region
    $region9: #{bottleneck_forward.5} parent=5 // pred_check
      _
    $region10: #{bottleneck_forward.5} parent=5 // pred_check_branch
      %151 = sbr.rel (%p148) target = $region12
    $region11: #{bottleneck_forward.5} parent=5 // pred_region
      %s152 = ssub.s32 %s9, 1
      // Predicated region
      $region13: #{bottleneck_forward.5} parent=11 // pred_check
        %p153 = pneg %p84
      $region14: #{bottleneck_forward.5} parent=11 // pred_check_branch
        %155 = sbr.rel (%p153) target = $region16
      $region15: #{bottleneck_forward.5} parent=11 // pred_region
        %s156 = smul.u32 32, %s21
        %p157 = scmp.lt.s32.totalorder %s156, 31
        %s158 = scalar_select %p157, %s156, 31
        %p159 = scmp.lt.s32.totalorder %s20, 0
        %s160 = scalar_select %p159, %s20, 0
        %s161 = sadd.s32 %s160, %s158
        %s162 = smul.addr %s161, 4
        %s163 = scalar_lea.vmem %s1, %s162
        %s164 = smul.u32 32, %s21
      $region16: #{bottleneck_forward.5} parent=11 // pred_fallthru
        _
      // Predicated region
      $region17: #{bottleneck_forward.5} parent=11 // pred_check
        %p165 = pneg %p110
      $region18: #{bottleneck_forward.5} parent=11 // pred_check_branch
        %167 = sbr.rel (%p165) target = $region20
      $region19: #{bottleneck_forward.5} parent=11 // pred_region
        %p168 = scmp.lt.s32.totalorder %s20, 0
        %s169 = scalar_select %p168, %s20, 0
        %s170 = scalar_lea.vmem %s2, %s169
      $region20: #{bottleneck_forward.5} parent=11 // pred_fallthru
        _
    $region12: #{bottleneck_forward.5} parent=5 // pred_fallthru
      _
    %p171 = scmp.lt.s32.totalorder %s9, 2
    // Predicated region
    $region21: #{bottleneck_forward.5} parent=5 // pred_check
      %p172 = pneg %p171
    $region22: #{bottleneck_forward.5} parent=5 // pred_check_branch
      %174 = sbr.rel (%p172) target = $region24
    $region23: #{bottleneck_forward.5} parent=5 // pred_region
      // Predicated region
      $region25: #{bottleneck_forward.5} parent=23 // pred_check
        %p175 = pneg %p50
      $region26: #{bottleneck_forward.5} parent=23 // pred_check_branch
        %177 = sbr.rel (%p175) target = $region28
      $region27: #{bottleneck_forward.5} parent=23 // pred_region
        %s178 = smul.u32 8, %s16
        %s179 = smul.u32 2, %s18
        %p180 = scmp.lt.s32.totalorder %s178, 15
        %s181 = scalar_select %p180, %s178, 15
        %p182 = scmp.lt.s32.totalorder %s179, 1
        %s183 = scalar_select %p182, %s179, 1
        %s184 = smul.addr %s181, 2
        %s185 = sadd.s32 %s183, %s184
        %s186 = smul.addr %s185, 4
        %s187 = scalar_lea.vmem %s0, %s186
        %s188 = smul.u32 8, %s16
        %s189 = smul.u32 2, %s18
      $region28: #{bottleneck_forward.5} parent=23 // pred_fallthru
        _
    $region24: #{bottleneck_forward.5} parent=5 // pred_fallthru
      _
    %p190 = scmp.le.s32.totalorder 1, %s9
    %p191 = scmp.lt.s32.totalorder %s9, 3
    %p192 = pnand %p190, %p191
    %p193 = pneg %p192
    // Predicated region
    $region29: #{bottleneck_forward.5} parent=5 // pred_check
      _
    $region30: #{bottleneck_forward.5} parent=5 // pred_check_branch
      %195 = sbr.rel (%p192) target = $region32
    $region31: #{bottleneck_forward.5} parent=5 // pred_region
      %s196 = ssub.s32 %s9, 1
      %s197 = smul.u32 8, %s19
      %s198 = smul.u32 2, %s21
      %p199 = scmp.lt.s32.totalorder %s197, 15
      %s200 = scalar_select %p199, %s197, 15
      %p201 = scmp.lt.s32.totalorder %s198, 1
      %s202 = scalar_select %p201, %s198, 1
      %s203 = smul.addr %s200, 2
      %s204 = sadd.s32 %s202, %s203
      %s205 = smul.addr %s204, 4
      %s206 = scalar_lea.vmem %s0, %s205
      %p207 = pneg %p56
      %p208 = pneg %p53
      %s209 = smul.u32 32, %s21
      %p210 = scmp.lt.s32.totalorder %s209, 31
      %s211 = scalar_select %p210, %s209, 31
      %p212 = scmp.lt.s32.totalorder %s20, 0
      %s213 = scalar_select %p212, %s20, 0
      %s214 = sadd.s32 %s213, %s211
      %s215 = smul.addr %s214, 4
      %s216 = scalar_lea.vmem %s1, %s215
      %p217 = pneg %p84
      %p218 = pneg %p81
      %p219 = scmp.lt.s32.totalorder %s20, 0
      %s220 = scalar_select %p219, %s20, 0
      %s221 = scalar_lea.vmem %s2, %s220
      %p222 = pneg %p110
      %p223 = pneg %p107
      %p224 = pneg %p138
      %p225 = pneg %p135
      %s226 = smul.u32 8, %s19
      %p227 = scmp.lt.s32.totalorder %s226, 15
      %s228 = scalar_select %p227, %s226, 15
      %p229 = scmp.lt.s32.totalorder %s20, 0
      %s230 = scalar_select %p229, %s20, 0
      %s231 = sadd.s32 %s230, %s228
      %s232 = smul.addr %s231, 4
      %s233 = scalar_lea.vmem %s3, %s232
      %s234 = smul.u32 8, %s19
      %s235 = smul.u32 2, %s21
      %p236 = scmp.lt.s32.totalorder %s234, 15
      %s237 = scalar_select %p236, %s234, 15
      %p238 = scmp.lt.s32.totalorder %s235, 1
      %s239 = scalar_select %p238, %s235, 1
      %s240 = smul.addr %s237, 2
      %s241 = sadd.s32 %s239, %s240
      %s242 = smul.addr %s241, 4
      %s243 = scalar_lea.vmem %s0, %s242
      %s244 = smul.u32 8, %s19
      %s245 = smul.u32 2, %s21
      %s246 = smul.u32 32, %s21
      %p247 = scmp.lt.s32.totalorder %s246, 31
      %s248 = scalar_select %p247, %s246, 31
      %p249 = scmp.lt.s32.totalorder %s20, 0
      %s250 = scalar_select %p249, %s20, 0
      %s251 = sadd.s32 %s250, %s248
      %s252 = smul.addr %s251, 4
      %s253 = scalar_lea.vmem %s1, %s252
      %s254 = smul.u32 32, %s21
      %p255 = scmp.lt.s32.totalorder %s20, 0
      %s256 = scalar_select %p255, %s20, 0
      %s257 = scalar_lea.vmem %s2, %s256
      %s258 = smul.u32 8, %s19
      %p259 = scmp.lt.s32.totalorder %s258, 15
      %s260 = scalar_select %p259, %s258, 15
      %p261 = scmp.lt.s32.totalorder %s20, 0
      %s262 = scalar_select %p261, %s20, 0
      %s263 = sadd.s32 %s262, %s260
      %s264 = smul.addr %s263, 4
      %s265 = scalar_lea.vmem %s3, %s264
      %s266 = smul.u32 8, %s19
      %p268 = scmp.eq.s32.totalorder %s21, 0
      // Predicated region
      $region33: #{bottleneck_forward.5} parent=31 // pred_check
        %p269 = pneg %p268
      $region34: #{bottleneck_forward.5} parent=31 // pred_check_branch
        %271 = sbr.rel (%p269) target = $region36
      $region35: #{bottleneck_forward.5} parent=31 // pred_region
        %v272 = vld [vmem:[%s257] sm:$0x1]
        %v274 = vlaneseq
        %v275 = vshrl.u32 %v274, 7
        %v276 = vsub.s32 0, %v275
        %v277 = vrot.slane %v272, %v276
        %279 = vst [vmem:[#allocation2] sm:$0xff] %v277
        %280 = vst [vmem:[#allocation2 + $0x8] sm:$0xff] %v277
        %281 = vst [vmem:[#allocation2 + $0x10] sm:$0xff] %v277
        %282 = vst [vmem:[#allocation2 + $0x18] sm:$0xff] %v277
        %283 = vst [vmem:[#allocation2 + $0x20] sm:$0xff] %v277
        %284 = vst [vmem:[#allocation2 + $0x28] sm:$0xff] %v277
        %285 = vst [vmem:[#allocation2 + $0x30] sm:$0xff] %v277
        %286 = vst [vmem:[#allocation2 + $0x38] sm:$0xff] %v277
      $region36: #{bottleneck_forward.5} parent=31 // pred_fallthru
        _
      %v287 = vld [vmem:[#allocation2] sm:$0xff]
      %v288 = vld [vmem:[#allocation2 + $0x8] sm:$0xff]
      %v289 = vld [vmem:[#allocation2 + $0x10] sm:$0xff]
      %v290 = vld [vmem:[#allocation2 + $0x18] sm:$0xff]
      %v291 = vld [vmem:[#allocation2 + $0x20] sm:$0xff]
      %v292 = vld [vmem:[#allocation2 + $0x28] sm:$0xff]
      %v293 = vld [vmem:[#allocation2 + $0x30] sm:$0xff]
      %v294 = vld [vmem:[#allocation2 + $0x38] sm:$0xff]
      %v295 = vld [vmem:[%s243] sm:$0xff]
      %v296 = vld [vmem:[%s243 + $0x8] sm:$0xff]
      %v297 = vld [vmem:[%s243 + $0x10] sm:$0xff]
      %v298 = vld [vmem:[%s243 + $0x18] sm:$0xff]
      %v299 = vld [vmem:[%s243 + $0x20] sm:$0xff]
      %v300 = vld [vmem:[%s243 + $0x28] sm:$0xff]
      %v301 = vld [vmem:[%s243 + $0x30] sm:$0xff]
      %v302 = vld [vmem:[%s243 + $0x38] sm:$0xff]
      %v303 = vld [vmem:[%s253] sm:$0xf]
      %v304 = vld [vmem:[%s253 + $0x4] sm:$0xf]
      %v305 = vld [vmem:[%s253 + $0x8] sm:$0xf]
      %v306 = vld [vmem:[%s253 + $0xc] sm:$0xf]
      %v307 = vld [vmem:[%s253 + $0x10] sm:$0xf]
      %v308 = vld [vmem:[%s253 + $0x14] sm:$0xf]
      %v309 = vld [vmem:[%s253 + $0x18] sm:$0xf]
      %v310 = vld [vmem:[%s253 + $0x1c] sm:$0xf]
      %v311 = vld [vmem:[%s253 + $0x20] sm:$0xf]
      %v312 = vld [vmem:[%s253 + $0x24] sm:$0xf]
      %v313 = vld [vmem:[%s253 + $0x28] sm:$0xf]
      %v314 = vld [vmem:[%s253 + $0x2c] sm:$0xf]
      %v315 = vld [vmem:[%s253 + $0x30] sm:$0xf]
      %v316 = vld [vmem:[%s253 + $0x34] sm:$0xf]
      %v317 = vld [vmem:[%s253 + $0x38] sm:$0xf]
      %v318 = vld [vmem:[%s253 + $0x3c] sm:$0xf]
      %v319 = vld [vmem:[%s253 + $0x40] sm:$0xf]
      %v320 = vld [vmem:[%s253 + $0x44] sm:$0xf]
      %v321 = vld [vmem:[%s253 + $0x48] sm:$0xf]
      %v322 = vld [vmem:[%s253 + $0x4c] sm:$0xf]
      %v323 = vld [vmem:[%s253 + $0x50] sm:$0xf]
      %v324 = vld [vmem:[%s253 + $0x54] sm:$0xf]
      %v325 = vld [vmem:[%s253 + $0x58] sm:$0xf]
      %v326 = vld [vmem:[%s253 + $0x5c] sm:$0xf]
      %v327 = vld [vmem:[%s253 + $0x60] sm:$0xf]
      %v328 = vld [vmem:[%s253 + $0x64] sm:$0xf]
      %v329 = vld [vmem:[%s253 + $0x68] sm:$0xf]
      %v330 = vld [vmem:[%s253 + $0x6c] sm:$0xf]
      %v331 = vld [vmem:[%s253 + $0x70] sm:$0xf]
      %v332 = vld [vmem:[%s253 + $0x74] sm:$0xf]
      %v333 = vld [vmem:[%s253 + $0x78] sm:$0xf]
      %v334 = vld [vmem:[%s253 + $0x7c] sm:$0xf]
      %v343 = vunpack.c.l.b16 %v295
      %v344 = vunpack.c.h.b16 %v295
      %v345 = vunpack.c.l.b16 %v296
      %v346 = vunpack.c.h.b16 %v296
      %v347 = vunpack.c.l.b16 %v297
      %v348 = vunpack.c.h.b16 %v297
      %v349 = vunpack.c.l.b16 %v298
      %v350 = vunpack.c.h.b16 %v298
      %v351 = vunpack.c.l.b16 %v299
      %v352 = vunpack.c.h.b16 %v299
      %v353 = vunpack.c.l.b16 %v300
      %v354 = vunpack.c.h.b16 %v300
      %v355 = vunpack.c.l.b16 %v301
      %v356 = vunpack.c.h.b16 %v301
      %v357 = vunpack.c.l.b16 %v302
      %v358 = vunpack.c.h.b16 %v302
      %v359 = vpack.c.b16 %v345, %v343
      %v360 = vpack.c.b16 %v346, %v344
      %v361 = vpack.c.b16 %v349, %v347
      %v362 = vpack.c.b16 %v350, %v348
      %v363 = vpack.c.b16 %v353, %v351
      %v364 = vpack.c.b16 %v354, %v352
      %v365 = vpack.c.b16 %v357, %v355
      %v366 = vpack.c.b16 %v358, %v356
      %v407 = vunpack.c.l.b16 %v303
      %v408 = vunpack.c.l.b16 %v304
      %v409 = vunpack.c.l.b16 %v305
      %v410 = vunpack.c.l.b16 %v306
      %v411 = vunpack.c.l.b16 %v307
      %v412 = vunpack.c.l.b16 %v308
      %v413 = vunpack.c.l.b16 %v309
      %v414 = vunpack.c.l.b16 %v310
      %v415 = vunpack.c.l.b16 %v311
      %v416 = vunpack.c.l.b16 %v312
      %v417 = vunpack.c.l.b16 %v313
      %v418 = vunpack.c.l.b16 %v314
      %v419 = vunpack.c.l.b16 %v315
      %v420 = vunpack.c.l.b16 %v316
      %v421 = vunpack.c.l.b16 %v317
      %v422 = vunpack.c.l.b16 %v318
      %v423 = vunpack.c.l.b16 %v319
      %v424 = vunpack.c.l.b16 %v320
      %v425 = vunpack.c.l.b16 %v321
      %v426 = vunpack.c.l.b16 %v322
      %v427 = vunpack.c.l.b16 %v323
      %v428 = vunpack.c.l.b16 %v324
      %v429 = vunpack.c.l.b16 %v325
      %v430 = vunpack.c.l.b16 %v326
      %v431 = vunpack.c.l.b16 %v327
      %v432 = vunpack.c.l.b16 %v328
      %v433 = vunpack.c.l.b16 %v329
      %v434 = vunpack.c.l.b16 %v330
      %v435 = vunpack.c.l.b16 %v331
      %v436 = vunpack.c.l.b16 %v332
      %v437 = vunpack.c.l.b16 %v333
      %v438 = vunpack.c.l.b16 %v334
      %v439 = vpack.c.b16 %v408, %v407
      %v440 = vpack.c.b16 %v410, %v409
      %v441 = vpack.c.b16 %v412, %v411
      %v442 = vpack.c.b16 %v414, %v413
      %v443 = vpack.c.b16 %v416, %v415
      %v444 = vpack.c.b16 %v418, %v417
      %v445 = vpack.c.b16 %v420, %v419
      %v446 = vpack.c.b16 %v422, %v421
      %v447 = vpack.c.b16 %v424, %v423
      %v448 = vpack.c.b16 %v426, %v425
      %v449 = vpack.c.b16 %v428, %v427
      %v450 = vpack.c.b16 %v430, %v429
      %v451 = vpack.c.b16 %v432, %v431
      %v452 = vpack.c.b16 %v434, %v433
      %v453 = vpack.c.b16 %v436, %v435
      %v454 = vpack.c.b16 %v438, %v437
      %471 = vmatprep.subr.bf16.mxu0 0
      %472 = vmatpush1.bf16.msra.mxu0 %v439
      %473 = vmatprep.subr.bf16.mxu0 0
      %474 = vmatpush1.bf16.msra.mxu0 %v440
      %475 = vmatprep.subr.bf16.mxu0 0
      %476 = vmatpush1.bf16.msra.mxu0 %v441
      %477 = vmatprep.subr.bf16.mxu0 0
      %478 = vmatpush1.bf16.msra.mxu0 %v442
      %479 = vmatprep.subr.bf16.mxu0 0
      %480 = vmatpush1.bf16.msra.mxu0 %v443
      %481 = vmatprep.subr.bf16.mxu0 0
      %482 = vmatpush1.bf16.msra.mxu0 %v444
      %483 = vmatprep.subr.bf16.mxu0 0
      %484 = vmatpush1.bf16.msra.mxu0 %v445
      %485 = vmatprep.subr.bf16.mxu0 0
      %486 = vmatpush1.bf16.msra.mxu0 %v446
      %487 = vmatprep.subr.bf16.mxu0 0
      %488 = vmatpush1.bf16.msra.mxu0 %v447
      %489 = vmatprep.subr.bf16.mxu0 0
      %490 = vmatpush1.bf16.msra.mxu0 %v448
      %491 = vmatprep.subr.bf16.mxu0 0
      %492 = vmatpush1.bf16.msra.mxu0 %v449
      %493 = vmatprep.subr.bf16.mxu0 0
      %494 = vmatpush1.bf16.msra.mxu0 %v450
      %495 = vmatprep.subr.bf16.mxu0 0
      %496 = vmatpush1.bf16.msra.mxu0 %v451
      %497 = vmatprep.subr.bf16.mxu0 0
      %498 = vmatpush1.bf16.msra.mxu0 %v452
      %499 = vmatprep.subr.bf16.mxu0 0
      %500 = vmatpush1.bf16.msra.mxu0 %v453
      %501 = vmatprep.subr.bf16.mxu0 0
      %502 = vmatpush1.bf16.msra.mxu0 %v454
      %503 = vmatprep.mubr.bf16.mxu0 %v360
      %504 = vmatmul.mubr.bf16.gmra.mrb[0].mxu0 %v359
      %v505 = vpop.f32.mrb[0].mxu0
      %v506 = vadd.f32 0.0, %v505
      %v507 = vpop.f32.mrb[0].mxu0
      %v508 = vpop.f32.mrb[0].mxu0
      %v509 = vadd.f32 0.0, %v508
      %v510 = vpop.f32.mrb[0].mxu0
      %511 = vmatprep.mubr.bf16.mxu0 %v362
      %512 = vmatmul.mubr.bf16.gmra.mrb[0].mxu0 %v361
      %v513 = vpop.f32.mrb[0].mxu0
      %v514 = vadd.f32 0.0, %v513
      %v515 = vpop.f32.mrb[0].mxu0
      %v516 = vpop.f32.mrb[0].mxu0
      %v517 = vadd.f32 0.0, %v516
      %v518 = vpop.f32.mrb[0].mxu0
      %519 = vmatprep.mubr.bf16.mxu0 %v364
      %520 = vmatmul.mubr.bf16.gmra.mrb[0].mxu0 %v363
      %v521 = vpop.f32.mrb[0].mxu0
      %v522 = vadd.f32 0.0, %v521
      %v523 = vpop.f32.mrb[0].mxu0
      %v524 = vpop.f32.mrb[0].mxu0
      %v525 = vadd.f32 0.0, %v524
      %v526 = vpop.f32.mrb[0].mxu0
      %527 = vmatprep.mubr.bf16.mxu0 %v366
      %528 = vmatmul.mubr.bf16.gmra.mrb[0].mxu0 %v365
      %v529 = vpop.f32.mrb[0].mxu0
      %v530 = vadd.f32 0.0, %v529
      %v531 = vpop.f32.mrb[0].mxu0
      %v532 = vpop.f32.mrb[0].mxu0
      %v533 = vadd.f32 0.0, %v532
      %v534 = vpop.f32.mrb[0].mxu0
      %535 = vdwg.mxu0
      %v536 = vadd.f32 %v287, %v506
      %v537 = vadd.f32 %v288, %v509
      %v538 = vadd.f32 %v289, %v514
      %v539 = vadd.f32 %v290, %v517
      %v540 = vadd.f32 %v291, %v522
      %v541 = vadd.f32 %v292, %v525
      %v542 = vadd.f32 %v293, %v530
      %v543 = vadd.f32 %v294, %v533
      %544 = vst [vmem:[#allocation2] sm:$0xff] %v536
      %545 = vst [vmem:[#allocation2 + $0x8] sm:$0xff] %v537
      %546 = vst [vmem:[#allocation2 + $0x10] sm:$0xff] %v538
      %547 = vst [vmem:[#allocation2 + $0x18] sm:$0xff] %v539
      %548 = vst [vmem:[#allocation2 + $0x20] sm:$0xff] %v540
      %549 = vst [vmem:[#allocation2 + $0x28] sm:$0xff] %v541
      %550 = vst [vmem:[#allocation2 + $0x30] sm:$0xff] %v542
      %551 = vst [vmem:[#allocation2 + $0x38] sm:$0xff] %v543
      // Predicated region
      $region37: #{bottleneck_forward.5} parent=31 // pred_check
        %p552 = pneg %p268
      $region38: #{bottleneck_forward.5} parent=31 // pred_check_branch
        %554 = sbr.rel (%p552) target = $region40
      $region39: #{bottleneck_forward.5} parent=31 // pred_region
        %v555 = vld [vmem:[#allocation2] sm:$0xff]
        %v556 = vld [vmem:[#allocation2 + $0x8] sm:$0xff]
        %v557 = vld [vmem:[#allocation2 + $0x10] sm:$0xff]
        %v558 = vld [vmem:[#allocation2 + $0x18] sm:$0xff]
        %v559 = vld [vmem:[#allocation2 + $0x20] sm:$0xff]
        %v560 = vld [vmem:[#allocation2 + $0x28] sm:$0xff]
        %v561 = vld [vmem:[#allocation2 + $0x30] sm:$0xff]
        %v562 = vld [vmem:[#allocation2 + $0x38] sm:$0xff]
        %v563 = vmax.f32 %v555, 0.0
        %v564 = vmax.f32 %v556, 0.0
        %v565 = vmax.f32 %v557, 0.0
        %v566 = vmax.f32 %v558, 0.0
        %v567 = vmax.f32 %v559, 0.0
        %v568 = vmax.f32 %v560, 0.0
        %v569 = vmax.f32 %v561, 0.0
        %v570 = vmax.f32 %v562, 0.0
        %v571 = vpack.c.bf16 %v564, %v563
        %v572 = vpack.c.bf16 %v566, %v565
        %v573 = vpack.c.bf16 %v568, %v567
        %v574 = vpack.c.bf16 %v570, %v569
        %v579 = vunpack.c.l.b16 %v571
        %v580 = vunpack.c.h.b16 %v571
        %v581 = vunpack.c.l.b16 %v572
        %v582 = vunpack.c.h.b16 %v572
        %v583 = vunpack.c.l.b16 %v573
        %v584 = vunpack.c.h.b16 %v573
        %v585 = vunpack.c.l.b16 %v574
        %v586 = vunpack.c.h.b16 %v574
        %v587 = vpack.c.b16 %v579, %v579
        %v588 = vpack.c.b16 %v580, %v580
        %v589 = vpack.c.b16 %v581, %v581
        %v590 = vpack.c.b16 %v582, %v582
        %v591 = vpack.c.b16 %v583, %v583
        %v592 = vpack.c.b16 %v584, %v584
        %v593 = vpack.c.b16 %v585, %v585
        %v594 = vpack.c.b16 %v586, %v586
        %603 = vst [vmem:[%s265] sm:$0xf] %v587
        %604 = vst [vmem:[%s265 + $0x4] sm:$0xf] %v588
        %605 = vst [vmem:[%s265 + $0x8] sm:$0xf] %v589
        %606 = vst [vmem:[%s265 + $0xc] sm:$0xf] %v590
        %607 = vst [vmem:[%s265 + $0x10] sm:$0xf] %v591
        %608 = vst [vmem:[%s265 + $0x14] sm:$0xf] %v592
        %609 = vst [vmem:[%s265 + $0x18] sm:$0xf] %v593
        %610 = vst [vmem:[%s265 + $0x1c] sm:$0xf] %v594
      $region40: #{bottleneck_forward.5} parent=31 // pred_fallthru
        _
      %s611 = smul.u32 8, %s19
      %p612 = scmp.lt.s32.totalorder %s611, 15
      %s613 = scalar_select %p612, %s611, 15
      %p614 = scmp.lt.s32.totalorder %s20, 0
      %s615 = scalar_select %p614, %s20, 0
      %s616 = sadd.s32 %s615, %s613
      %s617 = smul.addr %s616, 4
      %s618 = scalar_lea.vmem %s3, %s617
      // Predicated region
      $region41: #{bottleneck_forward.5} parent=31 // pred_check
        %p619 = pneg %p135
      $region42: #{bottleneck_forward.5} parent=31 // pred_check_branch
        %621 = sbr.rel (%p619) target = $region44
      $region43: #{bottleneck_forward.5} parent=31 // pred_region
        %s622 = smul.u32 8, %s19
      $region44: #{bottleneck_forward.5} parent=31 // pred_fallthru
        _
    $region32: #{bottleneck_forward.5} parent=5 // pred_fallthru
      _
    %p623 = scmp.le.s32.totalorder 2, %s9
    // Predicated region
    $region45: #{bottleneck_forward.5} parent=5 // pred_check
      %p624 = pneg %p623
    $region46: #{bottleneck_forward.5} parent=5 // pred_check_branch
      %626 = sbr.rel (%p624) target = $region48
    $region47: #{bottleneck_forward.5} parent=5 // pred_region
      %s627 = ssub.s32 %s9, 2
      // Predicated region
      $region49: #{bottleneck_forward.5} parent=47 // pred_check
        %p628 = pneg %p141
      $region50: #{bottleneck_forward.5} parent=47 // pred_check_branch
        %630 = sbr.rel (%p628) target = $region52
      $region51: #{bottleneck_forward.5} parent=47 // pred_region
        %s631 = smul.u32 8, %s22
        %p632 = scmp.lt.s32.totalorder %s631, 15
        %s633 = scalar_select %p632, %s631, 15
        %p634 = scmp.lt.s32.totalorder %s23, 0
        %s635 = scalar_select %p634, %s23, 0
        %s636 = sadd.s32 %s635, %s633
        %s637 = smul.addr %s636, 4
        %s638 = scalar_lea.vmem %s3, %s637
      $region52: #{bottleneck_forward.5} parent=47 // pred_fallthru
        _
    $region48: #{bottleneck_forward.5} parent=5 // pred_fallthru
      _
  $region6: #{bottleneck_forward.5} parent=0 // loop_footer
    %s13 = sadd.s32 1, %s9
  $region7: #{bottleneck_forward.5} parent=0 // loop_footer_branch
    %8 = sbr.rel target = $region3
  $region8: #{bottleneck_forward.5} parent=0 // loop_exit
    _

// kernel: bottleneck_forward.4
$region0: #{bottleneck_forward.4}
  #allocation0 [shape = 'u32[]', space=smem, size = 0x4, offset = 0x4, fixed_abs, tag = 'smem constant byte address 0x4 - core index']
  #allocation1 [shape = 'u32[144,128]{1,0:T(1,128)}', space=vmem, size = 0x12000, scoped, tag = 'internal scratch']
  #allocation2 [shape = 'f32[64,128]{1,0:T(8,128)}', space=vmem, size = 0x8000, scoped, tag = 'scratch operand']
  %s0 = inlined_call_operand.vmem [shape: bf16[2,10,1,10,128], index: 0, kind: input, shape index: {}]
  %s1 = inlined_call_operand.vmem [shape: bf16[9,128,128], index: 1, kind: input, shape index: {}]
  %s2 = inlined_call_operand.vmem [shape: f32[1,128], index: 2, kind: input, shape index: {}]
  %s3 = inlined_call_operand.vmem [shape: bf16[2,8,8,128], index: 3, kind: output, shape index: {}]
  %s4 = sld [smem:[#allocation0]]
  $region45: #{bottleneck_forward.4} parent=0
    _
  %s6 = ssub.s32 1, %s4
  %s7 = scalar_select 0, %s6, %s4
  loop: start=0, step=1, limit=4
  $region2: #{bottleneck_forward.4} parent=0 // loop_pre_header
    _
  $region3: #{bottleneck_forward.4} parent=0 // loop_header
    %s9 = sphi 0, %s13
    %p10 = scmp.ge.s32.totalorder %s9, 4
    %s16 = sphi 0, %s28
    %s17 = sphi 0, %s24
    %s18 = sphi 0, %s16
    %s19 = sphi 0, %s17
    %s20 = sphi 0, %s18
    %s21 = sphi 0, %s19
    %s31 = sphi 0, %s33
    %s34 = sphi 0, %s31
    %s35 = sphi 0, %s34
    %s51 = sphi 0, %s35
    %s57 = sphi 0, %s59
    %s60 = sphi 0, %s57
    %s61 = sphi 0, %s60
    %s77 = sphi 0, %s61
    %s83 = sphi 0, %s85
    %s86 = sphi 0, %s83
    %s87 = sphi 0, %s86
    %s103 = sphi 0, %s87
    %s111 = sphi 0, %s113
    %s114 = sphi 0, %s111
    %s115 = sphi 0, %s114
    %s131 = sphi 0, %s115
  $region4: #{bottleneck_forward.4} parent=0 // loop_header_branch
    %12 = sbr.rel (%p10) target = $region8
  $region5: #{bottleneck_forward.4} parent=0 // loop_body
    %s14 = ssub.s32 %s9, 1
    %s15 = ssub.s32 %s9, 2
    %s22 = sadd.s32 1, %s17
    %p23 = scmp.ge.s32.totalorder %s22, 1
    %s24 = scalar_select %p23, 0, %s22
    %s25 = sadd.s32 1, %s16
    %s26 = scalar_select %p23, %s25, %s16
    %p27 = scmp.ge.s32.totalorder %s26, 2
    %s28 = scalar_select %p27, 0, %s26
    %s29 = ssub.s32 %s16, %s28
    %p30 = scmp.eq.s32.totalorder %s29, 0
    %s32 = sadd.s32 %s31, 1
    %s33 = scalar_select %p30, %s31, %s32
    %p36 = pneg %p30
    %p37 = scmp.eq.s32.totalorder %s9, 1
    %p38 = por %p36, %p37
    %p39 = scmp.ne.s32.totalorder %s31, %s34
    %p40 = scmp.eq.s32.totalorder %s9, 0
    %p41 = por %p39, %p40
    %p42 = scmp.ne.s32.totalorder %s31, %s34
    %p43 = scmp.eq.s32.totalorder %s14, 1
    %p44 = por %p42, %p43
    %p45 = scmp.ne.s32.totalorder %s34, %s35
    %p46 = scmp.eq.s32.totalorder %s14, 0
    %p47 = por %p45, %p46
    %p48 = scmp.ne.s32.totalorder %s34, %s35
    %p49 = scmp.eq.s32.totalorder %s15, 1
    %p50 = por %p48, %p49
    %p52 = scmp.ne.s32.totalorder %s35, %s51
    %p53 = scmp.eq.s32.totalorder %s15, 0
    %p54 = por %p52, %p53
    %s55 = ssub.s32 %s17, %s24
    %p56 = scmp.eq.s32.totalorder %s55, 0
    %s58 = sadd.s32 %s57, 1
    %s59 = scalar_select %p56, %s57, %s58
    %p62 = pneg %p56
    %p63 = scmp.eq.s32.totalorder %s9, 1
    %p64 = por %p62, %p63
    %p65 = scmp.ne.s32.totalorder %s57, %s60
    %p66 = scmp.eq.s32.totalorder %s9, 0
    %p67 = por %p65, %p66
    %p68 = scmp.ne.s32.totalorder %s57, %s60
    %p69 = scmp.eq.s32.totalorder %s14, 1
    %p70 = por %p68, %p69
    %p71 = scmp.ne.s32.totalorder %s60, %s61
    %p72 = scmp.eq.s32.totalorder %s14, 0
    %p73 = por %p71, %p72
    %p74 = scmp.ne.s32.totalorder %s60, %s61
    %p75 = scmp.eq.s32.totalorder %s15, 1
    %p76 = por %p74, %p75
    %p78 = scmp.ne.s32.totalorder %s61, %s77
    %p79 = scmp.eq.s32.totalorder %s15, 0
    %p80 = por %p78, %p79
    %s81 = ssub.s32 %s17, %s24
    %p82 = scmp.eq.s32.totalorder %s81, 0
    %s84 = sadd.s32 %s83, 1
    %s85 = scalar_select %p82, %s83, %s84
    %p88 = pneg %p82
    %p89 = scmp.eq.s32.totalorder %s9, 1
    %p90 = por %p88, %p89
    %p91 = scmp.ne.s32.totalorder %s83, %s86
    %p92 = scmp.eq.s32.totalorder %s9, 0
    %p93 = por %p91, %p92
    %p94 = scmp.ne.s32.totalorder %s83, %s86
    %p95 = scmp.eq.s32.totalorder %s14, 1
    %p96 = por %p94, %p95
    %p97 = scmp.ne.s32.totalorder %s86, %s87
    %p98 = scmp.eq.s32.totalorder %s14, 0
    %p99 = por %p97, %p98
    %p100 = scmp.ne.s32.totalorder %s86, %s87
    %p101 = scmp.eq.s32.totalorder %s15, 1
    %p102 = por %p100, %p101
    %p104 = scmp.ne.s32.totalorder %s87, %s103
    %p105 = scmp.eq.s32.totalorder %s15, 0
    %p106 = por %p104, %p105
    %s107 = ssub.s32 %s16, %s28
    %s108 = ssub.s32 %s17, %s24
    %s109 = sor.u32 %s107, %s108
    %p110 = scmp.eq.s32.totalorder %s109, 0
    %s112 = sadd.s32 %s111, 1
    %s113 = scalar_select %p110, %s111, %s112
    %p116 = pneg %p110
    %p117 = scmp.eq.s32.totalorder %s9, 1
    %p118 = por %p116, %p117
    %p119 = scmp.ne.s32.totalorder %s111, %s114
    %p120 = scmp.eq.s32.totalorder %s9, 0
    %p121 = por %p119, %p120
    %p122 = scmp.ne.s32.totalorder %s111, %s114
    %p123 = scmp.eq.s32.totalorder %s14, 1
    %p124 = por %p122, %p123
    %p125 = scmp.ne.s32.totalorder %s114, %s115
    %p126 = scmp.eq.s32.totalorder %s14, 0
    %p127 = por %p125, %p126
    %p128 = scmp.ne.s32.totalorder %s114, %s115
    %p129 = scmp.eq.s32.totalorder %s15, 1
    %p130 = por %p128, %p129
    %p132 = scmp.ne.s32.totalorder %s115, %s131
    %p133 = scmp.eq.s32.totalorder %s15, 0
    %p134 = por %p132, %p133
    %p135 = scmp.le.s32.totalorder 1, %s9
    %p136 = scmp.lt.s32.totalorder %s9, 3
    %p137 = pnand %p135, %p136
    %p138 = pneg %p137
    // Predicated region
    $region9: #{bottleneck_forward.4} parent=5 // pred_check
      _
    $region10: #{bottleneck_forward.4} parent=5 // pred_check_branch
      %140 = sbr.rel (%p137) target = $region12
    $region11: #{bottleneck_forward.4} parent=5 // pred_region
      %s141 = ssub.s32 %s9, 1
      // Predicated region
      $region13: #{bottleneck_forward.4} parent=11 // pred_check
        %p142 = pneg %p73
      $region14: #{bottleneck_forward.4} parent=11 // pred_check_branch
        %144 = sbr.rel (%p142) target = $region16
      $region15: #{bottleneck_forward.4} parent=11 // pred_region
        %p145 = scmp.lt.s32.totalorder %s19, 0
        %s146 = scalar_select %p145, %s19, 0
        %s147 = smul.addr %s146, 4
        %s148 = scalar_lea.vmem %s1, %s147
      $region16: #{bottleneck_forward.4} parent=11 // pred_fallthru
        _
      // Predicated region
      $region17: #{bottleneck_forward.4} parent=11 // pred_check
        %p149 = pneg %p99
      $region18: #{bottleneck_forward.4} parent=11 // pred_check_branch
        %151 = sbr.rel (%p149) target = $region20
      $region19: #{bottleneck_forward.4} parent=11 // pred_region
        %p152 = scmp.lt.s32.totalorder %s19, 0
        %s153 = scalar_select %p152, %s19, 0
        %s154 = scalar_lea.vmem %s2, %s153
      $region20: #{bottleneck_forward.4} parent=11 // pred_fallthru
        _
    $region12: #{bottleneck_forward.4} parent=5 // pred_fallthru
      _
    %p155 = scmp.lt.s32.totalorder %s9, 2
    // Predicated region
    $region21: #{bottleneck_forward.4} parent=5 // pred_check
      %p156 = pneg %p155
    $region22: #{bottleneck_forward.4} parent=5 // pred_check_branch
      %158 = sbr.rel (%p156) target = $region24
    $region23: #{bottleneck_forward.4} parent=5 // pred_region
      // Predicated region
      $region25: #{bottleneck_forward.4} parent=23 // pred_check
        %p159 = pneg %p41
      $region26: #{bottleneck_forward.4} parent=23 // pred_check_branch
        %161 = sbr.rel (%p159) target = $region28
      $region27: #{bottleneck_forward.4} parent=23 // pred_region
        %p162 = scmp.lt.s32.totalorder %s16, 1
        %s163 = scalar_select %p162, %s16, 1
        %s164 = smul.addr %s163, 20
        %s165 = smul.addr %s164, 4
        %s166 = scalar_lea.vmem %s0, %s165
      $region28: #{bottleneck_forward.4} parent=23 // pred_fallthru
        _
    $region24: #{bottleneck_forward.4} parent=5 // pred_fallthru
      _
    %p167 = scmp.le.s32.totalorder 1, %s9
    %p168 = scmp.lt.s32.totalorder %s9, 3
    %p169 = pnand %p167, %p168
    %p170 = pneg %p169
    // Predicated region
    $region29: #{bottleneck_forward.4} parent=5 // pred_check
      _
    $region30: #{bottleneck_forward.4} parent=5 // pred_check_branch
      %172 = sbr.rel (%p169) target = $region32
    $region31: #{bottleneck_forward.4} parent=5 // pred_region
      %s173 = ssub.s32 %s9, 1
      %p174 = scmp.lt.s32.totalorder %s18, 1
      %s175 = scalar_select %p174, %s18, 1
      %s176 = smul.addr %s175, 20
      %s177 = smul.addr %s176, 4
      %s178 = scalar_lea.vmem %s0, %s177
      %p179 = pneg %p47
      %p180 = pneg %p44
      %p181 = scmp.lt.s32.totalorder %s19, 0
      %s182 = scalar_select %p181, %s19, 0
      %s183 = smul.addr %s182, 4
      %s184 = scalar_lea.vmem %s1, %s183
      %p185 = pneg %p73
      %p186 = pneg %p70
      %p187 = scmp.lt.s32.totalorder %s19, 0
      %s188 = scalar_select %p187, %s19, 0
      %s189 = scalar_lea.vmem %s2, %s188
      %p190 = pneg %p99
      %p191 = pneg %p96
      %p192 = pneg %p127
      %p193 = pneg %p124
      %p194 = scmp.lt.s32.totalorder %s18, 1
      %s195 = scalar_select %p194, %s18, 1
      %p196 = scmp.lt.s32.totalorder %s19, 0
      %s197 = scalar_select %p196, %s19, 0
      %s198 = smul.addr %s195, 8
      %s199 = sadd.s32 %s197, %s198
      %s200 = smul.addr %s199, 4
      %s201 = scalar_lea.vmem %s3, %s200
      %p202 = scmp.lt.s32.totalorder %s18, 1
      %s203 = scalar_select %p202, %s18, 1
      %s204 = smul.addr %s203, 20
      %s205 = smul.addr %s204, 4
      %s206 = scalar_lea.vmem %s0, %s205
      %p207 = scmp.lt.s32.totalorder %s19, 0
      %s208 = scalar_select %p207, %s19, 0
      %s209 = smul.addr %s208, 4
      %s210 = scalar_lea.vmem %s1, %s209
      %p211 = scmp.lt.s32.totalorder %s19, 0
      %s212 = scalar_select %p211, %s19, 0
      %s213 = scalar_lea.vmem %s2, %s212
      %p214 = scmp.lt.s32.totalorder %s18, 1
      %s215 = scalar_select %p214, %s18, 1
      %p216 = scmp.lt.s32.totalorder %s19, 0
      %s217 = scalar_select %p216, %s19, 0
      %s218 = smul.addr %s215, 8
      %s219 = sadd.s32 %s217, %s218
      %s220 = smul.addr %s219, 4
      %s221 = scalar_lea.vmem %s3, %s220
      %v223 = vld [vmem:[%s213] sm:$0x1]
      %v225 = vlaneseq
      %v226 = vshrl.u32 %v225, 7
      %v227 = vsub.s32 0, %v226
      %v228 = vrot.slane %v223, %v227
      %230 = vst [vmem:[#allocation2] sm:$0xff] %v228
      %231 = vst [vmem:[#allocation2 + $0x8] sm:$0xff] %v228
      %232 = vst [vmem:[#allocation2 + $0x10] sm:$0xff] %v228
      %233 = vst [vmem:[#allocation2 + $0x18] sm:$0xff] %v228
      %234 = vst [vmem:[#allocation2 + $0x20] sm:$0xff] %v228
      %235 = vst [vmem:[#allocation2 + $0x28] sm:$0xff] %v228
      %236 = vst [vmem:[#allocation2 + $0x30] sm:$0xff] %v228
      %237 = vst [vmem:[#allocation2 + $0x38] sm:$0xff] %v228
      %v238 = vld [vmem:[%s206] sm:$0xf]
      %v239 = vld [vmem:[%s206 + $0x8] sm:$0xf]
      %v240 = vld [vmem:[%s206 + $0x10] sm:$0xf]
      %v241 = vld [vmem:[%s206 + $0x18] sm:$0xf]
      %v242 = vld [vmem:[%s206 + $0x20] sm:$0xf]
      %v243 = vld [vmem:[%s206 + $0x28] sm:$0xf]
      %v244 = vld [vmem:[%s206 + $0x30] sm:$0xf]
      %v245 = vld [vmem:[%s206 + $0x38] sm:$0xf]
      %v246 = vld [vmem:[#allocation2] sm:$0xff]
      %v247 = vld [vmem:[#allocation2 + $0x8] sm:$0xff]
      %v248 = vld [vmem:[#allocation2 + $0x10] sm:$0xff]
      %v249 = vld [vmem:[#allocation2 + $0x18] sm:$0xff]
      %v250 = vld [vmem:[#allocation2 + $0x20] sm:$0xff]
      %v251 = vld [vmem:[#allocation2 + $0x28] sm:$0xff]
      %v252 = vld [vmem:[#allocation2 + $0x30] sm:$0xff]
      %v253 = vld [vmem:[#allocation2 + $0x38] sm:$0xff]
      %v254 = vld [vmem:[%s210] sm:$0xf]
      %v255 = vld [vmem:[%s210 + $0x4] sm:$0xf]
      %v256 = vld [vmem:[%s210 + $0x8] sm:$0xf]
      %v257 = vld [vmem:[%s210 + $0xc] sm:$0xf]
      %v258 = vld [vmem:[%s210 + $0x10] sm:$0xf]
      %v259 = vld [vmem:[%s210 + $0x14] sm:$0xf]
      %v260 = vld [vmem:[%s210 + $0x18] sm:$0xf]
      %v261 = vld [vmem:[%s210 + $0x1c] sm:$0xf]
      %v262 = vld [vmem:[%s210 + $0x20] sm:$0xf]
      %v263 = vld [vmem:[%s210 + $0x24] sm:$0xf]
      %v264 = vld [vmem:[%s210 + $0x28] sm:$0xf]
      %v265 = vld [vmem:[%s210 + $0x2c] sm:$0xf]
      %v266 = vld [vmem:[%s210 + $0x30] sm:$0xf]
      %v267 = vld [vmem:[%s210 + $0x34] sm:$0xf]
      %v268 = vld [vmem:[%s210 + $0x38] sm:$0xf]
      %v269 = vld [vmem:[%s210 + $0x3c] sm:$0xf]
      %v278 = vunpack.c.l.b16 %v238
      %v279 = vunpack.c.l.b16 %v239
      %v280 = vunpack.c.l.b16 %v240
      %v281 = vunpack.c.l.b16 %v241
      %v282 = vunpack.c.l.b16 %v242
      %v283 = vunpack.c.l.b16 %v243
      %v284 = vunpack.c.l.b16 %v244
      %v285 = vunpack.c.l.b16 %v245
      %v286 = vpack.c.b16 %v279, %v278
      %v287 = vpack.c.b16 %v281, %v280
      %v288 = vpack.c.b16 %v283, %v282
      %v289 = vpack.c.b16 %v285, %v284
      %v310 = vunpack.c.l.b16 %v254
      %v311 = vunpack.c.l.b16 %v255
      %v312 = vunpack.c.l.b16 %v256
      %v313 = vunpack.c.l.b16 %v257
      %v314 = vunpack.c.l.b16 %v258
      %v315 = vunpack.c.l.b16 %v259
      %v316 = vunpack.c.l.b16 %v260
      %v317 = vunpack.c.l.b16 %v261
      %v318 = vunpack.c.l.b16 %v262
      %v319 = vunpack.c.l.b16 %v263
      %v320 = vunpack.c.l.b16 %v264
      %v321 = vunpack.c.l.b16 %v265
      %v322 = vunpack.c.l.b16 %v266
      %v323 = vunpack.c.l.b16 %v267
      %v324 = vunpack.c.l.b16 %v268
      %v325 = vunpack.c.l.b16 %v269
      %v326 = vpack.c.b16 %v311, %v310
      %v327 = vpack.c.b16 %v313, %v312
      %v328 = vpack.c.b16 %v315, %v314
      %v329 = vpack.c.b16 %v317, %v316
      %v330 = vpack.c.b16 %v319, %v318
      %v331 = vpack.c.b16 %v321, %v320
      %v332 = vpack.c.b16 %v323, %v322
      %v333 = vpack.c.b16 %v325, %v324
      %342 = vmatprep.subr.bf16.mxu0 0
      %343 = vmatpush1.bf16.msra.mxu0 %v326
      %344 = vmatprep.subr.bf16.mxu0 0
      %345 = vmatpush1.bf16.msra.mxu0 %v327
      %346 = vmatprep.subr.bf16.mxu0 0
      %347 = vmatpush1.bf16.msra.mxu0 %v328
      %348 = vmatprep.subr.bf16.mxu0 0
      %349 = vmatpush1.bf16.msra.mxu0 %v329
      %350 = vmatprep.subr.bf16.mxu0 0
      %351 = vmatpush1.bf16.msra.mxu0 %v330
      %352 = vmatprep.subr.bf16.mxu0 0
      %353 = vmatpush1.bf16.msra.mxu0 %v331
      %354 = vmatprep.subr.bf16.mxu0 0
      %355 = vmatpush1.bf16.msra.mxu0 %v332
      %356 = vmatprep.subr.bf16.mxu0 0
      %357 = vmatpush1.bf16.msra.mxu0 %v333
      %358 = vmatprep.subr.bf16.mxu0 0
      %359 = vmatpush1.bf16.msra.mxu0 0
      %360 = vmatprep.subr.bf16.mxu0 0
      %361 = vmatpush1.bf16.msra.mxu0 0
      %362 = vmatprep.subr.bf16.mxu0 0
      %363 = vmatpush1.bf16.msra.mxu0 0
      %364 = vmatprep.subr.bf16.mxu0 0
      %365 = vmatpush1.bf16.msra.mxu0 0
      %366 = vmatprep.subr.bf16.mxu0 0
      %367 = vmatpush1.bf16.msra.mxu0 0
      %368 = vmatprep.subr.bf16.mxu0 0
      %369 = vmatpush1.bf16.msra.mxu0 0
      %370 = vmatprep.subr.bf16.mxu0 0
      %371 = vmatpush1.bf16.msra.mxu0 0
      %372 = vmatprep.subr.bf16.mxu0 0
      %373 = vmatpush1.bf16.msra.mxu0 0
      %374 = vmatprep.mubr.bf16.mxu0 0
      %375 = vmatmul.mubr.bf16.gmra.mrb[0].mxu0 %v286
      %v376 = vpop.f32.mrb[0].mxu0
      %v377 = vadd.f32 0.0, %v376
      %v378 = vpop.f32.mrb[0].mxu0
      %v379 = vpop.f32.mrb[0].mxu0
      %v380 = vadd.f32 0.0, %v379
      %v381 = vpop.f32.mrb[0].mxu0
      %382 = vmatprep.mubr.bf16.mxu0 0
      %383 = vmatmul.mubr.bf16.gmra.mrb[0].mxu0 %v287
      %v384 = vpop.f32.mrb[0].mxu0
      %v385 = vadd.f32 0.0, %v384
      %v386 = vpop.f32.mrb[0].mxu0
      %v387 = vpop.f32.mrb[0].mxu0
      %v388 = vadd.f32 0.0, %v387
      %v389 = vpop.f32.mrb[0].mxu0
      %390 = vmatprep.mubr.bf16.mxu0 0
      %391 = vmatmul.mubr.bf16.gmra.mrb[0].mxu0 %v288
      %v392 = vpop.f32.mrb[0].mxu0
      %v393 = vadd.f32 0.0, %v392
      %v394 = vpop.f32.mrb[0].mxu0
      %v395 = vpop.f32.mrb[0].mxu0
      %v396 = vadd.f32 0.0, %v395
      %v397 = vpop.f32.mrb[0].mxu0
      %398 = vmatprep.mubr.bf16.mxu0 0
      %399 = vmatmul.mubr.bf16.gmra.mrb[0].mxu0 %v289
      %v400 = vpop.f32.mrb[0].mxu0
      %v401 = vadd.f32 0.0, %v400
      %v402 = vpop.f32.mrb[0].mxu0
      %v403 = vpop.f32.mrb[0].mxu0
      %v404 = vadd.f32 0.0, %v403
      %v405 = vpop.f32.mrb[0].mxu0
      %406 = vdwg.mxu0
      %v407 = vadd.f32 %v246, %v377
      %v408 = vadd.f32 %v247, %v380
      %v409 = vadd.f32 %v248, %v385
      %v410 = vadd.f32 %v249, %v388
      %v411 = vadd.f32 %v250, %v393
      %v412 = vadd.f32 %v251, %v396
      %v413 = vadd.f32 %v252, %v401
      %v414 = vadd.f32 %v253, %v404
      %415 = vst [vmem:[#allocation2] sm:$0xff] %v407
      %416 = vst [vmem:[#allocation2 + $0x8] sm:$0xff] %v408
      %417 = vst [vmem:[#allocation2 + $0x10] sm:$0xff] %v409
      %418 = vst [vmem:[#allocation2 + $0x18] sm:$0xff] %v410
      %419 = vst [vmem:[#allocation2 + $0x20] sm:$0xff] %v411
      %420 = vst [vmem:[#allocation2 + $0x28] sm:$0xff] %v412
      %421 = vst [vmem:[#allocation2 + $0x30] sm:$0xff] %v413
      %422 = vst [vmem:[#allocation2 + $0x38] sm:$0xff] %v414
      %v423 = vld [vmem:[%s206] sm:$0xf]
      %v424 = vld [vmem:[%s206 + $0x4] sm:$0x1]
      %v425 = vld [vmem:[%s206 + $0x8] sm:$0xf]
      %v426 = vld [vmem:[%s206 + $0xc] sm:$0x1]
      %v427 = vld [vmem:[%s206 + $0x10] sm:$0xf]
      %v428 = vld [vmem:[%s206 + $0x14] sm:$0x1]
      %v429 = vld [vmem:[%s206 + $0x18] sm:$0xf]
      %v430 = vld [vmem:[%s206 + $0x1c] sm:$0x1]
      %v431 = vld [vmem:[%s206 + $0x20] sm:$0xf]
      %v432 = vld [vmem:[%s206 + $0x24] sm:$0x1]
      %v433 = vld [vmem:[%s206 + $0x28] sm:$0xf]
      %v434 = vld [vmem:[%s206 + $0x2c] sm:$0x1]
      %v435 = vld [vmem:[%s206 + $0x30] sm:$0xf]
      %v436 = vld [vmem:[%s206 + $0x34] sm:$0x1]
      %v437 = vld [vmem:[%s206 + $0x38] sm:$0xf]
      %v438 = vld [vmem:[%s206 + $0x3c] sm:$0x1]
      %v439 = vld [vmem:[#allocation2] sm:$0xff]
      %v440 = vld [vmem:[#allocation2 + $0x8] sm:$0xff]
      %v441 = vld [vmem:[#allocation2 + $0x10] sm:$0xff]
      %v442 = vld [vmem:[#allocation2 + $0x18] sm:$0xff]
      %v443 = vld [vmem:[#allocation2 + $0x20] sm:$0xff]
      %v444 = vld [vmem:[#allocation2 + $0x28] sm:$0xff]
      %v445 = vld [vmem:[#allocation2 + $0x30] sm:$0xff]
      %v446 = vld [vmem:[#allocation2 + $0x38] sm:$0xff]
      %vm447 = vsmask.f32 3328
      %vm448 = vsmask.f32 7440
      %vm449 = vmor %vm447, %vm448
      %v451 = vshrl.u32 %v423, 16
      %v453 = vrot.slane %v451, 4
      %v454 = vshll.u32 %v423, 16
      %v456 = vrot.slane %v454, 5
      %v457 = vor.u32 %v453, %v456
      %v458 = vrot.slane %v457, 4
      %v460 = vshll.u32 %v424, 16
      %v462 = vrot.slane %v460, 5
      %v463 = vsel %vm449, %v458, %v462
      %v465 = vshrl.u32 %v425, 16
      %v467 = vrot.slane %v465, 4
      %v468 = vshll.u32 %v425, 16
      %v470 = vrot.slane %v468, 5
      %v471 = vor.u32 %v467, %v470
      %v472 = vrot.slane %v471, 4
      %v474 = vshll.u32 %v426, 16
      %v476 = vrot.slane %v474, 5
      %v477 = vsel %vm449, %v472, %v476
      %v479 = vshrl.u32 %v427, 16
      %v481 = vrot.slane %v479, 4
      %v482 = vshll.u32 %v427, 16
      %v484 = vrot.slane %v482, 5
      %v485 = vor.u32 %v481, %v484
      %v486 = vrot.slane %v485, 4
      %v488 = vshll.u32 %v428, 16
      %v490 = vrot.slane %v488, 5
      %v491 = vsel %vm449, %v486, %v490
      %v493 = vshrl.u32 %v429, 16
      %v495 = vrot.slane %v493, 4
      %v496 = vshll.u32 %v429, 16
      %v498 = vrot.slane %v496, 5
      %v499 = vor.u32 %v495, %v498
      %v500 = vrot.slane %v499, 4
      %v502 = vshll.u32 %v430, 16
      %v504 = vrot.slane %v502, 5
      %v505 = vsel %vm449, %v500, %v504
      %v507 = vshrl.u32 %v431, 16
      %v509 = vrot.slane %v507, 4
      %v510 = vshll.u32 %v431, 16
      %v512 = vrot.slane %v510, 5
      %v513 = vor.u32 %v509, %v512
      %v514 = vrot.slane %v513, 4
      %v516 = vshll.u32 %v432, 16
      %v518 = vrot.slane %v516, 5
      %v519 = vsel %vm449, %v514, %v518
      %v521 = vshrl.u32 %v433, 16
      %v523 = vrot.slane %v521, 4
      %v524 = vshll.u32 %v433, 16
      %v526 = vrot.slane %v524, 5
      %v527 = vor.u32 %v523, %v526
      %v528 = vrot.slane %v527, 4
      %v530 = vshll.u32 %v434, 16
      %v532 = vrot.slane %v530, 5
      %v533 = vsel %vm449, %v528, %v532
      %v535 = vshrl.u32 %v435, 16
      %v537 = vrot.slane %v535, 4
      %v538 = vshll.u32 %v435, 16
      %v540 = vrot.slane %v538, 5
      %v541 = vor.u32 %v537, %v540
      %v542 = vrot.slane %v541, 4
      %v544 = vshll.u32 %v436, 16
      %v546 = vrot.slane %v544, 5
      %v547 = vsel %vm449, %v542, %v546
      %v549 = vshrl.u32 %v437, 16
      %v551 = vrot.slane %v549, 4
      %v552 = vshll.u32 %v437, 16
      %v554 = vrot.slane %v552, 5
      %v555 = vor.u32 %v551, %v554
      %v556 = vrot.slane %v555, 4
      %v558 = vshll.u32 %v438, 16
      %v560 = vrot.slane %v558, 5
      %v561 = vsel %vm449, %v556, %v560
      %s562 = scalar_lea.vmem %s210, 64
      %v563 = vld [vmem:[%s562] sm:$0xf]
      %v564 = vld [vmem:[%s562 + $0x4] sm:$0xf]
      %v565 = vld [vmem:[%s562 + $0x8] sm:$0xf]
      %v566 = vld [vmem:[%s562 + $0xc] sm:$0xf]
      %v567 = vld [vmem:[%s562 + $0x10] sm:$0xf]
      %v568 = vld [vmem:[%s562 + $0x14] sm:$0xf]
      %v569 = vld [vmem:[%s562 + $0x18] sm:$0xf]
      %v570 = vld [vmem:[%s562 + $0x1c] sm:$0xf]
      %v571 = vld [vmem:[%s562 + $0x20] sm:$0xf]
      %v572 = vld [vmem:[%s562 + $0x24] sm:$0xf]
      %v573 = vld [vmem:[%s562 + $0x28] sm:$0xf]
      %v574 = vld [vmem:[%s562 + $0x2c] sm:$0xf]
      %v575 = vld [vmem:[%s562 + $0x30] sm:$0xf]
      %v576 = vld [vmem:[%s562 + $0x34] sm:$0xf]
      %v577 = vld [vmem:[%s562 + $0x38] sm:$0xf]
      %v578 = vld [vmem:[%s562 + $0x3c] sm:$0xf]
      %v579 = vunpack.c.l.b16 %v463
      %v580 = vunpack.c.l.b16 %v477
      %v581 = vunpack.c.l.b16 %v491
      %v582 = vunpack.c.l.b16 %v505
      %v583 = vunpack.c.l.b16 %v519
      %v584 = vunpack.c.l.b16 %v533
      %v585 = vunpack.c.l.b16 %v547
      %v586 = vunpack.c.l.b16 %v561
      %v587 = vpack.c.b16 %v580, %v579
      %v588 = vpack.c.b16 %v582, %v581
      %v589 = vpack.c.b16 %v584, %v583
      %v590 = vpack.c.b16 %v586, %v585
      %v611 = vunpack.c.l.b16 %v563
      %v612 = vunpack.c.l.b16 %v564
      %v613 = vunpack.c.l.b16 %v565
      %v614 = vunpack.c.l.b16 %v566
      %v615 = vunpack.c.l.b16 %v567
      %v616 = vunpack.c.l.b16 %v568
      %v617 = vunpack.c.l.b16 %v569
      %v618 = vunpack.c.l.b16 %v570
      %v619 = vunpack.c.l.b16 %v571
      %v620 = vunpack.c.l.b16 %v572
      %v621 = vunpack.c.l.b16 %v573
      %v622 = vunpack.c.l.b16 %v574
      %v623 = vunpack.c.l.b16 %v575
      %v624 = vunpack.c.l.b16 %v576
      %v625 = vunpack.c.l.b16 %v577
      %v626 = vunpack.c.l.b16 %v578
      %v627 = vpack.c.b16 %v612, %v611
      %v628 = vpack.c.b16 %v614, %v613
      %v629 = vpack.c.b16 %v616, %v615
      %v630 = vpack.c.b16 %v618, %v617
      %v631 = vpack.c.b16 %v620, %v619
      %v632 = vpack.c.b16 %v622, %v621
      %v633 = vpack.c.b16 %v624, %v623
      %v634 = vpack.c.b16 %v626, %v625
      %643 = vmatprep.subr.bf16.mxu0 0
      %644 = vmatpush1.bf16.msra.mxu0 %v627
      %645 = vmatprep.subr.bf16.mxu0 0
      %646 = vmatpush1.bf16.msra.mxu0 %v628
      %647 = vmatprep.subr.bf16.mxu0 0
      %648 = vmatpush1.bf16.msra.mxu0 %v629
      %649 = vmatprep.subr.bf16.mxu0 0
      %650 = vmatpush1.bf16.msra.mxu0 %v630
      %651 = vmatprep.subr.bf16.mxu0 0
      %652 = vmatpush1.bf16.msra.mxu0 %v631
      %653 = vmatprep.subr.bf16.mxu0 0
      %654 = vmatpush1.bf16.msra.mxu0 %v632
      %655 = vmatprep.subr.bf16.mxu0 0
      %656 = vmatpush1.bf16.msra.mxu0 %v633
      %657 = vmatprep.subr.bf16.mxu0 0
      %658 = vmatpush1.bf16.msra.mxu0 %v634
      %659 = vmatprep.subr.bf16.mxu0 0
      %660 = vmatpush1.bf16.msra.mxu0 0
      %661 = vmatprep.subr.bf16.mxu0 0
      %662 = vmatpush1.bf16.msra.mxu0 0
      %663 = vmatprep.subr.bf16.mxu0 0
      %664 = vmatpush1.bf16.msra.mxu0 0
      %665 = vmatprep.subr.bf16.mxu0 0
      %666 = vmatpush1.bf16.msra.mxu0 0
      %667 = vmatprep.subr.bf16.mxu0 0
      %668 = vmatpush1.bf16.msra.mxu0 0
      %669 = vmatprep.subr.bf16.mxu0 0
      %670 = vmatpush1.bf16.msra.mxu0 0
      %671 = vmatprep.subr.bf16.mxu0 0
      %672 = vmatpush1.bf16.msra.mxu0 0
      %673 = vmatprep.subr.bf16.mxu0 0
      %674 = vmatpush1.bf16.msra.mxu0 0
      %675 = vmatprep.mubr.bf16.mxu0 0
      %676 = vmatmul.mubr.bf16.gmra.mrb[0].mxu0 %v587
      %v677 = vpop.f32.mrb[0].mxu0
      %v678 = vadd.f32 0.0, %v677
      %v679 = vpop.f32.mrb[0].mxu0
      %v680 = vpop.f32.mrb[0].mxu0
      %v681 = vadd.f32 0.0, %v680
      %v682 = vpop.f32.mrb[0].mxu0
      %683 = vmatprep.mubr.bf16.mxu0 0
      %684 = vmatmul.mubr.bf16.gmra.mrb[0].mxu0 %v588
      %v685 = vpop.f32.mrb[0].mxu0
      %v686 = vadd.f32 0.0, %v685
      %v687 = vpop.f32.mrb[0].mxu0
      %v688 = vpop.f32.mrb[0].mxu0
      %v689 = vadd.f32 0.0, %v688
      %v690 = vpop.f32.mrb[0].mxu0
      %691 = vmatprep.mubr.bf16.mxu0 0
      %692 = vmatmul.mubr.bf16.gmra.mrb[0].mxu0 %v589
      %v693 = vpop.f32.mrb[0].mxu0
      %v694 = vadd.f32 0.0, %v693
      %v695 = vpop.f32.mrb[0].mxu0
      %v696 = vpop.f32.mrb[0].mxu0
      %v697 = vadd.f32 0.0, %v696
      %v698 = vpop.f32.mrb[0].mxu0
      %699 = vmatprep.mubr.bf16.mxu0 0
      %700 = vmatmul.mubr.bf16.gmra.mrb[0].mxu0 %v590
      %v701 = vpop.f32.mrb[0].mxu0
      %v702 = vadd.f32 0.0, %v701
      %v703 = vpop.f32.mrb[0].mxu0
      %v704 = vpop.f32.mrb[0].mxu0
      %v705 = vadd.f32 0.0, %v704
      %v706 = vpop.f32.mrb[0].mxu0
      %707 = vdwg.mxu0
      %v708 = vadd.f32 %v439, %v678
      %v709 = vadd.f32 %v440, %v681
      %v710 = vadd.f32 %v441, %v686
      %v711 = vadd.f32 %v442, %v689
      %v712 = vadd.f32 %v443, %v694
      %v713 = vadd.f32 %v444, %v697
      %v714 = vadd.f32 %v445, %v702
      %v715 = vadd.f32 %v446, %v705
      %716 = vst [vmem:[#allocation2] sm:$0xff] %v708
      %717 = vst [vmem:[#allocation2 + $0x8] sm:$0xff] %v709
      %718 = vst [vmem:[#allocation2 + $0x10] sm:$0xff] %v710
      %719 = vst [vmem:[#allocation2 + $0x18] sm:$0xff] %v711
      %720 = vst [vmem:[#allocation2 + $0x20] sm:$0xff] %v712
      %721 = vst [vmem:[#allocation2 + $0x28] sm:$0xff] %v713
      %722 = vst [vmem:[#allocation2 + $0x30] sm:$0xff] %v714
      %723 = vst [vmem:[#allocation2 + $0x38] sm:$0xff] %v715
      %v724 = vld [vmem:[%s206] sm:$0xe]
      %v725 = vld [vmem:[%s206 + $0x4] sm:$0x1]
      %v726 = vld [vmem:[%s206 + $0x8] sm:$0xe]
      %v727 = vld [vmem:[%s206 + $0xc] sm:$0x1]
      %v728 = vld [vmem:[%s206 + $0x10] sm:$0xe]
      %v729 = vld [vmem:[%s206 + $0x14] sm:$0x1]
      %v730 = vld [vmem:[%s206 + $0x18] sm:$0xe]
      %v731 = vld [vmem:[%s206 + $0x1c] sm:$0x1]
      %v732 = vld [vmem:[%s206 + $0x20] sm:$0xe]
      %v733 = vld [vmem:[%s206 + $0x24] sm:$0x1]
      %v734 = vld [vmem:[%s206 + $0x28] sm:$0xe]
      %v735 = vld [vmem:[%s206 + $0x2c] sm:$0x1]
      %v736 = vld [vmem:[%s206 + $0x30] sm:$0xe]
      %v737 = vld [vmem:[%s206 + $0x34] sm:$0x1]
      %v738 = vld [vmem:[%s206 + $0x38] sm:$0xe]
      %v739 = vld [vmem:[%s206 + $0x3c] sm:$0x1]
      %v740 = vld [vmem:[#allocation2] sm:$0xff]
      %v741 = vld [vmem:[#allocation2 + $0x8] sm:$0xff]
      %v742 = vld [vmem:[#allocation2 + $0x10] sm:$0xff]
      %v743 = vld [vmem:[#allocation2 + $0x18] sm:$0xff]
      %v744 = vld [vmem:[#allocation2 + $0x20] sm:$0xff]
      %v745 = vld [vmem:[#allocation2 + $0x28] sm:$0xff]
      %v746 = vld [vmem:[#allocation2 + $0x30] sm:$0xff]
      %v747 = vld [vmem:[#allocation2 + $0x38] sm:$0xff]
      %vm764 = vcmask 1042432
      %vm765 = vcmask 1046532
      %vm766 = vmor %vm764, %vm765
      %v767 = vrot.slane %v724, 5
      %v768 = vrot.slane %v767, 4
      %v769 = vrot.slane %v725, 5
      %v770 = vsel %vm766, %v768, %v769
      %v771 = vrot.slane %v726, 5
      %v772 = vrot.slane %v771, 4
      %v773 = vrot.slane %v727, 5
      %v774 = vsel %vm766, %v772, %v773
      %v775 = vrot.slane %v728, 5
      %v776 = vrot.slane %v775, 4
      %v777 = vrot.slane %v729, 5
      %v778 = vsel %vm766, %v776, %v777
      %v779 = vrot.slane %v730, 5
      %v780 = vrot.slane %v779, 4
      %v781 = vrot.slane %v731, 5
      %v782 = vsel %vm766, %v780, %v781
      %v783 = vrot.slane %v732, 5
      %v784 = vrot.slane %v783, 4
      %v785 = vrot.slane %v733, 5
      %v786 = vsel %vm766, %v784, %v785
      %v787 = vrot.slane %v734, 5
      %v788 = vrot.slane %v787, 4
      %v789 = vrot.slane %v735, 5
      %v790 = vsel %vm766, %v788, %v789
      %v791 = vrot.slane %v736, 5
      %v792 = vrot.slane %v791, 4
      %v793 = vrot.slane %v737, 5
      %v794 = vsel %vm766, %v792, %v793
      %v795 = vrot.slane %v738, 5
      %v796 = vrot.slane %v795, 4
      %v797 = vrot.slane %v739, 5
      %v798 = vsel %vm766, %v796, %v797
      %s799 = scalar_lea.vmem %s210, 128
      %v800 = vld [vmem:[%s799] sm:$0xf]
      %v801 = vld [vmem:[%s799 + $0x4] sm:$0xf]
      %v802 = vld [vmem:[%s799 + $0x8] sm:$0xf]
      %v803 = vld [vmem:[%s799 + $0xc] sm:$0xf]
      %v804 = vld [vmem:[%s799 + $0x10] sm:$0xf]
      %v805 = vld [vmem:[%s799 + $0x14] sm:$0xf]
      %v806 = vld [vmem:[%s799 + $0x18] sm:$0xf]
      %v807 = vld [vmem:[%s799 + $0x1c] sm:$0xf]
      %v808 = vld [vmem:[%s799 + $0x20] sm:$0xf]
      %v809 = vld [vmem:[%s799 + $0x24] sm:$0xf]
      %v810 = vld [vmem:[%s799 + $0x28] sm:$0xf]
      %v811 = vld [vmem:[%s799 + $0x2c] sm:$0xf]
      %v812 = vld [vmem:[%s799 + $0x30] sm:$0xf]
      %v813 = vld [vmem:[%s799 + $0x34] sm:$0xf]
      %v814 = vld [vmem:[%s799 + $0x38] sm:$0xf]
      %v815 = vld [vmem:[%s799 + $0x3c] sm:$0xf]
      %v816 = vunpack.c.l.b16 %v770
      %v817 = vunpack.c.l.b16 %v774
      %v818 = vunpack.c.l.b16 %v778
      %v819 = vunpack.c.l.b16 %v782
      %v820 = vunpack.c.l.b16 %v786
      %v821 = vunpack.c.l.b16 %v790
      %v822 = vunpack.c.l.b16 %v794
      %v823 = vunpack.c.l.b16 %v798
      %v824 = vpack.c.b16 %v817, %v816
      %v825 = vpack.c.b16 %v819, %v818
      %v826 = vpack.c.b16 %v821, %v820
      %v827 = vpack.c.b16 %v823, %v822
      %v848 = vunpack.c.l.b16 %v800
      %v849 = vunpack.c.l.b16 %v801
      %v850 = vunpack.c.l.b16 %v802
      %v851 = vunpack.c.l.b16 %v803
      %v852 = vunpack.c.l.b16 %v804
      %v853 = vunpack.c.l.b16 %v805
      %v854 = vunpack.c.l.b16 %v806
      %v855 = vunpack.c.l.b16 %v807
      %v856 = vunpack.c.l.b16 %v808
      %v857 = vunpack.c.l.b16 %v809
      %v858 = vunpack.c.l.b16 %v810
      %v859 = vunpack.c.l.b16 %v811
      %v860 = vunpack.c.l.b16 %v812
      %v861 = vunpack.c.l.b16 %v813
      %v862 = vunpack.c.l.b16 %v814
      %v863 = vunpack.c.l.b16 %v815
      %v864 = vpack.c.b16 %v849, %v848
      %v865 = vpack.c.b16 %v851, %v850
      %v866 = vpack.c.b16 %v853, %v852
      %v867 = vpack.c.b16 %v855, %v854
      %v868 = vpack.c.b16 %v857, %v856
      %v869 = vpack.c.b16 %v859, %v858
      %v870 = vpack.c.b16 %v861, %v860
      %v871 = vpack.c.b16 %v863, %v862
      %880 = vmatprep.subr.bf16.mxu0 0
      %881 = vmatpush1.bf16.msra.mxu0 %v864
      %882 = vmatprep.subr.bf16.mxu0 0
      %883 = vmatpush1.bf16.msra.mxu0 %v865
      %884 = vmatprep.subr.bf16.mxu0 0
      %885 = vmatpush1.bf16.msra.mxu0 %v866
      %886 = vmatprep.subr.bf16.mxu0 0
      %887 = vmatpush1.bf16.msra.mxu0 %v867
      %888 = vmatprep.subr.bf16.mxu0 0
      %889 = vmatpush1.bf16.msra.mxu0 %v868
      %890 = vmatprep.subr.bf16.mxu0 0
      %891 = vmatpush1.bf16.msra.mxu0 %v869
      %892 = vmatprep.subr.bf16.mxu0 0
      %893 = vmatpush1.bf16.msra.mxu0 %v870
      %894 = vmatprep.subr.bf16.mxu0 0
      %895 = vmatpush1.bf16.msra.mxu0 %v871
      %896 = vmatprep.subr.bf16.mxu0 0
      %897 = vmatpush1.bf16.msra.mxu0 0
      %898 = vmatprep.subr.bf16.mxu0 0
      %899 = vmatpush1.bf16.msra.mxu0 0
      %900 = vmatprep.subr.bf16.mxu0 0
      %901 = vmatpush1.bf16.msra.mxu0 0
      %902 = vmatprep.subr.bf16.mxu0 0
      %903 = vmatpush1.bf16.msra.mxu0 0
      %904 = vmatprep.subr.bf16.mxu0 0
      %905 = vmatpush1.bf16.msra.mxu0 0
      %906 = vmatprep.subr.bf16.mxu0 0
      %907 = vmatpush1.bf16.msra.mxu0 0
      %908 = vmatprep.subr.bf16.mxu0 0
      %909 = vmatpush1.bf16.msra.mxu0 0
      %910 = vmatprep.subr.bf16.mxu0 0
      %911 = vmatpush1.bf16.msra.mxu0 0
      %912 = vmatprep.mubr.bf16.mxu0 0
      %913 = vmatmul.mubr.bf16.gmra.mrb[0].mxu0 %v824
      %v914 = vpop.f32.mrb[0].mxu0
      %v915 = vadd.f32 0.0, %v914
      %v916 = vpop.f32.mrb[0].mxu0
      %v917 = vpop.f32.mrb[0].mxu0
      %v918 = vadd.f32 0.0, %v917
      %v919 = vpop.f32.mrb[0].mxu0
      %920 = vmatprep.mubr.bf16.mxu0 0
      %921 = vmatmul.mubr.bf16.gmra.mrb[0].mxu0 %v825
      %v922 = vpop.f32.mrb[0].mxu0
      %v923 = vadd.f32 0.0, %v922
      %v924 = vpop.f32.mrb[0].mxu0
      %v925 = vpop.f32.mrb[0].mxu0
      %v926 = vadd.f32 0.0, %v925
      %v927 = vpop.f32.mrb[0].mxu0
      %928 = vmatprep.mubr.bf16.mxu0 0
      %929 = vmatmul.mubr.bf16.gmra.mrb[0].mxu0 %v826
      %v930 = vpop.f32.mrb[0].mxu0
      %v931 = vadd.f32 0.0, %v930
      %v932 = vpop.f32.mrb[0].mxu0
      %v933 = vpop.f32.mrb[0].mxu0
      %v934 = vadd.f32 0.0, %v933
      %v935 = vpop.f32.mrb[0].mxu0
      %936 = vmatprep.mubr.bf16.mxu0 0
      %937 = vmatmul.mubr.bf16.gmra.mrb[0].mxu0 %v827
      %v938 = vpop.f32.mrb[0].mxu0
      %v939 = vadd.f32 0.0, %v938
      %v940 = vpop.f32.mrb[0].mxu0
      %v941 = vpop.f32.mrb[0].mxu0
      %v942 = vadd.f32 0.0, %v941
      %v943 = vpop.f32.mrb[0].mxu0
      %944 = vdwg.mxu0
      %v945 = vadd.f32 %v740, %v915
      %v946 = vadd.f32 %v741, %v918
      %v947 = vadd.f32 %v742, %v923
      %v948 = vadd.f32 %v743, %v926
      %v949 = vadd.f32 %v744, %v931
      %v950 = vadd.f32 %v745, %v934
      %v951 = vadd.f32 %v746, %v939
      %v952 = vadd.f32 %v747, %v942
      %953 = vst [vmem:[#allocation2] sm:$0xff] %v945
      %954 = vst [vmem:[#allocation2 + $0x8] sm:$0xff] %v946
      %955 = vst [vmem:[#allocation2 + $0x10] sm:$0xff] %v947
      %956 = vst [vmem:[#allocation2 + $0x18] sm:$0xff] %v948
      %957 = vst [vmem:[#allocation2 + $0x20] sm:$0xff] %v949
      %958 = vst [vmem:[#allocation2 + $0x28] sm:$0xff] %v950
      %959 = vst [vmem:[#allocation2 + $0x30] sm:$0xff] %v951
      %960 = vst [vmem:[#allocation2 + $0x38] sm:$0xff] %v952
      %s961 = scalar_lea.vmem %s206, 8
      %v962 = vld [vmem:[%s961] sm:$0xf]
      %v963 = vld [vmem:[%s961 + $0x8] sm:$0xf]
      %v964 = vld [vmem:[%s961 + $0x10] sm:$0xf]
      %v965 = vld [vmem:[%s961 + $0x18] sm:$0xf]
      %v966 = vld [vmem:[%s961 + $0x20] sm:$0xf]
      %v967 = vld [vmem:[%s961 + $0x28] sm:$0xf]
      %v968 = vld [vmem:[%s961 + $0x30] sm:$0xf]
      %v969 = vld [vmem:[%s961 + $0x38] sm:$0xf]
      %v970 = vld [vmem:[#allocation2] sm:$0xff]
      %v971 = vld [vmem:[#allocation2 + $0x8] sm:$0xff]
      %v972 = vld [vmem:[#allocation2 + $0x10] sm:$0xff]
      %v973 = vld [vmem:[#allocation2 + $0x18] sm:$0xff]
      %v974 = vld [vmem:[#allocation2 + $0x20] sm:$0xff]
      %v975 = vld [vmem:[#allocation2 + $0x28] sm:$0xff]
      %v976 = vld [vmem:[#allocation2 + $0x30] sm:$0xff]
      %v977 = vld [vmem:[#allocation2 + $0x38] sm:$0xff]
      %s978 = scalar_lea.vmem %s210, 192
      %v979 = vld [vmem:[%s978] sm:$0xf]
      %v980 = vld [vmem:[%s978 + $0x4] sm:$0xf]
      %v981 = vld [vmem:[%s978 + $0x8] sm:$0xf]
      %v982 = vld [vmem:[%s978 + $0xc] sm:$0xf]
      %v983 = vld [vmem:[%s978 + $0x10] sm:$0xf]
      %v984 = vld [vmem:[%s978 + $0x14] sm:$0xf]
      %v985 = vld [vmem:[%s978 + $0x18] sm:$0xf]
      %v986 = vld [vmem:[%s978 + $0x1c] sm:$0xf]
      %v987 = vld [vmem:[%s978 + $0x20] sm:$0xf]
      %v988 = vld [vmem:[%s978 + $0x24] sm:$0xf]
      %v989 = vld [vmem:[%s978 + $0x28] sm:$0xf]
      %v990 = vld [vmem:[%s978 + $0x2c] sm:$0xf]
      %v991 = vld [vmem:[%s978 + $0x30] sm:$0xf]
      %v992 = vld [vmem:[%s978 + $0x34] sm:$0xf]
      %v993 = vld [vmem:[%s978 + $0x38] sm:$0xf]
      %v994 = vld [vmem:[%s978 + $0x3c] sm:$0xf]
      %v1003 = vunpack.c.l.b16 %v962
      %v1004 = vunpack.c.l.b16 %v963
      %v1005 = vunpack.c.l.b16 %v964
      %v1006 = vunpack.c.l.b16 %v965
      %v1007 = vunpack.c.l.b16 %v966
      %v1008 = vunpack.c.l.b16 %v967
      %v1009 = vunpack.c.l.b16 %v968
      %v1010 = vunpack.c.l.b16 %v969
      %v1011 = vpack.c.b16 %v1004, %v1003
      %v1012 = vpack.c.b16 %v1006, %v1005
      %v1013 = vpack.c.b16 %v1008, %v1007
      %v1014 = vpack.c.b16 %v1010, %v1009
      %v1035 = vunpack.c.l.b16 %v979
      %v1036 = vunpack.c.l.b16 %v980
      %v1037 = vunpack.c.l.b16 %v981
      %v1038 = vunpack.c.l.b16 %v982
      %v1039 = vunpack.c.l.b16 %v983
      %v1040 = vunpack.c.l.b16 %v984
      %v1041 = vunpack.c.l.b16 %v985
      %v1042 = vunpack.c.l.b16 %v986
      %v1043 = vunpack.c.l.b16 %v987
      %v1044 = vunpack.c.l.b16 %v988
      %v1045 = vunpack.c.l.b16 %v989
      %v1046 = vunpack.c.l.b16 %v990
      %v1047 = vunpack.c.l.b16 %v991
      %v1048 = vunpack.c.l.b16 %v992
      %v1049 = vunpack.c.l.b16 %v993
      %v1050 = vunpack.c.l.b16 %v994
      %v1051 = vpack.c.b16 %v1036, %v1035
      %v1052 = vpack.c.b16 %v1038, %v1037
      %v1053 = vpack.c.b16 %v1040, %v1039
      %v1054 = vpack.c.b16 %v1042, %v1041
      %v1055 = vpack.c.b16 %v1044, %v1043
      %v1056 = vpack.c.b16 %v1046, %v1045
      %v1057 = vpack.c.b16 %v1048, %v1047
      %v1058 = vpack.c.b16 %v1050, %v1049
      %1067 = vmatprep.subr.bf16.mxu0 0
      %1068 = vmatpush1.bf16.msra.mxu0 %v1051
      %1069 = vmatprep.subr.bf16.mxu0 0
      %1070 = vmatpush1.bf16.msra.mxu0 %v1052
      %1071 = vmatprep.subr.bf16.mxu0 0
      %1072 = vmatpush1.bf16.msra.mxu0 %v1053
      %1073 = vmatprep.subr.bf16.mxu0 0
      %1074 = vmatpush1.bf16.msra.mxu0 %v1054
      %1075 = vmatprep.subr.bf16.mxu0 0
      %1076 = vmatpush1.bf16.msra.mxu0 %v1055
      %1077 = vmatprep.subr.bf16.mxu0 0
      %1078 = vmatpush1.bf16.msra.mxu0 %v1056
      %1079 = vmatprep.subr.bf16.mxu0 0
      %1080 = vmatpush1.bf16.msra.mxu0 %v1057
      %1081 = vmatprep.subr.bf16.mxu0 0
      %1082 = vmatpush1.bf16.msra.mxu0 %v1058
      %1083 = vmatprep.subr.bf16.mxu0 0
      %1084 = vmatpush1.bf16.msra.mxu0 0
      %1085 = vmatprep.subr.bf16.mxu0 0
      %1086 = vmatpush1.bf16.msra.mxu0 0
      %1087 = vmatprep.subr.bf16.mxu0 0
      %1088 = vmatpush1.bf16.msra.mxu0 0
      %1089 = vmatprep.subr.bf16.mxu0 0
      %1090 = vmatpush1.bf16.msra.mxu0 0
      %1091 = vmatprep.subr.bf16.mxu0 0
      %1092 = vmatpush1.bf16.msra.mxu0 0
      %1093 = vmatprep.subr.bf16.mxu0 0
      %1094 = vmatpush1.bf16.msra.mxu0 0
      %1095 = vmatprep.subr.bf16.mxu0 0
      %1096 = vmatpush1.bf16.msra.mxu0 0
      %1097 = vmatprep.subr.bf16.mxu0 0
      %1098 = vmatpush1.bf16.msra.mxu0 0
      %1099 = vmatprep.mubr.bf16.mxu0 0
      %1100 = vmatmul.mubr.bf16.gmra.mrb[0].mxu0 %v1011
      %v1101 = vpop.f32.mrb[0].mxu0
      %v1102 = vadd.f32 0.0, %v1101
      %v1103 = vpop.f32.mrb[0].mxu0
      %v1104 = vpop.f32.mrb[0].mxu0
      %v1105 = vadd.f32 0.0, %v1104
      %v1106 = vpop.f32.mrb[0].mxu0
      %1107 = vmatprep.mubr.bf16.mxu0 0
      %1108 = vmatmul.mubr.bf16.gmra.mrb[0].mxu0 %v1012
      %v1109 = vpop.f32.mrb[0].mxu0
      %v1110 = vadd.f32 0.0, %v1109
      %v1111 = vpop.f32.mrb[0].mxu0
      %v1112 = vpop.f32.mrb[0].mxu0
      %v1113 = vadd.f32 0.0, %v1112
      %v1114 = vpop.f32.mrb[0].mxu0
      %1115 = vmatprep.mubr.bf16.mxu0 0
      %1116 = vmatmul.mubr.bf16.gmra.mrb[0].mxu0 %v1013
      %v1117 = vpop.f32.mrb[0].mxu0
      %v1118 = vadd.f32 0.0, %v1117
      %v1119 = vpop.f32.mrb[0].mxu0
      %v1120 = vpop.f32.mrb[0].mxu0
      %v1121 = vadd.f32 0.0, %v1120
      %v1122 = vpop.f32.mrb[0].mxu0
      %1123 = vmatprep.mubr.bf16.mxu0 0
      %1124 = vmatmul.mubr.bf16.gmra.mrb[0].mxu0 %v1014
      %v1125 = vpop.f32.mrb[0].mxu0
      %v1126 = vadd.f32 0.0, %v1125
      %v1127 = vpop.f32.mrb[0].mxu0
      %v1128 = vpop.f32.mrb[0].mxu0
      %v1129 = vadd.f32 0.0, %v1128
      %v1130 = vpop.f32.mrb[0].mxu0
      %1131 = vdwg.mxu0
      %v1132 = vadd.f32 %v970, %v1102
      %v1133 = vadd.f32 %v971, %v1105
      %v1134 = vadd.f32 %v972, %v1110
      %v1135 = vadd.f32 %v973, %v1113
      %v1136 = vadd.f32 %v974, %v1118
      %v1137 = vadd.f32 %v975, %v1121
      %v1138 = vadd.f32 %v976, %v1126
      %v1139 = vadd.f32 %v977, %v1129
      %1140 = vst [vmem:[#allocation2] sm:$0xff] %v1132
      %1141 = vst [vmem:[#allocation2 + $0x8] sm:$0xff] %v1133
      %1142 = vst [vmem:[#allocation2 + $0x10] sm:$0xff] %v1134
      %1143 = vst [vmem:[#allocation2 + $0x18] sm:$0xff] %v1135
      %1144 = vst [vmem:[#allocation2 + $0x20] sm:$0xff] %v1136
      %1145 = vst [vmem:[#allocation2 + $0x28] sm:$0xff] %v1137
      %1146 = vst [vmem:[#allocation2 + $0x30] sm:$0xff] %v1138
      %1147 = vst [vmem:[#allocation2 + $0x38] sm:$0xff] %v1139
      %v1148 = vld [vmem:[%s961] sm:$0xf]
      %v1149 = vld [vmem:[%s961 + $0x4] sm:$0x1]
      %v1150 = vld [vmem:[%s961 + $0x8] sm:$0xf]
      %v1151 = vld [vmem:[%s961 + $0xc] sm:$0x1]
      %v1152 = vld [vmem:[%s961 + $0x10] sm:$0xf]
      %v1153 = vld [vmem:[%s961 + $0x14] sm:$0x1]
      %v1154 = vld [vmem:[%s961 + $0x18] sm:$0xf]
      %v1155 = vld [vmem:[%s961 + $0x1c] sm:$0x1]
      %v1156 = vld [vmem:[%s961 + $0x20] sm:$0xf]
      %v1157 = vld [vmem:[%s961 + $0x24] sm:$0x1]
      %v1158 = vld [vmem:[%s961 + $0x28] sm:$0xf]
      %v1159 = vld [vmem:[%s961 + $0x2c] sm:$0x1]
      %v1160 = vld [vmem:[%s961 + $0x30] sm:$0xf]
      %v1161 = vld [vmem:[%s961 + $0x34] sm:$0x1]
      %v1162 = vld [vmem:[%s961 + $0x38] sm:$0xf]
      %v1163 = vld [vmem:[%s961 + $0x3c] sm:$0x1]
      %v1164 = vld [vmem:[#allocation2] sm:$0xff]
      %v1165 = vld [vmem:[#allocation2 + $0x8] sm:$0xff]
      %v1166 = vld [vmem:[#allocation2 + $0x10] sm:$0xff]
      %v1167 = vld [vmem:[#allocation2 + $0x18] sm:$0xff]
      %v1168 = vld [vmem:[#allocation2 + $0x20] sm:$0xff]
      %v1169 = vld [vmem:[#allocation2 + $0x28] sm:$0xff]
      %v1170 = vld [vmem:[#allocation2 + $0x30] sm:$0xff]
      %v1171 = vld [vmem:[#allocation2 + $0x38] sm:$0xff]
      %v1173 = vshrl.u32 %v1148, 16
      %v1175 = vrot.slane %v1173, 4
      %v1176 = vshll.u32 %v1148, 16
      %v1178 = vrot.slane %v1176, 5
      %v1179 = vor.u32 %v1175, %v1178
      %v1180 = vrot.slane %v1179, 4
      %v1182 = vshll.u32 %v1149, 16
      %v1184 = vrot.slane %v1182, 5
      %v1185 = vsel %vm449, %v1180, %v1184
      %v1187 = vshrl.u32 %v1150, 16
      %v1189 = vrot.slane %v1187, 4
      %v1190 = vshll.u32 %v1150, 16
      %v1192 = vrot.slane %v1190, 5
      %v1193 = vor.u32 %v1189, %v1192
      %v1194 = vrot.slane %v1193, 4
      %v1196 = vshll.u32 %v1151, 16
      %v1198 = vrot.slane %v1196, 5
      %v1199 = vsel %vm449, %v1194, %v1198
      %v1201 = vshrl.u32 %v1152, 16
      %v1203 = vrot.slane %v1201, 4
      %v1204 = vshll.u32 %v1152, 16
      %v1206 = vrot.slane %v1204, 5
      %v1207 = vor.u32 %v1203, %v1206
      %v1208 = vrot.slane %v1207, 4
      %v1210 = vshll.u32 %v1153, 16
      %v1212 = vrot.slane %v1210, 5
      %v1213 = vsel %vm449, %v1208, %v1212
      %v1215 = vshrl.u32 %v1154, 16
      %v1217 = vrot.slane %v1215, 4
      %v1218 = vshll.u32 %v1154, 16
      %v1220 = vrot.slane %v1218, 5
      %v1221 = vor.u32 %v1217, %v1220
      %v1222 = vrot.slane %v1221, 4
      %v1224 = vshll.u32 %v1155, 16
      %v1226 = vrot.slane %v1224, 5
      %v1227 = vsel %vm449, %v1222, %v1226
      %v1229 = vshrl.u32 %v1156, 16
      %v1231 = vrot.slane %v1229, 4
      %v1232 = vshll.u32 %v1156, 16
      %v1234 = vrot.slane %v1232, 5
      %v1235 = vor.u32 %v1231, %v1234
      %v1236 = vrot.slane %v1235, 4
      %v1238 = vshll.u32 %v1157, 16
      %v1240 = vrot.slane %v1238, 5
      %v1241 = vsel %vm449, %v1236, %v1240
      %v1243 = vshrl.u32 %v1158, 16
      %v1245 = vrot.slane %v1243, 4
      %v1246 = vshll.u32 %v1158, 16
      %v1248 = vrot.slane %v1246, 5
      %v1249 = vor.u32 %v1245, %v1248
      %v1250 = vrot.slane %v1249, 4
      %v1252 = vshll.u32 %v1159, 16
      %v1254 = vrot.slane %v1252, 5
      %v1255 = vsel %vm449, %v1250, %v1254
      %v1257 = vshrl.u32 %v1160, 16
      %v1259 = vrot.slane %v1257, 4
      %v1260 = vshll.u32 %v1160, 16
      %v1262 = vrot.slane %v1260, 5
      %v1263 = vor.u32 %v1259, %v1262
      %v1264 = vrot.slane %v1263, 4
      %v1266 = vshll.u32 %v1161, 16
      %v1268 = vrot.slane %v1266, 5
      %v1269 = vsel %vm449, %v1264, %v1268
      %v1271 = vshrl.u32 %v1162, 16
      %v1273 = vrot.slane %v1271, 4
      %v1274 = vshll.u32 %v1162, 16
      %v1276 = vrot.slane %v1274, 5
      %v1277 = vor.u32 %v1273, %v1276
      %v1278 = vrot.slane %v1277, 4
      %v1280 = vshll.u32 %v1163, 16
      %v1282 = vrot.slane %v1280, 5
      %v1283 = vsel %vm449, %v1278, %v1282
      %s1284 = scalar_lea.vmem %s210, 256
      %v1285 = vld [vmem:[%s1284] sm:$0xf]
      %v1286 = vld [vmem:[%s1284 + $0x4] sm:$0xf]
      %v1287 = vld [vmem:[%s1284 + $0x8] sm:$0xf]
      %v1288 = vld [vmem:[%s1284 + $0xc] sm:$0xf]
      %v1289 = vld [vmem:[%s1284 + $0x10] sm:$0xf]
      %v1290 = vld [vmem:[%s1284 + $0x14] sm:$0xf]
      %v1291 = vld [vmem:[%s1284 + $0x18] sm:$0xf]
      %v1292 = vld [vmem:[%s1284 + $0x1c] sm:$0xf]
      %v1293 = vld [vmem:[%s1284 + $0x20] sm:$0xf]
      %v1294 = vld [vmem:[%s1284 + $0x24] sm:$0xf]
      %v1295 = vld [vmem:[%s1284 + $0x28] sm:$0xf]
      %v1296 = vld [vmem:[%s1284 + $0x2c] sm:$0xf]
      %v1297 = vld [vmem:[%s1284 + $0x30] sm:$0xf]
      %v1298 = vld [vmem:[%s1284 + $0x34] sm:$0xf]
      %v1299 = vld [vmem:[%s1284 + $0x38] sm:$0xf]
      %v1300 = vld [vmem:[%s1284 + $0x3c] sm:$0xf]
      %v1301 = vunpack.c.l.b16 %v1185
      %v1302 = vunpack.c.l.b16 %v1199
      %v1303 = vunpack.c.l.b16 %v1213
      %v1304 = vunpack.c.l.b16 %v1227
      %v1305 = vunpack.c.l.b16 %v1241
      %v1306 = vunpack.c.l.b16 %v1255
      %v1307 = vunpack.c.l.b16 %v1269
      %v1308 = vunpack.c.l.b16 %v1283
      %v1309 = vpack.c.b16 %v1302, %v1301
      %v1310 = vpack.c.b16 %v1304, %v1303
      %v1311 = vpack.c.b16 %v1306, %v1305
      %v1312 = vpack.c.b16 %v1308, %v1307
      %v1333 = vunpack.c.l.b16 %v1285
      %v1334 = vunpack.c.l.b16 %v1286
      %v1335 = vunpack.c.l.b16 %v1287
      %v1336 = vunpack.c.l.b16 %v1288
      %v1337 = vunpack.c.l.b16 %v1289
      %v1338 = vunpack.c.l.b16 %v1290
      %v1339 = vunpack.c.l.b16 %v1291
      %v1340 = vunpack.c.l.b16 %v1292
      %v1341 = vunpack.c.l.b16 %v1293
      %v1342 = vunpack.c.l.b16 %v1294
      %v1343 = vunpack.c.l.b16 %v1295
      %v1344 = vunpack.c.l.b16 %v1296
      %v1345 = vunpack.c.l.b16 %v1297
      %v1346 = vunpack.c.l.b16 %v1298
      %v1347 = vunpack.c.l.b16 %v1299
      %v1348 = vunpack.c.l.b16 %v1300
      %v1349 = vpack.c.b16 %v1334, %v1333
      %v1350 = vpack.c.b16 %v1336, %v1335
      %v1351 = vpack.c.b16 %v1338, %v1337
      %v1352 = vpack.c.b16 %v1340, %v1339
      %v1353 = vpack.c.b16 %v1342, %v1341
      %v1354 = vpack.c.b16 %v1344, %v1343
      %v1355 = vpack.c.b16 %v1346, %v1345
      %v1356 = vpack.c.b16 %v1348, %v1347
      %1365 = vmatprep.subr.bf16.mxu0 0
      %1366 = vmatpush1.bf16.msra.mxu0 %v1349
      %1367 = vmatprep.subr.bf16.mxu0 0
      %1368 = vmatpush1.bf16.msra.mxu0 %v1350
      %1369 = vmatprep.subr.bf16.mxu0 0
      %1370 = vmatpush1.bf16.msra.mxu0 %v1351
      %1371 = vmatprep.subr.bf16.mxu0 0
      %1372 = vmatpush1.bf16.msra.mxu0 %v1352
      %1373 = vmatprep.subr.bf16.mxu0 0
      %1374 = vmatpush1.bf16.msra.mxu0 %v1353
      %1375 = vmatprep.subr.bf16.mxu0 0
      %1376 = vmatpush1.bf16.msra.mxu0 %v1354
      %1377 = vmatprep.subr.bf16.mxu0 0
      %1378 = vmatpush1.bf16.msra.mxu0 %v1355
      %1379 = vmatprep.subr.bf16.mxu0 0
      %1380 = vmatpush1.bf16.msra.mxu0 %v1356
      %1381 = vmatprep.subr.bf16.mxu0 0
      %1382 = vmatpush1.bf16.msra.mxu0 0
      %1383 = vmatprep.subr.bf16.mxu0 0
      %1384 = vmatpush1.bf16.msra.mxu0 0
      %1385 = vmatprep.subr.bf16.mxu0 0
      %1386 = vmatpush1.bf16.msra.mxu0 0
      %1387 = vmatprep.subr.bf16.mxu0 0
      %1388 = vmatpush1.bf16.msra.mxu0 0
      %1389 = vmatprep.subr.bf16.mxu0 0
      %1390 = vmatpush1.bf16.msra.mxu0 0
      %1391 = vmatprep.subr.bf16.mxu0 0
      %1392 = vmatpush1.bf16.msra.mxu0 0
      %1393 = vmatprep.subr.bf16.mxu0 0
      %1394 = vmatpush1.bf16.msra.mxu0 0
      %1395 = vmatprep.subr.bf16.mxu0 0
      %1396 = vmatpush1.bf16.msra.mxu0 0
      %1397 = vmatprep.mubr.bf16.mxu0 0
      %1398 = vmatmul.mubr.bf16.gmra.mrb[0].mxu0 %v1309
      %v1399 = vpop.f32.mrb[0].mxu0
      %v1400 = vadd.f32 0.0, %v1399
      %v1401 = vpop.f32.mrb[0].mxu0
      %v1402 = vpop.f32.mrb[0].mxu0
      %v1403 = vadd.f32 0.0, %v1402
      %v1404 = vpop.f32.mrb[0].mxu0
      %1405 = vmatprep.mubr.bf16.mxu0 0
      %1406 = vmatmul.mubr.bf16.gmra.mrb[0].mxu0 %v1310
      %v1407 = vpop.f32.mrb[0].mxu0
      %v1408 = vadd.f32 0.0, %v1407
      %v1409 = vpop.f32.mrb[0].mxu0
      %v1410 = vpop.f32.mrb[0].mxu0
      %v1411 = vadd.f32 0.0, %v1410
      %v1412 = vpop.f32.mrb[0].mxu0
      %1413 = vmatprep.mubr.bf16.mxu0 0
      %1414 = vmatmul.mubr.bf16.gmra.mrb[0].mxu0 %v1311
      %v1415 = vpop.f32.mrb[0].mxu0
      %v1416 = vadd.f32 0.0, %v1415
      %v1417 = vpop.f32.mrb[0].mxu0
      %v1418 = vpop.f32.mrb[0].mxu0
      %v1419 = vadd.f32 0.0, %v1418
      %v1420 = vpop.f32.mrb[0].mxu0
      %1421 = vmatprep.mubr.bf16.mxu0 0
      %1422 = vmatmul.mubr.bf16.gmra.mrb[0].mxu0 %v1312
      %v1423 = vpop.f32.mrb[0].mxu0
      %v1424 = vadd.f32 0.0, %v1423
      %v1425 = vpop.f32.mrb[0].mxu0
      %v1426 = vpop.f32.mrb[0].mxu0
      %v1427 = vadd.f32 0.0, %v1426
      %v1428 = vpop.f32.mrb[0].mxu0
      %1429 = vdwg.mxu0
      %v1430 = vadd.f32 %v1164, %v1400
      %v1431 = vadd.f32 %v1165, %v1403
      %v1432 = vadd.f32 %v1166, %v1408
      %v1433 = vadd.f32 %v1167, %v1411
      %v1434 = vadd.f32 %v1168, %v1416
      %v1435 = vadd.f32 %v1169, %v1419
      %v1436 = vadd.f32 %v1170, %v1424
      %v1437 = vadd.f32 %v1171, %v1427
      %1438 = vst [vmem:[#allocation2] sm:$0xff] %v1430
      %1439 = vst [vmem:[#allocation2 + $0x8] sm:$0xff] %v1431
      %1440 = vst [vmem:[#allocation2 + $0x10] sm:$0xff] %v1432
      %1441 = vst [vmem:[#allocation2 + $0x18] sm:$0xff] %v1433
      %1442 = vst [vmem:[#allocation2 + $0x20] sm:$0xff] %v1434
      %1443 = vst [vmem:[#allocation2 + $0x28] sm:$0xff] %v1435
      %1444 = vst [vmem:[#allocation2 + $0x30] sm:$0xff] %v1436
      %1445 = vst [vmem:[#allocation2 + $0x38] sm:$0xff] %v1437
      %v1446 = vld [vmem:[%s961] sm:$0xe]
      %v1447 = vld [vmem:[%s961 + $0x4] sm:$0x1]
      %v1448 = vld [vmem:[%s961 + $0x8] sm:$0xe]
      %v1449 = vld [vmem:[%s961 + $0xc] sm:$0x1]
      %v1450 = vld [vmem:[%s961 + $0x10] sm:$0xe]
      %v1451 = vld [vmem:[%s961 + $0x14] sm:$0x1]
      %v1452 = vld [vmem:[%s961 + $0x18] sm:$0xe]
      %v1453 = vld [vmem:[%s961 + $0x1c] sm:$0x1]
      %v1454 = vld [vmem:[%s961 + $0x20] sm:$0xe]
      %v1455 = vld [vmem:[%s961 + $0x24] sm:$0x1]
      %v1456 = vld [vmem:[%s961 + $0x28] sm:$0xe]
      %v1457 = vld [vmem:[%s961 + $0x2c] sm:$0x1]
      %v1458 = vld [vmem:[%s961 + $0x30] sm:$0xe]
      %v1459 = vld [vmem:[%s961 + $0x34] sm:$0x1]
      %v1460 = vld [vmem:[%s961 + $0x38] sm:$0xe]
      %v1461 = vld [vmem:[%s961 + $0x3c] sm:$0x1]
      %v1462 = vld [vmem:[#allocation2] sm:$0xff]
      %v1463 = vld [vmem:[#allocation2 + $0x8] sm:$0xff]
      %v1464 = vld [vmem:[#allocation2 + $0x10] sm:$0xff]
      %v1465 = vld [vmem:[#allocation2 + $0x18] sm:$0xff]
      %v1466 = vld [vmem:[#allocation2 + $0x20] sm:$0xff]
      %v1467 = vld [vmem:[#allocation2 + $0x28] sm:$0xff]
      %v1468 = vld [vmem:[#allocation2 + $0x30] sm:$0xff]
      %v1469 = vld [vmem:[#allocation2 + $0x38] sm:$0xff]
      %v1486 = vrot.slane %v1446, 5
      %v1487 = vrot.slane %v1486, 4
      %v1488 = vrot.slane %v1447, 5
      %v1489 = vsel %vm766, %v1487, %v1488
      %v1490 = vrot.slane %v1448, 5
      %v1491 = vrot.slane %v1490, 4
      %v1492 = vrot.slane %v1449, 5
      %v1493 = vsel %vm766, %v1491, %v1492
      %v1494 = vrot.slane %v1450, 5
      %v1495 = vrot.slane %v1494, 4
      %v1496 = vrot.slane %v1451, 5
      %v1497 = vsel %vm766, %v1495, %v1496
      %v1498 = vrot.slane %v1452, 5
      %v1499 = vrot.slane %v1498, 4
      %v1500 = vrot.slane %v1453, 5
      %v1501 = vsel %vm766, %v1499, %v1500
      %v1502 = vrot.slane %v1454, 5
      %v1503 = vrot.slane %v1502, 4
      %v1504 = vrot.slane %v1455, 5
      %v1505 = vsel %vm766, %v1503, %v1504
      %v1506 = vrot.slane %v1456, 5
      %v1507 = vrot.slane %v1506, 4
      %v1508 = vrot.slane %v1457, 5
      %v1509 = vsel %vm766, %v1507, %v1508
      %v1510 = vrot.slane %v1458, 5
      %v1511 = vrot.slane %v1510, 4
      %v1512 = vrot.slane %v1459, 5
      %v1513 = vsel %vm766, %v1511, %v1512
      %v1514 = vrot.slane %v1460, 5
      %v1515 = vrot.slane %v1514, 4
      %v1516 = vrot.slane %v1461, 5
      %v1517 = vsel %vm766, %v1515, %v1516
      %s1518 = scalar_lea.vmem %s210, 320
      %v1519 = vld [vmem:[%s1518] sm:$0xf]
      %v1520 = vld [vmem:[%s1518 + $0x4] sm:$0xf]
      %v1521 = vld [vmem:[%s1518 + $0x8] sm:$0xf]
      %v1522 = vld [vmem:[%s1518 + $0xc] sm:$0xf]
      %v1523 = vld [vmem:[%s1518 + $0x10] sm:$0xf]
      %v1524 = vld [vmem:[%s1518 + $0x14] sm:$0xf]
      %v1525 = vld [vmem:[%s1518 + $0x18] sm:$0xf]
      %v1526 = vld [vmem:[%s1518 + $0x1c] sm:$0xf]
      %v1527 = vld [vmem:[%s1518 + $0x20] sm:$0xf]
      %v1528 = vld [vmem:[%s1518 + $0x24] sm:$0xf]
      %v1529 = vld [vmem:[%s1518 + $0x28] sm:$0xf]
      %v1530 = vld [vmem:[%s1518 + $0x2c] sm:$0xf]
      %v1531 = vld [vmem:[%s1518 + $0x30] sm:$0xf]
      %v1532 = vld [vmem:[%s1518 + $0x34] sm:$0xf]
      %v1533 = vld [vmem:[%s1518 + $0x38] sm:$0xf]
      %v1534 = vld [vmem:[%s1518 + $0x3c] sm:$0xf]
      %v1535 = vunpack.c.l.b16 %v1489
      %v1536 = vunpack.c.l.b16 %v1493
      %v1537 = vunpack.c.l.b16 %v1497
      %v1538 = vunpack.c.l.b16 %v1501
      %v1539 = vunpack.c.l.b16 %v1505
      %v1540 = vunpack.c.l.b16 %v1509
      %v1541 = vunpack.c.l.b16 %v1513
      %v1542 = vunpack.c.l.b16 %v1517
      %v1543 = vpack.c.b16 %v1536, %v1535
      %v1544 = vpack.c.b16 %v1538, %v1537
      %v1545 = vpack.c.b16 %v1540, %v1539
      %v1546 = vpack.c.b16 %v1542, %v1541
      %v1567 = vunpack.c.l.b16 %v1519
      %v1568 = vunpack.c.l.b16 %v1520
      %v1569 = vunpack.c.l.b16 %v1521
      %v1570 = vunpack.c.l.b16 %v1522
      %v1571 = vunpack.c.l.b16 %v1523
      %v1572 = vunpack.c.l.b16 %v1524
      %v1573 = vunpack.c.l.b16 %v1525
      %v1574 = vunpack.c.l.b16 %v1526
      %v1575 = vunpack.c.l.b16 %v1527
      %v1576 = vunpack.c.l.b16 %v1528
      %v1577 = vunpack.c.l.b16 %v1529
      %v1578 = vunpack.c.l.b16 %v1530
      %v1579 = vunpack.c.l.b16 %v1531
      %v1580 = vunpack.c.l.b16 %v1532
      %v1581 = vunpack.c.l.b16 %v1533
      %v1582 = vunpack.c.l.b16 %v1534
      %v1583 = vpack.c.b16 %v1568, %v1567
      %v1584 = vpack.c.b16 %v1570, %v1569
      %v1585 = vpack.c.b16 %v1572, %v1571
      %v1586 = vpack.c.b16 %v1574, %v1573
      %v1587 = vpack.c.b16 %v1576, %v1575
      %v1588 = vpack.c.b16 %v1578, %v1577
      %v1589 = vpack.c.b16 %v1580, %v1579
      %v1590 = vpack.c.b16 %v1582, %v1581
      %1599 = vmatprep.subr.bf16.mxu0 0
      %1600 = vmatpush1.bf16.msra.mxu0 %v1583
      %1601 = vmatprep.subr.bf16.mxu0 0
      %1602 = vmatpush1.bf16.msra.mxu0 %v1584
      %1603 = vmatprep.subr.bf16.mxu0 0
      %1604 = vmatpush1.bf16.msra.mxu0 %v1585
      %1605 = vmatprep.subr.bf16.mxu0 0
      %1606 = vmatpush1.bf16.msra.mxu0 %v1586
      %1607 = vmatprep.subr.bf16.mxu0 0
      %1608 = vmatpush1.bf16.msra.mxu0 %v1587
      %1609 = vmatprep.subr.bf16.mxu0 0
      %1610 = vmatpush1.bf16.msra.mxu0 %v1588
      %1611 = vmatprep.subr.bf16.mxu0 0
      %1612 = vmatpush1.bf16.msra.mxu0 %v1589
      %1613 = vmatprep.subr.bf16.mxu0 0
      %1614 = vmatpush1.bf16.msra.mxu0 %v1590
      %1615 = vmatprep.subr.bf16.mxu0 0
      %1616 = vmatpush1.bf16.msra.mxu0 0
      %1617 = vmatprep.subr.bf16.mxu0 0
      %1618 = vmatpush1.bf16.msra.mxu0 0
      %1619 = vmatprep.subr.bf16.mxu0 0
      %1620 = vmatpush1.bf16.msra.mxu0 0
      %1621 = vmatprep.subr.bf16.mxu0 0
      %1622 = vmatpush1.bf16.msra.mxu0 0
      %1623 = vmatprep.subr.bf16.mxu0 0
      %1624 = vmatpush1.bf16.msra.mxu0 0
      %1625 = vmatprep.subr.bf16.mxu0 0
      %1626 = vmatpush1.bf16.msra.mxu0 0
      %1627 = vmatprep.subr.bf16.mxu0 0
      %1628 = vmatpush1.bf16.msra.mxu0 0
      %1629 = vmatprep.subr.bf16.mxu0 0
      %1630 = vmatpush1.bf16.msra.mxu0 0
      %1631 = vmatprep.mubr.bf16.mxu0 0
      %1632 = vmatmul.mubr.bf16.gmra.mrb[0].mxu0 %v1543
      %v1633 = vpop.f32.mrb[0].mxu0
      %v1634 = vadd.f32 0.0, %v1633
      %v1635 = vpop.f32.mrb[0].mxu0
      %v1636 = vpop.f32.mrb[0].mxu0
      %v1637 = vadd.f32 0.0, %v1636
      %v1638 = vpop.f32.mrb[0].mxu0
      %1639 = vmatprep.mubr.bf16.mxu0 0
      %1640 = vmatmul.mubr.bf16.gmra.mrb[0].mxu0 %v1544
      %v1641 = vpop.f32.mrb[0].mxu0
      %v1642 = vadd.f32 0.0, %v1641
      %v1643 = vpop.f32.mrb[0].mxu0
      %v1644 = vpop.f32.mrb[0].mxu0
      %v1645 = vadd.f32 0.0, %v1644
      %v1646 = vpop.f32.mrb[0].mxu0
      %1647 = vmatprep.mubr.bf16.mxu0 0
      %1648 = vmatmul.mubr.bf16.gmra.mrb[0].mxu0 %v1545
      %v1649 = vpop.f32.mrb[0].mxu0
      %v1650 = vadd.f32 0.0, %v1649
      %v1651 = vpop.f32.mrb[0].mxu0
      %v1652 = vpop.f32.mrb[0].mxu0
      %v1653 = vadd.f32 0.0, %v1652
      %v1654 = vpop.f32.mrb[0].mxu0
      %1655 = vmatprep.mubr.bf16.mxu0 0
      %1656 = vmatmul.mubr.bf16.gmra.mrb[0].mxu0 %v1546
      %v1657 = vpop.f32.mrb[0].mxu0
      %v1658 = vadd.f32 0.0, %v1657
      %v1659 = vpop.f32.mrb[0].mxu0
      %v1660 = vpop.f32.mrb[0].mxu0
      %v1661 = vadd.f32 0.0, %v1660
      %v1662 = vpop.f32.mrb[0].mxu0
      %1663 = vdwg.mxu0
      %v1664 = vadd.f32 %v1462, %v1634
      %v1665 = vadd.f32 %v1463, %v1637
      %v1666 = vadd.f32 %v1464, %v1642
      %v1667 = vadd.f32 %v1465, %v1645
      %v1668 = vadd.f32 %v1466, %v1650
      %v1669 = vadd.f32 %v1467, %v1653
      %v1670 = vadd.f32 %v1468, %v1658
      %v1671 = vadd.f32 %v1469, %v1661
      %1672 = vst [vmem:[#allocation2] sm:$0xff] %v1664
      %1673 = vst [vmem:[#allocation2 + $0x8] sm:$0xff] %v1665
      %1674 = vst [vmem:[#allocation2 + $0x10] sm:$0xff] %v1666
      %1675 = vst [vmem:[#allocation2 + $0x18] sm:$0xff] %v1667
      %1676 = vst [vmem:[#allocation2 + $0x20] sm:$0xff] %v1668
      %1677 = vst [vmem:[#allocation2 + $0x28] sm:$0xff] %v1669
      %1678 = vst [vmem:[#allocation2 + $0x30] sm:$0xff] %v1670
      %1679 = vst [vmem:[#allocation2 + $0x38] sm:$0xff] %v1671
      %s1680 = scalar_lea.vmem %s206, 16
      %v1681 = vld [vmem:[%s1680] sm:$0xf]
      %v1682 = vld [vmem:[%s1680 + $0x8] sm:$0xf]
      %v1683 = vld [vmem:[%s1680 + $0x10] sm:$0xf]
      %v1684 = vld [vmem:[%s1680 + $0x18] sm:$0xf]
      %v1685 = vld [vmem:[%s1680 + $0x20] sm:$0xf]
      %v1686 = vld [vmem:[%s1680 + $0x28] sm:$0xf]
      %v1687 = vld [vmem:[%s1680 + $0x30] sm:$0xf]
      %v1688 = vld [vmem:[%s1680 + $0x38] sm:$0xf]
      %v1689 = vld [vmem:[#allocation2] sm:$0xff]
      %v1690 = vld [vmem:[#allocation2 + $0x8] sm:$0xff]
      %v1691 = vld [vmem:[#allocation2 + $0x10] sm:$0xff]
      %v1692 = vld [vmem:[#allocation2 + $0x18] sm:$0xff]
      %v1693 = vld [vmem:[#allocation2 + $0x20] sm:$0xff]
      %v1694 = vld [vmem:[#allocation2 + $0x28] sm:$0xff]
      %v1695 = vld [vmem:[#allocation2 + $0x30] sm:$0xff]
      %v1696 = vld [vmem:[#allocation2 + $0x38] sm:$0xff]
      %s1697 = scalar_lea.vmem %s210, 384
      %v1698 = vld [vmem:[%s1697] sm:$0xf]
      %v1699 = vld [vmem:[%s1697 + $0x4] sm:$0xf]
      %v1700 = vld [vmem:[%s1697 + $0x8] sm:$0xf]
      %v1701 = vld [vmem:[%s1697 + $0xc] sm:$0xf]
      %v1702 = vld [vmem:[%s1697 + $0x10] sm:$0xf]
      %v1703 = vld [vmem:[%s1697 + $0x14] sm:$0xf]
      %v1704 = vld [vmem:[%s1697 + $0x18] sm:$0xf]
      %v1705 = vld [vmem:[%s1697 + $0x1c] sm:$0xf]
      %v1706 = vld [vmem:[%s1697 + $0x20] sm:$0xf]
      %v1707 = vld [vmem:[%s1697 + $0x24] sm:$0xf]
      %v1708 = vld [vmem:[%s1697 + $0x28] sm:$0xf]
      %v1709 = vld [vmem:[%s1697 + $0x2c] sm:$0xf]
      %v1710 = vld [vmem:[%s1697 + $0x30] sm:$0xf]
      %v1711 = vld [vmem:[%s1697 + $0x34] sm:$0xf]
      %v1712 = vld [vmem:[%s1697 + $0x38] sm:$0xf]
      %v1713 = vld [vmem:[%s1697 + $0x3c] sm:$0xf]
      %v1722 = vunpack.c.l.b16 %v1681
      %v1723 = vunpack.c.l.b16 %v1682
      %v1724 = vunpack.c.l.b16 %v1683
      %v1725 = vunpack.c.l.b16 %v1684
      %v1726 = vunpack.c.l.b16 %v1685
      %v1727 = vunpack.c.l.b16 %v1686
      %v1728 = vunpack.c.l.b16 %v1687
      %v1729 = vunpack.c.l.b16 %v1688
      %v1730 = vpack.c.b16 %v1723, %v1722
      %v1731 = vpack.c.b16 %v1725, %v1724
      %v1732 = vpack.c.b16 %v1727, %v1726
      %v1733 = vpack.c.b16 %v1729, %v1728
      %v1754 = vunpack.c.l.b16 %v1698
      %v1755 = vunpack.c.l.b16 %v1699
      %v1756 = vunpack.c.l.b16 %v1700
      %v1757 = vunpack.c.l.b16 %v1701
      %v1758 = vunpack.c.l.b16 %v1702
      %v1759 = vunpack.c.l.b16 %v1703
      %v1760 = vunpack.c.l.b16 %v1704
      %v1761 = vunpack.c.l.b16 %v1705
      %v1762 = vunpack.c.l.b16 %v1706
      %v1763 = vunpack.c.l.b16 %v1707
      %v1764 = vunpack.c.l.b16 %v1708
      %v1765 = vunpack.c.l.b16 %v1709
      %v1766 = vunpack.c.l.b16 %v1710
      %v1767 = vunpack.c.l.b16 %v1711
      %v1768 = vunpack.c.l.b16 %v1712
      %v1769 = vunpack.c.l.b16 %v1713
      %v1770 = vpack.c.b16 %v1755, %v1754
      %v1771 = vpack.c.b16 %v1757, %v1756
      %v1772 = vpack.c.b16 %v1759, %v1758
      %v1773 = vpack.c.b16 %v1761, %v1760
      %v1774 = vpack.c.b16 %v1763, %v1762
      %v1775 = vpack.c.b16 %v1765, %v1764
      %v1776 = vpack.c.b16 %v1767, %v1766
      %v1777 = vpack.c.b16 %v1769, %v1768
      %1786 = vmatprep.subr.bf16.mxu0 0
      %1787 = vmatpush1.bf16.msra.mxu0 %v1770
      %1788 = vmatprep.subr.bf16.mxu0 0
      %1789 = vmatpush1.bf16.msra.mxu0 %v1771
      %1790 = vmatprep.subr.bf16.mxu0 0
      %1791 = vmatpush1.bf16.msra.mxu0 %v1772
      %1792 = vmatprep.subr.bf16.mxu0 0
      %1793 = vmatpush1.bf16.msra.mxu0 %v1773
      %1794 = vmatprep.subr.bf16.mxu0 0
      %1795 = vmatpush1.bf16.msra.mxu0 %v1774
      %1796 = vmatprep.subr.bf16.mxu0 0
      %1797 = vmatpush1.bf16.msra.mxu0 %v1775
      %1798 = vmatprep.subr.bf16.mxu0 0
      %1799 = vmatpush1.bf16.msra.mxu0 %v1776
      %1800 = vmatprep.subr.bf16.mxu0 0
      %1801 = vmatpush1.bf16.msra.mxu0 %v1777
      %1802 = vmatprep.subr.bf16.mxu0 0
      %1803 = vmatpush1.bf16.msra.mxu0 0
      %1804 = vmatprep.subr.bf16.mxu0 0
      %1805 = vmatpush1.bf16.msra.mxu0 0
      %1806 = vmatprep.subr.bf16.mxu0 0
      %1807 = vmatpush1.bf16.msra.mxu0 0
      %1808 = vmatprep.subr.bf16.mxu0 0
      %1809 = vmatpush1.bf16.msra.mxu0 0
      %1810 = vmatprep.subr.bf16.mxu0 0
      %1811 = vmatpush1.bf16.msra.mxu0 0
      %1812 = vmatprep.subr.bf16.mxu0 0
      %1813 = vmatpush1.bf16.msra.mxu0 0
      %1814 = vmatprep.subr.bf16.mxu0 0
      %1815 = vmatpush1.bf16.msra.mxu0 0
      %1816 = vmatprep.subr.bf16.mxu0 0
      %1817 = vmatpush1.bf16.msra.mxu0 0
      %1818 = vmatprep.mubr.bf16.mxu0 0
      %1819 = vmatmul.mubr.bf16.gmra.mrb[0].mxu0 %v1730
      %v1820 = vpop.f32.mrb[0].mxu0
      %v1821 = vadd.f32 0.0, %v1820
      %v1822 = vpop.f32.mrb[0].mxu0
      %v1823 = vpop.f32.mrb[0].mxu0
      %v1824 = vadd.f32 0.0, %v1823
      %v1825 = vpop.f32.mrb[0].mxu0
      %1826 = vmatprep.mubr.bf16.mxu0 0
      %1827 = vmatmul.mubr.bf16.gmra.mrb[0].mxu0 %v1731
      %v1828 = vpop.f32.mrb[0].mxu0
      %v1829 = vadd.f32 0.0, %v1828
      %v1830 = vpop.f32.mrb[0].mxu0
      %v1831 = vpop.f32.mrb[0].mxu0
      %v1832 = vadd.f32 0.0, %v1831
      %v1833 = vpop.f32.mrb[0].mxu0
      %1834 = vmatprep.mubr.bf16.mxu0 0
      %1835 = vmatmul.mubr.bf16.gmra.mrb[0].mxu0 %v1732
      %v1836 = vpop.f32.mrb[0].mxu0
      %v1837 = vadd.f32 0.0, %v1836
      %v1838 = vpop.f32.mrb[0].mxu0
      %v1839 = vpop.f32.mrb[0].mxu0
      %v1840 = vadd.f32 0.0, %v1839
      %v1841 = vpop.f32.mrb[0].mxu0
      %1842 = vmatprep.mubr.bf16.mxu0 0
      %1843 = vmatmul.mubr.bf16.gmra.mrb[0].mxu0 %v1733
      %v1844 = vpop.f32.mrb[0].mxu0
      %v1845 = vadd.f32 0.0, %v1844
      %v1846 = vpop.f32.mrb[0].mxu0
      %v1847 = vpop.f32.mrb[0].mxu0
      %v1848 = vadd.f32 0.0, %v1847
      %v1849 = vpop.f32.mrb[0].mxu0
      %1850 = vdwg.mxu0
      %v1851 = vadd.f32 %v1689, %v1821
      %v1852 = vadd.f32 %v1690, %v1824
      %v1853 = vadd.f32 %v1691, %v1829
      %v1854 = vadd.f32 %v1692, %v1832
      %v1855 = vadd.f32 %v1693, %v1837
      %v1856 = vadd.f32 %v1694, %v1840
      %v1857 = vadd.f32 %v1695, %v1845
      %v1858 = vadd.f32 %v1696, %v1848
      %1859 = vst [vmem:[#allocation2] sm:$0xff] %v1851
      %1860 = vst [vmem:[#allocation2 + $0x8] sm:$0xff] %v1852
      %1861 = vst [vmem:[#allocation2 + $0x10] sm:$0xff] %v1853
      %1862 = vst [vmem:[#allocation2 + $0x18] sm:$0xff] %v1854
      %1863 = vst [vmem:[#allocation2 + $0x20] sm:$0xff] %v1855
      %1864 = vst [vmem:[#allocation2 + $0x28] sm:$0xff] %v1856
      %1865 = vst [vmem:[#allocation2 + $0x30] sm:$0xff] %v1857
      %1866 = vst [vmem:[#allocation2 + $0x38] sm:$0xff] %v1858
      %v1867 = vld [vmem:[%s1680] sm:$0xf]
      %v1868 = vld [vmem:[%s1680 + $0x4] sm:$0x1]
      %v1869 = vld [vmem:[%s1680 + $0x8] sm:$0xf]
      %v1870 = vld [vmem:[%s1680 + $0xc] sm:$0x1]
      %v1871 = vld [vmem:[%s1680 + $0x10] sm:$0xf]
      %v1872 = vld [vmem:[%s1680 + $0x14] sm:$0x1]
      %v1873 = vld [vmem:[%s1680 + $0x18] sm:$0xf]
      %v1874 = vld [vmem:[%s1680 + $0x1c] sm:$0x1]
      %v1875 = vld [vmem:[%s1680 + $0x20] sm:$0xf]
      %v1876 = vld [vmem:[%s1680 + $0x24] sm:$0x1]
      %v1877 = vld [vmem:[%s1680 + $0x28] sm:$0xf]
      %v1878 = vld [vmem:[%s1680 + $0x2c] sm:$0x1]
      %v1879 = vld [vmem:[%s1680 + $0x30] sm:$0xf]
      %v1880 = vld [vmem:[%s1680 + $0x34] sm:$0x1]
      %v1881 = vld [vmem:[%s1680 + $0x38] sm:$0xf]
      %v1882 = vld [vmem:[%s1680 + $0x3c] sm:$0x1]
      %v1883 = vld [vmem:[#allocation2] sm:$0xff]
      %v1884 = vld [vmem:[#allocation2 + $0x8] sm:$0xff]
      %v1885 = vld [vmem:[#allocation2 + $0x10] sm:$0xff]
      %v1886 = vld [vmem:[#allocation2 + $0x18] sm:$0xff]
      %v1887 = vld [vmem:[#allocation2 + $0x20] sm:$0xff]
      %v1888 = vld [vmem:[#allocation2 + $0x28] sm:$0xff]
      %v1889 = vld [vmem:[#allocation2 + $0x30] sm:$0xff]
      %v1890 = vld [vmem:[#allocation2 + $0x38] sm:$0xff]
      %v1892 = vshrl.u32 %v1867, 16
      %v1894 = vrot.slane %v1892, 4
      %v1895 = vshll.u32 %v1867, 16
      %v1897 = vrot.slane %v1895, 5
      %v1898 = vor.u32 %v1894, %v1897
      %v1899 = vrot.slane %v1898, 4
      %v1901 = vshll.u32 %v1868, 16
      %v1903 = vrot.slane %v1901, 5
      %v1904 = vsel %vm449, %v1899, %v1903
      %v1906 = vshrl.u32 %v1869, 16
      %v1908 = vrot.slane %v1906, 4
      %v1909 = vshll.u32 %v1869, 16
      %v1911 = vrot.slane %v1909, 5
      %v1912 = vor.u32 %v1908, %v1911
      %v1913 = vrot.slane %v1912, 4
      %v1915 = vshll.u32 %v1870, 16
      %v1917 = vrot.slane %v1915, 5
      %v1918 = vsel %vm449, %v1913, %v1917
      %v1920 = vshrl.u32 %v1871, 16
      %v1922 = vrot.slane %v1920, 4
      %v1923 = vshll.u32 %v1871, 16
      %v1925 = vrot.slane %v1923, 5
      %v1926 = vor.u32 %v1922, %v1925
      %v1927 = vrot.slane %v1926, 4
      %v1929 = vshll.u32 %v1872, 16
      %v1931 = vrot.slane %v1929, 5
      %v1932 = vsel %vm449, %v1927, %v1931
      %v1934 = vshrl.u32 %v1873, 16
      %v1936 = vrot.slane %v1934, 4
      %v1937 = vshll.u32 %v1873, 16
      %v1939 = vrot.slane %v1937, 5
      %v1940 = vor.u32 %v1936, %v1939
      %v1941 = vrot.slane %v1940, 4
      %v1943 = vshll.u32 %v1874, 16
      %v1945 = vrot.slane %v1943, 5
      %v1946 = vsel %vm449, %v1941, %v1945
      %v1948 = vshrl.u32 %v1875, 16
      %v1950 = vrot.slane %v1948, 4
      %v1951 = vshll.u32 %v1875, 16
      %v1953 = vrot.slane %v1951, 5
      %v1954 = vor.u32 %v1950, %v1953
      %v1955 = vrot.slane %v1954, 4
      %v1957 = vshll.u32 %v1876, 16
      %v1959 = vrot.slane %v1957, 5
      %v1960 = vsel %vm449, %v1955, %v1959
      %v1962 = vshrl.u32 %v1877, 16
      %v1964 = vrot.slane %v1962, 4
      %v1965 = vshll.u32 %v1877, 16
      %v1967 = vrot.slane %v1965, 5
      %v1968 = vor.u32 %v1964, %v1967
      %v1969 = vrot.slane %v1968, 4
      %v1971 = vshll.u32 %v1878, 16
      %v1973 = vrot.slane %v1971, 5
      %v1974 = vsel %vm449, %v1969, %v1973
      %v1976 = vshrl.u32 %v1879, 16
      %v1978 = vrot.slane %v1976, 4
      %v1979 = vshll.u32 %v1879, 16
      %v1981 = vrot.slane %v1979, 5
      %v1982 = vor.u32 %v1978, %v1981
      %v1983 = vrot.slane %v1982, 4
      %v1985 = vshll.u32 %v1880, 16
      %v1987 = vrot.slane %v1985, 5
      %v1988 = vsel %vm449, %v1983, %v1987
      %v1990 = vshrl.u32 %v1881, 16
      %v1992 = vrot.slane %v1990, 4
      %v1993 = vshll.u32 %v1881, 16
      %v1995 = vrot.slane %v1993, 5
      %v1996 = vor.u32 %v1992, %v1995
      %v1997 = vrot.slane %v1996, 4
      %v1999 = vshll.u32 %v1882, 16
      %v2001 = vrot.slane %v1999, 5
      %v2002 = vsel %vm449, %v1997, %v2001
      %s2003 = scalar_lea.vmem %s210, 448
      %v2004 = vld [vmem:[%s2003] sm:$0xf]
      %v2005 = vld [vmem:[%s2003 + $0x4] sm:$0xf]
      %v2006 = vld [vmem:[%s2003 + $0x8] sm:$0xf]
      %v2007 = vld [vmem:[%s2003 + $0xc] sm:$0xf]
      %v2008 = vld [vmem:[%s2003 + $0x10] sm:$0xf]
      %v2009 = vld [vmem:[%s2003 + $0x14] sm:$0xf]
      %v2010 = vld [vmem:[%s2003 + $0x18] sm:$0xf]
      %v2011 = vld [vmem:[%s2003 + $0x1c] sm:$0xf]
      %v2012 = vld [vmem:[%s2003 + $0x20] sm:$0xf]
      %v2013 = vld [vmem:[%s2003 + $0x24] sm:$0xf]
      %v2014 = vld [vmem:[%s2003 + $0x28] sm:$0xf]
      %v2015 = vld [vmem:[%s2003 + $0x2c] sm:$0xf]
      %v2016 = vld [vmem:[%s2003 + $0x30] sm:$0xf]
      %v2017 = vld [vmem:[%s2003 + $0x34] sm:$0xf]
      %v2018 = vld [vmem:[%s2003 + $0x38] sm:$0xf]
      %v2019 = vld [vmem:[%s2003 + $0x3c] sm:$0xf]
      %v2020 = vunpack.c.l.b16 %v1904
      %v2021 = vunpack.c.l.b16 %v1918
      %v2022 = vunpack.c.l.b16 %v1932
      %v2023 = vunpack.c.l.b16 %v1946
      %v2024 = vunpack.c.l.b16 %v1960
      %v2025 = vunpack.c.l.b16 %v1974
      %v2026 = vunpack.c.l.b16 %v1988
      %v2027 = vunpack.c.l.b16 %v2002
      %v2028 = vpack.c.b16 %v2021, %v2020
      %v2029 = vpack.c.b16 %v2023, %v2022
      %v2030 = vpack.c.b16 %v2025, %v2024
      %v2031 = vpack.c.b16 %v2027, %v2026
      %v2052 = vunpack.c.l.b16 %v2004
      %v2053 = vunpack.c.l.b16 %v2005
      %v2054 = vunpack.c.l.b16 %v2006
      %v2055 = vunpack.c.l.b16 %v2007
      %v2056 = vunpack.c.l.b16 %v2008
      %v2057 = vunpack.c.l.b16 %v2009
      %v2058 = vunpack.c.l.b16 %v2010
      %v2059 = vunpack.c.l.b16 %v2011
      %v2060 = vunpack.c.l.b16 %v2012
      %v2061 = vunpack.c.l.b16 %v2013
      %v2062 = vunpack.c.l.b16 %v2014
      %v2063 = vunpack.c.l.b16 %v2015
      %v2064 = vunpack.c.l.b16 %v2016
      %v2065 = vunpack.c.l.b16 %v2017
      %v2066 = vunpack.c.l.b16 %v2018
      %v2067 = vunpack.c.l.b16 %v2019
      %v2068 = vpack.c.b16 %v2053, %v2052
      %v2069 = vpack.c.b16 %v2055, %v2054
      %v2070 = vpack.c.b16 %v2057, %v2056
      %v2071 = vpack.c.b16 %v2059, %v2058
      %v2072 = vpack.c.b16 %v2061, %v2060
      %v2073 = vpack.c.b16 %v2063, %v2062
      %v2074 = vpack.c.b16 %v2065, %v2064
      %v2075 = vpack.c.b16 %v2067, %v2066
      %2084 = vmatprep.subr.bf16.mxu0 0
      %2085 = vmatpush1.bf16.msra.mxu0 %v2068
      %2086 = vmatprep.subr.bf16.mxu0 0
      %2087 = vmatpush1.bf16.msra.mxu0 %v2069
      %2088 = vmatprep.subr.bf16.mxu0 0
      %2089 = vmatpush1.bf16.msra.mxu0 %v2070
      %2090 = vmatprep.subr.bf16.mxu0 0
      %2091 = vmatpush1.bf16.msra.mxu0 %v2071
      %2092 = vmatprep.subr.bf16.mxu0 0
      %2093 = vmatpush1.bf16.msra.mxu0 %v2072
      %2094 = vmatprep.subr.bf16.mxu0 0
      %2095 = vmatpush1.bf16.msra.mxu0 %v2073
      %2096 = vmatprep.subr.bf16.mxu0 0
      %2097 = vmatpush1.bf16.msra.mxu0 %v2074
      %2098 = vmatprep.subr.bf16.mxu0 0
      %2099 = vmatpush1.bf16.msra.mxu0 %v2075
      %2100 = vmatprep.subr.bf16.mxu0 0
      %2101 = vmatpush1.bf16.msra.mxu0 0
      %2102 = vmatprep.subr.bf16.mxu0 0
      %2103 = vmatpush1.bf16.msra.mxu0 0
      %2104 = vmatprep.subr.bf16.mxu0 0
      %2105 = vmatpush1.bf16.msra.mxu0 0
      %2106 = vmatprep.subr.bf16.mxu0 0
      %2107 = vmatpush1.bf16.msra.mxu0 0
      %2108 = vmatprep.subr.bf16.mxu0 0
      %2109 = vmatpush1.bf16.msra.mxu0 0
      %2110 = vmatprep.subr.bf16.mxu0 0
      %2111 = vmatpush1.bf16.msra.mxu0 0
      %2112 = vmatprep.subr.bf16.mxu0 0
      %2113 = vmatpush1.bf16.msra.mxu0 0
      %2114 = vmatprep.subr.bf16.mxu0 0
      %2115 = vmatpush1.bf16.msra.mxu0 0
      %2116 = vmatprep.mubr.bf16.mxu0 0
      %2117 = vmatmul.mubr.bf16.gmra.mrb[0].mxu0 %v2028
      %v2118 = vpop.f32.mrb[0].mxu0
      %v2119 = vadd.f32 0.0, %v2118
      %v2120 = vpop.f32.mrb[0].mxu0
      %v2121 = vpop.f32.mrb[0].mxu0
      %v2122 = vadd.f32 0.0, %v2121
      %v2123 = vpop.f32.mrb[0].mxu0
      %2124 = vmatprep.mubr.bf16.mxu0 0
      %2125 = vmatmul.mubr.bf16.gmra.mrb[0].mxu0 %v2029
      %v2126 = vpop.f32.mrb[0].mxu0
      %v2127 = vadd.f32 0.0, %v2126
      %v2128 = vpop.f32.mrb[0].mxu0
      %v2129 = vpop.f32.mrb[0].mxu0
      %v2130 = vadd.f32 0.0, %v2129
      %v2131 = vpop.f32.mrb[0].mxu0
      %2132 = vmatprep.mubr.bf16.mxu0 0
      %2133 = vmatmul.mubr.bf16.gmra.mrb[0].mxu0 %v2030
      %v2134 = vpop.f32.mrb[0].mxu0
      %v2135 = vadd.f32 0.0, %v2134
      %v2136 = vpop.f32.mrb[0].mxu0
      %v2137 = vpop.f32.mrb[0].mxu0
      %v2138 = vadd.f32 0.0, %v2137
      %v2139 = vpop.f32.mrb[0].mxu0
      %2140 = vmatprep.mubr.bf16.mxu0 0
      %2141 = vmatmul.mubr.bf16.gmra.mrb[0].mxu0 %v2031
      %v2142 = vpop.f32.mrb[0].mxu0
      %v2143 = vadd.f32 0.0, %v2142
      %v2144 = vpop.f32.mrb[0].mxu0
      %v2145 = vpop.f32.mrb[0].mxu0
      %v2146 = vadd.f32 0.0, %v2145
      %v2147 = vpop.f32.mrb[0].mxu0
      %2148 = vdwg.mxu0
      %v2149 = vadd.f32 %v1883, %v2119
      %v2150 = vadd.f32 %v1884, %v2122
      %v2151 = vadd.f32 %v1885, %v2127
      %v2152 = vadd.f32 %v1886, %v2130
      %v2153 = vadd.f32 %v1887, %v2135
      %v2154 = vadd.f32 %v1888, %v2138
      %v2155 = vadd.f32 %v1889, %v2143
      %v2156 = vadd.f32 %v1890, %v2146
      %2157 = vst [vmem:[#allocation2] sm:$0xff] %v2149
      %2158 = vst [vmem:[#allocation2 + $0x8] sm:$0xff] %v2150
      %2159 = vst [vmem:[#allocation2 + $0x10] sm:$0xff] %v2151
      %2160 = vst [vmem:[#allocation2 + $0x18] sm:$0xff] %v2152
      %2161 = vst [vmem:[#allocation2 + $0x20] sm:$0xff] %v2153
      %2162 = vst [vmem:[#allocation2 + $0x28] sm:$0xff] %v2154
      %2163 = vst [vmem:[#allocation2 + $0x30] sm:$0xff] %v2155
      %2164 = vst [vmem:[#allocation2 + $0x38] sm:$0xff] %v2156
      %v2165 = vld [vmem:[%s1680] sm:$0xe]
      %v2166 = vld [vmem:[%s1680 + $0x4] sm:$0x1]
      %v2167 = vld [vmem:[%s1680 + $0x8] sm:$0xe]
      %v2168 = vld [vmem:[%s1680 + $0xc] sm:$0x1]
      %v2169 = vld [vmem:[%s1680 + $0x10] sm:$0xe]
      %v2170 = vld [vmem:[%s1680 + $0x14] sm:$0x1]
      %v2171 = vld [vmem:[%s1680 + $0x18] sm:$0xe]
      %v2172 = vld [vmem:[%s1680 + $0x1c] sm:$0x1]
      %v2173 = vld [vmem:[%s1680 + $0x20] sm:$0xe]
      %v2174 = vld [vmem:[%s1680 + $0x24] sm:$0x1]
      %v2175 = vld [vmem:[%s1680 + $0x28] sm:$0xe]
      %v2176 = vld [vmem:[%s1680 + $0x2c] sm:$0x1]
      %v2177 = vld [vmem:[%s1680 + $0x30] sm:$0xe]
      %v2178 = vld [vmem:[%s1680 + $0x34] sm:$0x1]
      %v2179 = vld [vmem:[%s1680 + $0x38] sm:$0xe]
      %v2180 = vld [vmem:[%s1680 + $0x3c] sm:$0x1]
      %v2181 = vld [vmem:[#allocation2] sm:$0xff]
      %v2182 = vld [vmem:[#allocation2 + $0x8] sm:$0xff]
      %v2183 = vld [vmem:[#allocation2 + $0x10] sm:$0xff]
      %v2184 = vld [vmem:[#allocation2 + $0x18] sm:$0xff]
      %v2185 = vld [vmem:[#allocation2 + $0x20] sm:$0xff]
      %v2186 = vld [vmem:[#allocation2 + $0x28] sm:$0xff]
      %v2187 = vld [vmem:[#allocation2 + $0x30] sm:$0xff]
      %v2188 = vld [vmem:[#allocation2 + $0x38] sm:$0xff]
      %v2205 = vrot.slane %v2165, 5
      %v2206 = vrot.slane %v2205, 4
      %v2207 = vrot.slane %v2166, 5
      %v2208 = vsel %vm766, %v2206, %v2207
      %v2209 = vrot.slane %v2167, 5
      %v2210 = vrot.slane %v2209, 4
      %v2211 = vrot.slane %v2168, 5
      %v2212 = vsel %vm766, %v2210, %v2211
      %v2213 = vrot.slane %v2169, 5
      %v2214 = vrot.slane %v2213, 4
      %v2215 = vrot.slane %v2170, 5
      %v2216 = vsel %vm766, %v2214, %v2215
      %v2217 = vrot.slane %v2171, 5
      %v2218 = vrot.slane %v2217, 4
      %v2219 = vrot.slane %v2172, 5
      %v2220 = vsel %vm766, %v2218, %v2219
      %v2221 = vrot.slane %v2173, 5
      %v2222 = vrot.slane %v2221, 4
      %v2223 = vrot.slane %v2174, 5
      %v2224 = vsel %vm766, %v2222, %v2223
      %v2225 = vrot.slane %v2175, 5
      %v2226 = vrot.slane %v2225, 4
      %v2227 = vrot.slane %v2176, 5
      %v2228 = vsel %vm766, %v2226, %v2227
      %v2229 = vrot.slane %v2177, 5
      %v2230 = vrot.slane %v2229, 4
      %v2231 = vrot.slane %v2178, 5
      %v2232 = vsel %vm766, %v2230, %v2231
      %v2233 = vrot.slane %v2179, 5
      %v2234 = vrot.slane %v2233, 4
      %v2235 = vrot.slane %v2180, 5
      %v2236 = vsel %vm766, %v2234, %v2235
      %s2237 = scalar_lea.vmem %s210, 512
      %v2238 = vld [vmem:[%s2237] sm:$0xf]
      %v2239 = vld [vmem:[%s2237 + $0x4] sm:$0xf]
      %v2240 = vld [vmem:[%s2237 + $0x8] sm:$0xf]
      %v2241 = vld [vmem:[%s2237 + $0xc] sm:$0xf]
      %v2242 = vld [vmem:[%s2237 + $0x10] sm:$0xf]
      %v2243 = vld [vmem:[%s2237 + $0x14] sm:$0xf]
      %v2244 = vld [vmem:[%s2237 + $0x18] sm:$0xf]
      %v2245 = vld [vmem:[%s2237 + $0x1c] sm:$0xf]
      %v2246 = vld [vmem:[%s2237 + $0x20] sm:$0xf]
      %v2247 = vld [vmem:[%s2237 + $0x24] sm:$0xf]
      %v2248 = vld [vmem:[%s2237 + $0x28] sm:$0xf]
      %v2249 = vld [vmem:[%s2237 + $0x2c] sm:$0xf]
      %v2250 = vld [vmem:[%s2237 + $0x30] sm:$0xf]
      %v2251 = vld [vmem:[%s2237 + $0x34] sm:$0xf]
      %v2252 = vld [vmem:[%s2237 + $0x38] sm:$0xf]
      %v2253 = vld [vmem:[%s2237 + $0x3c] sm:$0xf]
      %v2254 = vunpack.c.l.b16 %v2208
      %v2255 = vunpack.c.l.b16 %v2212
      %v2256 = vunpack.c.l.b16 %v2216
      %v2257 = vunpack.c.l.b16 %v2220
      %v2258 = vunpack.c.l.b16 %v2224
      %v2259 = vunpack.c.l.b16 %v2228
      %v2260 = vunpack.c.l.b16 %v2232
      %v2261 = vunpack.c.l.b16 %v2236
      %v2262 = vpack.c.b16 %v2255, %v2254
      %v2263 = vpack.c.b16 %v2257, %v2256
      %v2264 = vpack.c.b16 %v2259, %v2258
      %v2265 = vpack.c.b16 %v2261, %v2260
      %v2286 = vunpack.c.l.b16 %v2238
      %v2287 = vunpack.c.l.b16 %v2239
      %v2288 = vunpack.c.l.b16 %v2240
      %v2289 = vunpack.c.l.b16 %v2241
      %v2290 = vunpack.c.l.b16 %v2242
      %v2291 = vunpack.c.l.b16 %v2243
      %v2292 = vunpack.c.l.b16 %v2244
      %v2293 = vunpack.c.l.b16 %v2245
      %v2294 = vunpack.c.l.b16 %v2246
      %v2295 = vunpack.c.l.b16 %v2247
      %v2296 = vunpack.c.l.b16 %v2248
      %v2297 = vunpack.c.l.b16 %v2249
      %v2298 = vunpack.c.l.b16 %v2250
      %v2299 = vunpack.c.l.b16 %v2251
      %v2300 = vunpack.c.l.b16 %v2252
      %v2301 = vunpack.c.l.b16 %v2253
      %v2302 = vpack.c.b16 %v2287, %v2286
      %v2303 = vpack.c.b16 %v2289, %v2288
      %v2304 = vpack.c.b16 %v2291, %v2290
      %v2305 = vpack.c.b16 %v2293, %v2292
      %v2306 = vpack.c.b16 %v2295, %v2294
      %v2307 = vpack.c.b16 %v2297, %v2296
      %v2308 = vpack.c.b16 %v2299, %v2298
      %v2309 = vpack.c.b16 %v2301, %v2300
      %2318 = vmatprep.subr.bf16.mxu0 0
      %2319 = vmatpush1.bf16.msra.mxu0 %v2302
      %2320 = vmatprep.subr.bf16.mxu0 0
      %2321 = vmatpush1.bf16.msra.mxu0 %v2303
      %2322 = vmatprep.subr.bf16.mxu0 0
      %2323 = vmatpush1.bf16.msra.mxu0 %v2304
      %2324 = vmatprep.subr.bf16.mxu0 0
      %2325 = vmatpush1.bf16.msra.mxu0 %v2305
      %2326 = vmatprep.subr.bf16.mxu0 0
      %2327 = vmatpush1.bf16.msra.mxu0 %v2306
      %2328 = vmatprep.subr.bf16.mxu0 0
      %2329 = vmatpush1.bf16.msra.mxu0 %v2307
      %2330 = vmatprep.subr.bf16.mxu0 0
      %2331 = vmatpush1.bf16.msra.mxu0 %v2308
      %2332 = vmatprep.subr.bf16.mxu0 0
      %2333 = vmatpush1.bf16.msra.mxu0 %v2309
      %2334 = vmatprep.subr.bf16.mxu0 0
      %2335 = vmatpush1.bf16.msra.mxu0 0
      %2336 = vmatprep.subr.bf16.mxu0 0
      %2337 = vmatpush1.bf16.msra.mxu0 0
      %2338 = vmatprep.subr.bf16.mxu0 0
      %2339 = vmatpush1.bf16.msra.mxu0 0
      %2340 = vmatprep.subr.bf16.mxu0 0
      %2341 = vmatpush1.bf16.msra.mxu0 0
      %2342 = vmatprep.subr.bf16.mxu0 0
      %2343 = vmatpush1.bf16.msra.mxu0 0
      %2344 = vmatprep.subr.bf16.mxu0 0
      %2345 = vmatpush1.bf16.msra.mxu0 0
      %2346 = vmatprep.subr.bf16.mxu0 0
      %2347 = vmatpush1.bf16.msra.mxu0 0
      %2348 = vmatprep.subr.bf16.mxu0 0
      %2349 = vmatpush1.bf16.msra.mxu0 0
      %2350 = vmatprep.mubr.bf16.mxu0 0
      %2351 = vmatmul.mubr.bf16.gmra.mrb[0].mxu0 %v2262
      %v2352 = vpop.f32.mrb[0].mxu0
      %v2353 = vadd.f32 0.0, %v2352
      %v2354 = vpop.f32.mrb[0].mxu0
      %v2355 = vpop.f32.mrb[0].mxu0
      %v2356 = vadd.f32 0.0, %v2355
      %v2357 = vpop.f32.mrb[0].mxu0
      %2358 = vmatprep.mubr.bf16.mxu0 0
      %2359 = vmatmul.mubr.bf16.gmra.mrb[0].mxu0 %v2263
      %v2360 = vpop.f32.mrb[0].mxu0
      %v2361 = vadd.f32 0.0, %v2360
      %v2362 = vpop.f32.mrb[0].mxu0
      %v2363 = vpop.f32.mrb[0].mxu0
      %v2364 = vadd.f32 0.0, %v2363
      %v2365 = vpop.f32.mrb[0].mxu0
      %2366 = vmatprep.mubr.bf16.mxu0 0
      %2367 = vmatmul.mubr.bf16.gmra.mrb[0].mxu0 %v2264
      %v2368 = vpop.f32.mrb[0].mxu0
      %v2369 = vadd.f32 0.0, %v2368
      %v2370 = vpop.f32.mrb[0].mxu0
      %v2371 = vpop.f32.mrb[0].mxu0
      %v2372 = vadd.f32 0.0, %v2371
      %v2373 = vpop.f32.mrb[0].mxu0
      %2374 = vmatprep.mubr.bf16.mxu0 0
      %2375 = vmatmul.mubr.bf16.gmra.mrb[0].mxu0 %v2265
      %v2376 = vpop.f32.mrb[0].mxu0
      %v2377 = vadd.f32 0.0, %v2376
      %v2378 = vpop.f32.mrb[0].mxu0
      %v2379 = vpop.f32.mrb[0].mxu0
      %v2380 = vadd.f32 0.0, %v2379
      %v2381 = vpop.f32.mrb[0].mxu0
      %2382 = vdwg.mxu0
      %v2383 = vadd.f32 %v2181, %v2353
      %v2384 = vadd.f32 %v2182, %v2356
      %v2385 = vadd.f32 %v2183, %v2361
      %v2386 = vadd.f32 %v2184, %v2364
      %v2387 = vadd.f32 %v2185, %v2369
      %v2388 = vadd.f32 %v2186, %v2372
      %v2389 = vadd.f32 %v2187, %v2377
      %v2390 = vadd.f32 %v2188, %v2380
      %2391 = vst [vmem:[#allocation2] sm:$0xff] %v2383
      %2392 = vst [vmem:[#allocation2 + $0x8] sm:$0xff] %v2384
      %2393 = vst [vmem:[#allocation2 + $0x10] sm:$0xff] %v2385
      %2394 = vst [vmem:[#allocation2 + $0x18] sm:$0xff] %v2386
      %2395 = vst [vmem:[#allocation2 + $0x20] sm:$0xff] %v2387
      %2396 = vst [vmem:[#allocation2 + $0x28] sm:$0xff] %v2388
      %2397 = vst [vmem:[#allocation2 + $0x30] sm:$0xff] %v2389
      %2398 = vst [vmem:[#allocation2 + $0x38] sm:$0xff] %v2390
      %v2399 = vld [vmem:[#allocation2] sm:$0xff]
      %v2400 = vld [vmem:[#allocation2 + $0x8] sm:$0xff]
      %v2401 = vld [vmem:[#allocation2 + $0x10] sm:$0xff]
      %v2402 = vld [vmem:[#allocation2 + $0x18] sm:$0xff]
      %v2403 = vld [vmem:[#allocation2 + $0x20] sm:$0xff]
      %v2404 = vld [vmem:[#allocation2 + $0x28] sm:$0xff]
      %v2405 = vld [vmem:[#allocation2 + $0x30] sm:$0xff]
      %v2406 = vld [vmem:[#allocation2 + $0x38] sm:$0xff]
      %v2407 = vmax.f32 %v2399, 0.0
      %v2408 = vmax.f32 %v2400, 0.0
      %v2409 = vmax.f32 %v2401, 0.0
      %v2410 = vmax.f32 %v2402, 0.0
      %v2411 = vmax.f32 %v2403, 0.0
      %v2412 = vmax.f32 %v2404, 0.0
      %v2413 = vmax.f32 %v2405, 0.0
      %v2414 = vmax.f32 %v2406, 0.0
      %v2415 = vpack.c.bf16 %v2408, %v2407
      %v2416 = vpack.c.bf16 %v2410, %v2409
      %v2417 = vpack.c.bf16 %v2412, %v2411
      %v2418 = vpack.c.bf16 %v2414, %v2413
      %v2423 = vunpack.c.l.b16 %v2415
      %v2424 = vunpack.c.h.b16 %v2415
      %v2425 = vunpack.c.l.b16 %v2416
      %v2426 = vunpack.c.h.b16 %v2416
      %v2427 = vunpack.c.l.b16 %v2417
      %v2428 = vunpack.c.h.b16 %v2417
      %v2429 = vunpack.c.l.b16 %v2418
      %v2430 = vunpack.c.h.b16 %v2418
      %v2431 = vpack.c.b16 %v2423, %v2423
      %v2432 = vpack.c.b16 %v2424, %v2424
      %v2433 = vpack.c.b16 %v2425, %v2425
      %v2434 = vpack.c.b16 %v2426, %v2426
      %v2435 = vpack.c.b16 %v2427, %v2427
      %v2436 = vpack.c.b16 %v2428, %v2428
      %v2437 = vpack.c.b16 %v2429, %v2429
      %v2438 = vpack.c.b16 %v2430, %v2430
      %2447 = vst [vmem:[%s221] sm:$0xf] %v2431
      %2448 = vst [vmem:[%s221 + $0x4] sm:$0xf] %v2432
      %2449 = vst [vmem:[%s221 + $0x8] sm:$0xf] %v2433
      %2450 = vst [vmem:[%s221 + $0xc] sm:$0xf] %v2434
      %2451 = vst [vmem:[%s221 + $0x10] sm:$0xf] %v2435
      %2452 = vst [vmem:[%s221 + $0x14] sm:$0xf] %v2436
      %2453 = vst [vmem:[%s221 + $0x18] sm:$0xf] %v2437
      %2454 = vst [vmem:[%s221 + $0x1c] sm:$0xf] %v2438
      %p2455 = scmp.lt.s32.totalorder %s18, 1
      %s2456 = scalar_select %p2455, %s18, 1
      %p2457 = scmp.lt.s32.totalorder %s19, 0
      %s2458 = scalar_select %p2457, %s19, 0
      %s2459 = smul.addr %s2456, 8
      %s2460 = sadd.s32 %s2458, %s2459
      %s2461 = smul.addr %s2460, 4
      %s2462 = scalar_lea.vmem %s3, %s2461
      // Predicated region
      $region33: #{bottleneck_forward.4} parent=31 // pred_check
        %p2463 = pneg %p124
      $region34: #{bottleneck_forward.4} parent=31 // pred_check_branch
        %2465 = sbr.rel (%p2463) target = $region36
      $region35: #{bottleneck_forward.4} parent=31 // pred_region
        _
      $region36: #{bottleneck_forward.4} parent=31 // pred_fallthru
        _
    $region32: #{bottleneck_forward.4} parent=5 // pred_fallthru
      _
    %p2466 = scmp.le.s32.totalorder 2, %s9
    // Predicated region
    $region37: #{bottleneck_forward.4} parent=5 // pred_check
      %p2467 = pneg %p2466
    $region38: #{bottleneck_forward.4} parent=5 // pred_check_branch
      %2469 = sbr.rel (%p2467) target = $region40
    $region39: #{bottleneck_forward.4} parent=5 // pred_region
      %s2470 = ssub.s32 %s9, 2
      // Predicated region
      $region41: #{bottleneck_forward.4} parent=39 // pred_check
        %p2471 = pneg %p130
      $region42: #{bottleneck_forward.4} parent=39 // pred_check_branch
        %2473 = sbr.rel (%p2471) target = $region44
      $region43: #{bottleneck_forward.4} parent=39 // pred_region
        %p2474 = scmp.lt.s32.totalorder %s20, 1
        %s2475 = scalar_select %p2474, %s20, 1
        %p2476 = scmp.lt.s32.totalorder %s21, 0
        %s2477 = scalar_select %p2476, %s21, 0
        %s2478 = smul.addr %s2475, 8
        %s2479 = sadd.s32 %s2477, %s2478
        %s2480 = smul.addr %s2479, 4
        %s2481 = scalar_lea.vmem %s3, %s2480
      $region44: #{bottleneck_forward.4} parent=39 // pred_fallthru
        _
    $region40: #{bottleneck_forward.4} parent=5 // pred_fallthru
      _
  $region6: #{bottleneck_forward.4} parent=0 // loop_footer
    %s13 = sadd.s32 1, %s9
  $region7: #{bottleneck_forward.4} parent=0 // loop_footer_branch
    %8 = sbr.rel target = $region3
  $region8: #{bottleneck_forward.4} parent=0 // loop_exit
    _

</llo_original>
